<compile_context>
chip_gen: v6e
topology: v6e:2x2x1
jax: 0.10.0
libtpu: 0.0.40
codegen_flags: <defaults>
</compile_context>

<pallas_src>
import functools
import math

import numpy as np
import jax
import jax.numpy as jnp
from jax.experimental import pallas as pl
from jax.experimental.pallas import tpu as pltpu

_SQRT2 = math.sqrt(2.0)


def _gelu(x):
    # exact GELU (matches torch.nn.GELU default / F.gelu)
    return 0.5 * x * (1.0 + jax.lax.erf(x / _SQRT2))


def _layernorm(x, g, b, eps=1e-5):
    mu = jnp.mean(x, axis=-1, keepdims=True)
    var = jnp.mean(jnp.square(x - mu), axis=-1, keepdims=True)
    return (x - mu) * jax.lax.rsqrt(var + eps) * g + b


# ----------------------------------------------------------------------------
# The single fused kernel (grid axis == encoder layer index)
# ----------------------------------------------------------------------------
def _ister_kernel(x_ref, mk_ref, avg_ref,
                  ews_ref, ebs_ref, ewt_ref, ebt_ref,
                  wqkv_ref, bqkv_ref, wo_ref, bo_ref,
                  w1_ref, b1_ref, w2_ref, b2_ref, ln_ref,
                  mw13_ref, mb13_ref, mw2_ref, mb2_ref, mln_ref,
                  encln_ref, hws_ref, hbs_ref, hwt_ref, hbt_ref,
                  out_ref,
                  season_sc, trend_sc, mean_sc, std_sc,
                  *, act, n_vars, mlp_hidden):
    layer = pl.program_id(0)
    B, T, d = season_sc.shape
    N = n_vars
    M = T - N
    L = x_ref.shape[2]
    R = B * T

    # ---------------- step 0: norm + series_decomp + inverted embeddings ----
    @pl.when(layer == 0)
    def _prep():
        x2 = x_ref[...].reshape(B * N, L)

        # non-stationary normalization (mean / population variance over time)
        mu = jnp.mean(x2, axis=-1, keepdims=True)                 # [B*N, 1]
        xc = x2 - mu
        var = jnp.mean(xc * xc, axis=-1, keepdims=True)
        std = jnp.sqrt(var + 1e-5)
        xn = xc / std

        # series_decomp: edge-replicated moving average as one [L,L] matmul
        trend = jnp.dot(xn, avg_ref[...], preferred_element_type=jnp.float32)
        season = xn - trend

        # DataEmbedding_inverted for both branches (variate + time-mark tokens)
        mk2 = mk_ref[...].reshape(B * M, L)
        ws, bs = ews_ref[...], ebs_ref[...]
        wt, bt = ewt_ref[...], ebt_ref[...]
        dm = ws.shape[1]
        season_sc[:, :N, :] = (jnp.dot(season, ws, preferred_element_type=jnp.float32)
                               + bs).reshape(B, N, dm)
        season_sc[:, N:, :] = (jnp.dot(mk2, ws, preferred_element_type=jnp.float32)
                               + bs).reshape(B, M, dm)
        trend_sc[:, :N, :] = (jnp.dot(trend, wt, preferred_element_type=jnp.float32)
                              + bt).reshape(B, N, dm)
        trend_sc[:, N:, :] = (jnp.dot(mk2, wt, preferred_element_type=jnp.float32)
                              + bt).reshape(B, M, dm)
        mean_sc[...] = mu.reshape(B, N, 1)
        std_sc[...] = std.reshape(B, N, 1)

    # ---------------- every step: one fused EncoderLayer --------------------
    x3 = season_sc[...]                                           # [B, T, d]
    x2 = x3.reshape(R, d)

    # AttentionLayer: merged q|k|v projection (single MXU pass)
    qkv = jnp.dot(x2, wqkv_ref[0], preferred_element_type=jnp.float32) + bqkv_ref[0]
    q = qkv[:, :d].reshape(B, T, d)
    k = qkv[:, d:2 * d].reshape(B, T, d)
    v = qkv[:, 2 * d:].reshape(B, T, d)

    # DotAttention: softmax over the token axis (per batch / per feature),
    # scores = per-batch token-sum of gelu(softmax(q) * k), broadcast to tokens.
    e = jnp.exp(q - jnp.max(q, axis=1, keepdims=True))
    q_sm = e / jnp.sum(e, axis=1, keepdims=True)
    scores = jnp.sum(_gelu(q_sm * k), axis=1, keepdims=True)      # [B, 1, d]
    attn = (v * scores).reshape(R, d)                             # values * scores.repeat(...)

    attn = jnp.dot(attn, wo_ref[0], preferred_element_type=jnp.float32) + bo_ref[0]

    # residual + norm1 (fused)
    ln = ln_ref[0]
    h = _layernorm(x2 + attn, ln[0:1, :], ln[1:2, :])

    # position-wise FFN (Conv1d kernel_size=1 == per-token Linear)
    y = jnp.dot(h, w1_ref[0], preferred_element_type=jnp.float32) + b1_ref[0]
    y = _gelu(y) if act == "gelu" else jnp.maximum(y, 0.0)
    y = jnp.dot(y, w2_ref[0], preferred_element_type=jnp.float32) + b2_ref[0]

    # residual + norm2 (fused); write back to the resident seasonal tokens
    z = _layernorm(h + y, ln[2:3, :], ln[3:4, :])
    season_sc[...] = z.reshape(B, T, d)

    # ---------------- last step: final LN + trend MLP + heads + de-norm -----
    @pl.when(layer == pl.num_programs(0) - 1)
    def _finish():
        encln = encln_ref[...]
        s2 = _layernorm(season_sc[...].reshape(R, d), encln[0:1, :], encln[1:2, :])

        # trend branch: out = LN(fc2(gelu(fc1(x))) + fc3(x)); then x + out
        t2 = trend_sc[...].reshape(R, d)
        o13 = jnp.dot(t2, mw13_ref[...], preferred_element_type=jnp.float32) + mb13_ref[...]
        hmid = _gelu(o13[:, :mlp_hidden])
        mln = mln_ref[...]
        mlp_out = (jnp.dot(hmid, mw2_ref[...], preferred_element_type=jnp.float32)
                   + mb2_ref[...] + o13[:, mlp_hidden:])
        mlp_out = _layernorm(mlp_out, mln[0:1, :], mln[1:2, :])
        t_out = t2 + mlp_out

        # projection heads (sum of season/trend heads), keep variate tokens only
        proj = (jnp.dot(s2, hws_ref[...], preferred_element_type=jnp.float32) + hbs_ref[...]
                + jnp.dot(t_out, hwt_ref[...], preferred_element_type=jnp.float32)
                + hbt_ref[...])                                   # [R, P]
        P = hws_ref.shape[1]
        proj3 = proj.reshape(B, T, P)[:, :N, :]                   # [B, N, P]

        # de-normalization
        out_ref[...] = proj3 * std_sc[...] + mean_sc[...]


def pallas_ister_forward(x_t, marks_t, params, cfg):
    """x_t: [B, N, L] variates-as-tokens; marks_t: [B, M, L]. Returns [B, N, pred_len]."""
    B, N, L = x_t.shape
    M = marks_t.shape[1]
    T = N + M
    d, dff, P, E = cfg["d_model"], cfg["d_ff"], cfg["pred_len"], cfg["e_layers"]
    hid = d // 2
    emb, lyr, mlp, head = params["emb"], params["layers"], params["mlp"], params["head"]

    def full(shape):
        n = len(shape)
        return pl.BlockSpec(shape, lambda l, n=n: (0,) * n)

    def per_layer(shape):
        n = len(shape)
        return pl.BlockSpec((1,) + shape, lambda l, n=n: (l,) + (0,) * n)

    kernel = functools.partial(_ister_kernel, act=cfg["activation"],
                               n_vars=N, mlp_hidden=hid)

    return pl.pallas_call(
        kernel,
        grid=(E,),
        in_specs=[
            full((B, N, L)), full((B, M, L)), full((L, L)),
            full((L, d)), full((1, d)), full((L, d)), full((1, d)),
            per_layer((d, 3 * d)), per_layer((1, 3 * d)),
            per_layer((d, d)), per_layer((1, d)),
            per_layer((d, dff)), per_layer((1, dff)),
            per_layer((dff, d)), per_layer((1, d)),
            per_layer((4, d)),
            full((d, hid + d)), full((1, hid + d)),
            full((hid, d)), full((1, d)), full((2, d)),
            full((2, d)), full((d, P)), full((1, P)), full((d, P)), full((1, P)),
        ],
        out_specs=full((B, N, P)),
        out_shape=jax.ShapeDtypeStruct((B, N, P), jnp.float32),
        scratch_shapes=[
            pltpu.VMEM((B, T, d), jnp.float32),   # seasonal tokens (resident)
            pltpu.VMEM((B, T, d), jnp.float32),   # trend tokens (resident)
            pltpu.VMEM((B, N, 1), jnp.float32),   # per-variate means
            pltpu.VMEM((B, N, 1), jnp.float32),   # per-variate stdev
        ],
        compiler_params=pltpu.CompilerParams(dimension_semantics=("arbitrary",)),
    )(x_t, marks_t, params["avg_mat"],
      emb["w_s"], emb["b_s"], emb["w_t"], emb["b_t"],
      lyr["wqkv"], lyr["bqkv"], lyr["wo"], lyr["bo"],
      lyr["w1"], lyr["b1"], lyr["w2"], lyr["b2"], lyr["ln"],
      mlp["w13"], mlp["b13"], mlp["w2"], mlp["b2"], mlp["ln"],
      head["enc_ln"], head["w_s"], head["b_s"], head["w_t"], head["b_t"])


# ----------------------------------------------------------------------------
# Parameters (deterministic, PyTorch-default-style init), pre-packed for fusion
# ----------------------------------------------------------------------------
def _make_avg_matrix(L, kernel_size):
    # AvgPool1d(kernel, stride=1) over an edge-replication-padded series, as a
    # constant [L, L] matrix: trend_row = series_row @ A.T (no padded HBM slab).
    assert kernel_size % 2 == 1, "moving_avg kernel size must be odd (Autoformer convention)"
    p = (kernel_size - 1) // 2
    A = np.zeros((L, L), np.float32)
    for t in range(L):
        for j in range(kernel_size):
            src = min(max(t + j - p, 0), L - 1)
            A[t, src] += 1.0 / kernel_size
    return jnp.asarray(A.T)


def _linear_params(key, din, dout):
    kw, kb = jax.random.split(key)
    bound = 1.0 / math.sqrt(din)
    w = jax.random.uniform(kw, (din, dout), jnp.float32, -bound, bound)
    b = jax.random.uniform(kb, (dout,), jnp.float32, -bound, bound)
    return w, b


def init_params(key, cfg):
    keys = iter(jax.random.split(key, 128))
    d, dff, L, P = cfg["d_model"], cfg["d_ff"], cfg["seq_len"], cfg["pred_len"]
    ones = lambda: jnp.ones((d,), jnp.float32)
    zeros = lambda: jnp.zeros((d,), jnp.float32)

    ws, bs = _linear_params(next(keys), L, d)     # season DataEmbedding_inverted
    wt, bt = _linear_params(next(keys), L, d)     # trend  DataEmbedding_inverted
    params = {
        "avg_mat": _make_avg_matrix(L, cfg["moving_avg"]),
        "emb": {"w_s": ws, "b_s": bs.reshape(1, d), "w_t": wt, "b_t": bt.reshape(1, d)},
    }

    layer_list = []
    for _ in range(cfg["e_layers"]):
        wq, bq = _linear_params(next(keys), d, d)
        wk, bk = _linear_params(next(keys), d, d)
        wv, bv = _linear_params(next(keys), d, d)
        wo, bo = _linear_params(next(keys), d, d)
        w1, b1 = _linear_params(next(keys), d, dff)    # Conv1d kernel_size=1
        w2, b2 = _linear_params(next(keys), dff, d)    # Conv1d kernel_size=1
        layer_list.append({
            "wqkv": jnp.concatenate([wq, wk, wv], axis=1),
            "bqkv": jnp.concatenate([bq, bk, bv]).reshape(1, 3 * d),
            "wo": wo, "bo": bo.reshape(1, d),
            "w1": w1, "b1": b1.reshape(1, dff),
            "w2": w2, "b2": b2.reshape(1, d),
            # rows: norm1 gamma, norm1 beta, norm2 gamma, norm2 beta
            "ln": jnp.stack([ones(), zeros(), ones(), zeros()]),
        })
    # stack per-layer params along a leading e_layers axis (single fused call)
    params["layers"] = {k: jnp.stack([lp[k] for lp in layer_list])
                        for k in layer_list[0]}

    # MLP on the trend branch (fc1 | fc3 merged; fc2 separate)
    wf1, bf1 = _linear_params(next(keys), d, d // 2)
    wf2, bf2 = _linear_params(next(keys), d // 2, d)
    wf3, bf3 = _linear_params(next(keys), d, d)
    params["mlp"] = {
        "w13": jnp.concatenate([wf1, wf3], axis=1),
        "b13": jnp.concatenate([bf1, bf3]).reshape(1, d // 2 + d),
        "w2": wf2, "b2": bf2.reshape(1, d),
        "ln": jnp.stack([ones(), zeros()]),
    }
    # Encoder final LayerNorm + projection heads (weights explicitly 1/d_model)
    bound = 1.0 / math.sqrt(d)
    params["head"] = {
        "enc_ln": jnp.stack([ones(), zeros()]),
        "w_s": jnp.full((d, P), 1.0 / d, jnp.float32),
        "b_s": jax.random.uniform(next(keys), (1, P), jnp.float32, -bound, bound),
        "w_t": jnp.full((d, P), 1.0 / d, jnp.float32),
        "b_t": jax.random.uniform(next(keys), (1, P), jnp.float32, -bound, bound),
    }
    return params


# ----------------------------------------------------------------------------
# Model forward (only tiny layout transposes in XLA; all compute in 1 Pallas call)
# ----------------------------------------------------------------------------
def model_forward(params, cfg, x_enc, x_mark_enc, x_dec, x_mark_dec):
    # TODO(synk): all dropout layers are inference no-ops here (eval semantics).
    # variates (and time-mark features) become tokens of length seq_len
    x_t = jnp.transpose(x_enc, (0, 2, 1))            # [B, N, L]
    marks_t = jnp.transpose(x_mark_enc, (0, 2, 1))   # [B, M, L]
    dec = pallas_ister_forward(x_t, marks_t, params, cfg)          # [B, N, pred_len]
    return jnp.transpose(dec, (0, 2, 1))                           # [B, pred_len, N]


# ----------------------------------------------------------------------------
if __name__ == "__main__":
    cfg = {
        "task_name": "long_term_forecast",
        "seq_len": 16,
        "pred_len": 8,
        "d_model": 32,
        "d_ff": 64,
        "n_heads": 4,
        "e_layers": 2,
        "moving_avg": 5,
        "dropout": 0.1,
        "activation": "gelu",
        "embed": "timeF",
        "freq": "h",
        "output_attention": False,
    }
    B, N, M = 2, 4, 4  # batch, variates, time-mark features

    key = jax.random.PRNGKey(0)
    kp, kx, km = jax.random.split(key, 3)
    params = init_params(kp, cfg)

    x_enc = jax.random.normal(kx, (B, cfg["seq_len"], N), jnp.float32)
    x_mark_enc = jax.random.normal(km, (B, cfg["seq_len"], M), jnp.float32)
    x_dec = jnp.zeros((B, cfg["pred_len"], N), jnp.float32)        # unused by forecast
    x_mark_dec = jnp.zeros((B, cfg["pred_len"], M), jnp.float32)   # unused by forecast

    fwd = jax.jit(functools.partial(model_forward, params, cfg))
    out = fwd(x_enc, x_mark_enc, x_dec, x_mark_dec)
    jax.block_until_ready(out)

    assert out.shape == (B, cfg["pred_len"], N), out.shape
    assert bool(jnp.all(jnp.isfinite(out)))
    print("KERNEL_OK")
</pallas_src>

<mosaic_0001>
module attributes {stable_mosaic.version = 11 : i64} {
  func.func @_ister_kernel(%arg0: i32, %arg1: memref<2x4x16xf32, #tpu.memory_space<vmem>>, %arg2: memref<2x4x16xf32, #tpu.memory_space<vmem>>, %arg3: memref<16x16xf32, #tpu.memory_space<vmem>>, %arg4: memref<16x32xf32, #tpu.memory_space<vmem>>, %arg5: memref<1x32xf32, #tpu.memory_space<vmem>>, %arg6: memref<16x32xf32, #tpu.memory_space<vmem>>, %arg7: memref<1x32xf32, #tpu.memory_space<vmem>>, %arg8: memref<1x32x96xf32, #tpu.memory_space<vmem>>, %arg9: memref<1x1x96xf32, #tpu.memory_space<vmem>>, %arg10: memref<1x32x32xf32, #tpu.memory_space<vmem>>, %arg11: memref<1x1x32xf32, #tpu.memory_space<vmem>>, %arg12: memref<1x32x64xf32, #tpu.memory_space<vmem>>, %arg13: memref<1x1x64xf32, #tpu.memory_space<vmem>>, %arg14: memref<1x64x32xf32, #tpu.memory_space<vmem>>, %arg15: memref<1x1x32xf32, #tpu.memory_space<vmem>>, %arg16: memref<1x4x32xf32, #tpu.memory_space<vmem>>, %arg17: memref<32x48xf32, #tpu.memory_space<vmem>>, %arg18: memref<1x48xf32, #tpu.memory_space<vmem>>, %arg19: memref<16x32xf32, #tpu.memory_space<vmem>>, %arg20: memref<1x32xf32, #tpu.memory_space<vmem>>, %arg21: memref<2x32xf32, #tpu.memory_space<vmem>>, %arg22: memref<2x32xf32, #tpu.memory_space<vmem>>, %arg23: memref<32x8xf32, #tpu.memory_space<vmem>>, %arg24: memref<1x8xf32, #tpu.memory_space<vmem>>, %arg25: memref<32x8xf32, #tpu.memory_space<vmem>>, %arg26: memref<1x8xf32, #tpu.memory_space<vmem>>, %arg27: memref<2x4x8xf32, #tpu.memory_space<vmem>>, %arg28: memref<2x8x32xf32, #tpu.memory_space<vmem>>, %arg29: memref<2x8x32xf32, #tpu.memory_space<vmem>>, %arg30: memref<2x4x1xf32, #tpu.memory_space<vmem>>, %arg31: memref<2x4x1xf32, #tpu.memory_space<vmem>>) attributes {dimension_semantics = [#tpu.dimension_semantics<arbitrary>], iteration_bounds = array<i64: 2>, scalar_prefetch = 0 : i64, scratch_operands = 4 : i64, tpu.core_type = #tpu.core_type<tc>, window_params = [{pipeline_mode = #tpu.pipeline_mode<synchronous>, transform_indices = @transform_0, window_bounds = array<i64: 2, 4, 16>}, {pipeline_mode = #tpu.pipeline_mode<synchronous>, transform_indices = @transform_1, window_bounds = array<i64: 2, 4, 16>}, {pipeline_mode = #tpu.pipeline_mode<synchronous>, transform_indices = @transform_2, window_bounds = array<i64: 16, 16>}, {pipeline_mode = #tpu.pipeline_mode<synchronous>, transform_indices = @transform_3, window_bounds = array<i64: 16, 32>}, {pipeline_mode = #tpu.pipeline_mode<synchronous>, transform_indices = @transform_4, window_bounds = array<i64: 1, 32>}, {pipeline_mode = #tpu.pipeline_mode<synchronous>, transform_indices = @transform_5, window_bounds = array<i64: 16, 32>}, {pipeline_mode = #tpu.pipeline_mode<synchronous>, transform_indices = @transform_6, window_bounds = array<i64: 1, 32>}, {transform_indices = @transform_7, window_bounds = array<i64: 1, 32, 96>}, {transform_indices = @transform_8, window_bounds = array<i64: 1, 1, 96>}, {transform_indices = @transform_9, window_bounds = array<i64: 1, 32, 32>}, {transform_indices = @transform_10, window_bounds = array<i64: 1, 1, 32>}, {transform_indices = @transform_11, window_bounds = array<i64: 1, 32, 64>}, {transform_indices = @transform_12, window_bounds = array<i64: 1, 1, 64>}, {transform_indices = @transform_13, window_bounds = array<i64: 1, 64, 32>}, {transform_indices = @transform_14, window_bounds = array<i64: 1, 1, 32>}, {transform_indices = @transform_15, window_bounds = array<i64: 1, 4, 32>}, {pipeline_mode = #tpu.pipeline_mode<synchronous>, transform_indices = @transform_16, window_bounds = array<i64: 32, 48>}, {pipeline_mode = #tpu.pipeline_mode<synchronous>, transform_indices = @transform_17, window_bounds = array<i64: 1, 48>}, {pipeline_mode = #tpu.pipeline_mode<synchronous>, transform_indices = @transform_18, window_bounds = array<i64: 16, 32>}, {pipeline_mode = #tpu.pipeline_mode<synchronous>, transform_indices = @transform_19, window_bounds = array<i64: 1, 32>}, {pipeline_mode = #tpu.pipeline_mode<synchronous>, transform_indices = @transform_20, window_bounds = array<i64: 2, 32>}, {pipeline_mode = #tpu.pipeline_mode<synchronous>, transform_indices = @transform_21, window_bounds = array<i64: 2, 32>}, {pipeline_mode = #tpu.pipeline_mode<synchronous>, transform_indices = @transform_22, window_bounds = array<i64: 32, 8>}, {pipeline_mode = #tpu.pipeline_mode<synchronous>, transform_indices = @transform_23, window_bounds = array<i64: 1, 8>}, {pipeline_mode = #tpu.pipeline_mode<synchronous>, transform_indices = @transform_24, window_bounds = array<i64: 32, 8>}, {pipeline_mode = #tpu.pipeline_mode<synchronous>, transform_indices = @transform_25, window_bounds = array<i64: 1, 8>}, {pipeline_mode = #tpu.pipeline_mode<synchronous>, transform_indices = @transform_26, window_bounds = array<i64: 2, 4, 8>}]} {
    %c0_i32 = arith.constant 0 : i32
    %0 = arith.cmpi eq, %arg0, %c0_i32 : i32
    %1 = arith.extui %0 : i1 to i32
    %c0_i32_0 = arith.constant 0 : i32
    %2 = arith.cmpi ne, %1, %c0_i32_0 : i32
    scf.if %2 {
      %c0_56 = arith.constant 0 : index
      %c0_57 = arith.constant 0 : index
      %c0_58 = arith.constant 0 : index
      %127 = vector.load %arg1[%c0_56, %c0_57, %c0_58] : memref<2x4x16xf32, #tpu.memory_space<vmem>>, vector<2x4x16xf32>
      %128 = vector.shape_cast %127 : vector<2x4x16xf32> to vector<8x16xf32>
      %cst_59 = arith.constant dense<0.000000e+00> : vector<8xf32>
      %129 = vector.multi_reduction <add>, %128, %cst_59 [1] : vector<8x16xf32> to vector<8xf32>
      %130 = vector.shape_cast %129 : vector<8xf32> to vector<8x1xf32>
      %cst_60 = arith.constant 1.600000e+01 : f32
      %131 = vector.broadcast %cst_60 : f32 to vector<8x1xf32>
      %132 = arith.divf %130, %131 : vector<8x1xf32>
      %133 = vector.broadcast %132 : vector<8x1xf32> to vector<8x16xf32>
      %134 = arith.subf %128, %133 : vector<8x16xf32>
      %135 = arith.mulf %134, %134 : vector<8x16xf32>
      %cst_61 = arith.constant dense<0.000000e+00> : vector<8xf32>
      %136 = vector.multi_reduction <add>, %135, %cst_61 [1] : vector<8x16xf32> to vector<8xf32>
      %137 = vector.shape_cast %136 : vector<8xf32> to vector<8x1xf32>
      %cst_62 = arith.constant 1.600000e+01 : f32
      %138 = vector.broadcast %cst_62 : f32 to vector<8x1xf32>
      %139 = arith.divf %137, %138 : vector<8x1xf32>
      %cst_63 = arith.constant 9.99999974E-6 : f32
      %140 = vector.broadcast %cst_63 : f32 to vector<8x1xf32>
      %141 = arith.addf %139, %140 : vector<8x1xf32>
      %142 = math.sqrt %141 : vector<8x1xf32>
      %143 = vector.broadcast %142 : vector<8x1xf32> to vector<8x16xf32>
      %144 = arith.divf %134, %143 : vector<8x16xf32>
      %c0_64 = arith.constant 0 : index
      %c0_65 = arith.constant 0 : index
      %145 = vector.load %arg3[%c0_64, %c0_65] : memref<16x16xf32, #tpu.memory_space<vmem>>, vector<16x16xf32>
      %cst_66 = arith.constant dense<0.000000e+00> : vector<8x16xf32>
      %146 = tpu.matmul %144, %145, %cst_66 {dimension_numbers = #tpu.dot_dimension_numbers<[1], [0], [0], [1], [0, 0, 1, 1], [], []>} : vector<8x16xf32>, vector<16x16xf32>, vector<8x16xf32> -> vector<8x16xf32>
      %147 = arith.subf %144, %146 : vector<8x16xf32>
      %c0_67 = arith.constant 0 : index
      %c0_68 = arith.constant 0 : index
      %c0_69 = arith.constant 0 : index
      %148 = vector.load %arg2[%c0_67, %c0_68, %c0_69] : memref<2x4x16xf32, #tpu.memory_space<vmem>>, vector<2x4x16xf32>
      %149 = vector.shape_cast %148 : vector<2x4x16xf32> to vector<8x16xf32>
      %c0_70 = arith.constant 0 : index
      %c0_71 = arith.constant 0 : index
      %150 = vector.load %arg4[%c0_70, %c0_71] : memref<16x32xf32, #tpu.memory_space<vmem>>, vector<16x32xf32>
      %c0_72 = arith.constant 0 : index
      %c0_73 = arith.constant 0 : index
      %151 = vector.load %arg5[%c0_72, %c0_73] : memref<1x32xf32, #tpu.memory_space<vmem>>, vector<1x32xf32>
      %c0_74 = arith.constant 0 : index
      %c0_75 = arith.constant 0 : index
      %152 = vector.load %arg6[%c0_74, %c0_75] : memref<16x32xf32, #tpu.memory_space<vmem>>, vector<16x32xf32>
      %c0_76 = arith.constant 0 : index
      %c0_77 = arith.constant 0 : index
      %153 = vector.load %arg7[%c0_76, %c0_77] : memref<1x32xf32, #tpu.memory_space<vmem>>, vector<1x32xf32>
      %cst_78 = arith.constant dense<0.000000e+00> : vector<8x32xf32>
      %154 = tpu.matmul %147, %150, %cst_78 {dimension_numbers = #tpu.dot_dimension_numbers<[1], [0], [0], [1], [0, 0, 1, 1], [], []>} : vector<8x16xf32>, vector<16x32xf32>, vector<8x32xf32> -> vector<8x32xf32>
      %155 = vector.broadcast %151 : vector<1x32xf32> to vector<8x32xf32>
      %156 = arith.addf %154, %155 : vector<8x32xf32>
      %157 = vector.shape_cast %156 : vector<8x32xf32> to vector<2x4x32xf32>
      %c0_79 = arith.constant 0 : index
      %c0_80 = arith.constant 0 : index
      %c0_81 = arith.constant 0 : index
      %158 = vector.load %arg28[%c0_79, %c0_80, %c0_81] : memref<2x8x32xf32, #tpu.memory_space<vmem>>, vector<2x4x32xf32>
      tpu.vector_store %arg28[%c0_79, %c0_80, %c0_81], %157 {strides = array<i32>} : memref<2x8x32xf32, #tpu.memory_space<vmem>>, vector<2x4x32xf32>,
      %cst_82 = arith.constant dense<0.000000e+00> : vector<8x32xf32>
      %159 = tpu.matmul %149, %150, %cst_82 {dimension_numbers = #tpu.dot_dimension_numbers<[1], [0], [0], [1], [0, 0, 1, 1], [], []>} : vector<8x16xf32>, vector<16x32xf32>, vector<8x32xf32> -> vector<8x32xf32>
      %160 = vector.broadcast %151 : vector<1x32xf32> to vector<8x32xf32>
      %161 = arith.addf %159, %160 : vector<8x32xf32>
      %162 = vector.shape_cast %161 : vector<8x32xf32> to vector<2x4x32xf32>
      %c0_83 = arith.constant 0 : index
      %c4 = arith.constant 4 : index
      %c0_84 = arith.constant 0 : index
      %163 = vector.load %arg28[%c0_83, %c4, %c0_84] : memref<2x8x32xf32, #tpu.memory_space<vmem>>, vector<2x4x32xf32>
      tpu.vector_store %arg28[%c0_83, %c4, %c0_84], %162 {strides = array<i32>} : memref<2x8x32xf32, #tpu.memory_space<vmem>>, vector<2x4x32xf32>,
      %cst_85 = arith.constant dense<0.000000e+00> : vector<8x32xf32>
      %164 = tpu.matmul %146, %152, %cst_85 {dimension_numbers = #tpu.dot_dimension_numbers<[1], [0], [0], [1], [0, 0, 1, 1], [], []>} : vector<8x16xf32>, vector<16x32xf32>, vector<8x32xf32> -> vector<8x32xf32>
      %165 = vector.broadcast %153 : vector<1x32xf32> to vector<8x32xf32>
      %166 = arith.addf %164, %165 : vector<8x32xf32>
      %167 = vector.shape_cast %166 : vector<8x32xf32> to vector<2x4x32xf32>
      %c0_86 = arith.constant 0 : index
      %c0_87 = arith.constant 0 : index
      %c0_88 = arith.constant 0 : index
      %168 = vector.load %arg29[%c0_86, %c0_87, %c0_88] : memref<2x8x32xf32, #tpu.memory_space<vmem>>, vector<2x4x32xf32>
      tpu.vector_store %arg29[%c0_86, %c0_87, %c0_88], %167 {strides = array<i32>} : memref<2x8x32xf32, #tpu.memory_space<vmem>>, vector<2x4x32xf32>,
      %cst_89 = arith.constant dense<0.000000e+00> : vector<8x32xf32>
      %169 = tpu.matmul %149, %152, %cst_89 {dimension_numbers = #tpu.dot_dimension_numbers<[1], [0], [0], [1], [0, 0, 1, 1], [], []>} : vector<8x16xf32>, vector<16x32xf32>, vector<8x32xf32> -> vector<8x32xf32>
      %170 = vector.broadcast %153 : vector<1x32xf32> to vector<8x32xf32>
      %171 = arith.addf %169, %170 : vector<8x32xf32>
      %172 = vector.shape_cast %171 : vector<8x32xf32> to vector<2x4x32xf32>
      %c0_90 = arith.constant 0 : index
      %c4_91 = arith.constant 4 : index
      %c0_92 = arith.constant 0 : index
      %173 = vector.load %arg29[%c0_90, %c4_91, %c0_92] : memref<2x8x32xf32, #tpu.memory_space<vmem>>, vector<2x4x32xf32>
      tpu.vector_store %arg29[%c0_90, %c4_91, %c0_92], %172 {strides = array<i32>} : memref<2x8x32xf32, #tpu.memory_space<vmem>>, vector<2x4x32xf32>,
      %174 = vector.shape_cast %132 : vector<8x1xf32> to vector<2x4x1xf32>
      %c0_93 = arith.constant 0 : index
      %c0_94 = arith.constant 0 : index
      %c0_95 = arith.constant 0 : index
      %175 = vector.load %arg30[%c0_93, %c0_94, %c0_95] : memref<2x4x1xf32, #tpu.memory_space<vmem>>, vector<2x4x1xf32>
      tpu.vector_store %arg30[%c0_93, %c0_94, %c0_95], %174 {strides = array<i32>} : memref<2x4x1xf32, #tpu.memory_space<vmem>>, vector<2x4x1xf32>,
      %176 = vector.shape_cast %142 : vector<8x1xf32> to vector<2x4x1xf32>
      %c0_96 = arith.constant 0 : index
      %c0_97 = arith.constant 0 : index
      %c0_98 = arith.constant 0 : index
      %177 = vector.load %arg31[%c0_96, %c0_97, %c0_98] : memref<2x4x1xf32, #tpu.memory_space<vmem>>, vector<2x4x1xf32>
      tpu.vector_store %arg31[%c0_96, %c0_97, %c0_98], %176 {strides = array<i32>} : memref<2x4x1xf32, #tpu.memory_space<vmem>>, vector<2x4x1xf32>,
    } else {
    }
    %c0 = arith.constant 0 : index
    %c0_1 = arith.constant 0 : index
    %c0_2 = arith.constant 0 : index
    %3 = vector.load %arg28[%c0, %c0_1, %c0_2] : memref<2x8x32xf32, #tpu.memory_space<vmem>>, vector<2x8x32xf32>
    %4 = vector.shape_cast %3 : vector<2x8x32xf32> to vector<16x32xf32>
    %c0_3 = arith.constant 0 : index
    %c0_4 = arith.constant 0 : index
    %c0_5 = arith.constant 0 : index
    %5 = vector.load %arg8[%c0_3, %c0_4, %c0_5] : memref<1x32x96xf32, #tpu.memory_space<vmem>>, vector<1x32x96xf32>
    %6 = vector.shape_cast %5 : vector<1x32x96xf32> to vector<32x96xf32>
    %cst = arith.constant dense<0.000000e+00> : vector<16x96xf32>
    %7 = tpu.matmul %4, %6, %cst {dimension_numbers = #tpu.dot_dimension_numbers<[1], [0], [0], [1], [0, 0, 1, 1], [], []>} : vector<16x32xf32>, vector<32x96xf32>, vector<16x96xf32> -> vector<16x96xf32>
    %c0_6 = arith.constant 0 : index
    %c0_7 = arith.constant 0 : index
    %c0_8 = arith.constant 0 : index
    %8 = vector.load %arg9[%c0_6, %c0_7, %c0_8] : memref<1x1x96xf32, #tpu.memory_space<vmem>>, vector<1x1x96xf32>
    %9 = vector.shape_cast %8 : vector<1x1x96xf32> to vector<1x96xf32>
    %10 = vector.broadcast %9 : vector<1x96xf32> to vector<16x96xf32>
    %11 = arith.addf %7, %10 : vector<16x96xf32>
    %12 = vector.extract_strided_slice %11 {offsets = [0, 0], sizes = [16, 32], strides = [1, 1]} : vector<16x96xf32> to vector<16x32xf32>
    %13 = vector.shape_cast %12 : vector<16x32xf32> to vector<2x8x32xf32>
    %14 = vector.extract_strided_slice %11 {offsets = [0, 32], sizes = [16, 32], strides = [1, 1]} : vector<16x96xf32> to vector<16x32xf32>
    %15 = vector.shape_cast %14 : vector<16x32xf32> to vector<2x8x32xf32>
    %16 = vector.extract_strided_slice %11 {offsets = [0, 64], sizes = [16, 32], strides = [1, 1]} : vector<16x96xf32> to vector<16x32xf32>
    %17 = vector.shape_cast %16 : vector<16x32xf32> to vector<2x8x32xf32>
    %cst_9 = arith.constant dense<0xFF800000> : vector<2x32xf32>
    %18 = vector.multi_reduction <maximumf>, %13, %cst_9 [1] : vector<2x8x32xf32> to vector<2x32xf32>
    %19 = vector.shape_cast %18 : vector<2x32xf32> to vector<2x1x32xf32>
    %20 = vector.broadcast %19 : vector<2x1x32xf32> to vector<2x8x32xf32>
    %21 = arith.subf %13, %20 : vector<2x8x32xf32>
    %22 = math.exp %21 : vector<2x8x32xf32>
    %cst_10 = arith.constant dense<0.000000e+00> : vector<2x32xf32>
    %23 = vector.multi_reduction <add>, %22, %cst_10 [1] : vector<2x8x32xf32> to vector<2x32xf32>
    %24 = vector.shape_cast %23 : vector<2x32xf32> to vector<2x1x32xf32>
    %25 = vector.broadcast %24 : vector<2x1x32xf32> to vector<2x8x32xf32>
    %26 = arith.divf %22, %25 : vector<2x8x32xf32>
    %27 = arith.mulf %26, %15 : vector<2x8x32xf32>
    %cst_11 = arith.constant 5.000000e-01 : f32
    %28 = vector.broadcast %cst_11 : f32 to vector<2x8x32xf32>
    %29 = arith.mulf %28, %27 : vector<2x8x32xf32>
    %cst_12 = arith.constant 1.41421354 : f32
    %30 = vector.broadcast %cst_12 : f32 to vector<2x8x32xf32>
    %31 = arith.divf %27, %30 : vector<2x8x32xf32>
    %32 = math.erf %31 : vector<2x8x32xf32>
    %cst_13 = arith.constant 1.000000e+00 : f32
    %33 = vector.broadcast %cst_13 : f32 to vector<2x8x32xf32>
    %34 = arith.addf %33, %32 : vector<2x8x32xf32>
    %35 = arith.mulf %29, %34 : vector<2x8x32xf32>
    %cst_14 = arith.constant dense<0.000000e+00> : vector<2x32xf32>
    %36 = vector.multi_reduction <add>, %35, %cst_14 [1] : vector<2x8x32xf32> to vector<2x32xf32>
    %37 = vector.shape_cast %36 : vector<2x32xf32> to vector<2x1x32xf32>
    %38 = vector.broadcast %37 : vector<2x1x32xf32> to vector<2x8x32xf32>
    %39 = arith.mulf %17, %38 : vector<2x8x32xf32>
    %40 = vector.shape_cast %39 : vector<2x8x32xf32> to vector<16x32xf32>
    %c0_15 = arith.constant 0 : index
    %c0_16 = arith.constant 0 : index
    %c0_17 = arith.constant 0 : index
    %41 = vector.load %arg10[%c0_15, %c0_16, %c0_17] : memref<1x32x32xf32, #tpu.memory_space<vmem>>, vector<1x32x32xf32>
    %42 = vector.shape_cast %41 : vector<1x32x32xf32> to vector<32x32xf32>
    %cst_18 = arith.constant dense<0.000000e+00> : vector<16x32xf32>
    %43 = tpu.matmul %40, %42, %cst_18 {dimension_numbers = #tpu.dot_dimension_numbers<[1], [0], [0], [1], [0, 0, 1, 1], [], []>} : vector<16x32xf32>, vector<32x32xf32>, vector<16x32xf32> -> vector<16x32xf32>
    %c0_19 = arith.constant 0 : index
    %c0_20 = arith.constant 0 : index
    %c0_21 = arith.constant 0 : index
    %44 = vector.load %arg11[%c0_19, %c0_20, %c0_21] : memref<1x1x32xf32, #tpu.memory_space<vmem>>, vector<1x1x32xf32>
    %45 = vector.shape_cast %44 : vector<1x1x32xf32> to vector<1x32xf32>
    %46 = vector.broadcast %45 : vector<1x32xf32> to vector<16x32xf32>
    %47 = arith.addf %43, %46 : vector<16x32xf32>
    %c0_22 = arith.constant 0 : index
    %c0_23 = arith.constant 0 : index
    %c0_24 = arith.constant 0 : index
    %48 = vector.load %arg16[%c0_22, %c0_23, %c0_24] : memref<1x4x32xf32, #tpu.memory_space<vmem>>, vector<1x4x32xf32>
    %49 = vector.shape_cast %48 : vector<1x4x32xf32> to vector<4x32xf32>
    %50 = arith.addf %4, %47 : vector<16x32xf32>
    %51 = vector.extract_strided_slice %49 {offsets = [0, 0], sizes = [1, 32], strides = [1, 1]} : vector<4x32xf32> to vector<1x32xf32>
    %52 = vector.extract_strided_slice %49 {offsets = [1, 0], sizes = [1, 32], strides = [1, 1]} : vector<4x32xf32> to vector<1x32xf32>
    %cst_25 = arith.constant dense<0.000000e+00> : vector<16xf32>
    %53 = vector.multi_reduction <add>, %50, %cst_25 [1] : vector<16x32xf32> to vector<16xf32>
    %54 = vector.shape_cast %53 : vector<16xf32> to vector<16x1xf32>
    %cst_26 = arith.constant 3.200000e+01 : f32
    %55 = vector.broadcast %cst_26 : f32 to vector<16x1xf32>
    %56 = arith.divf %54, %55 : vector<16x1xf32>
    %57 = vector.broadcast %56 : vector<16x1xf32> to vector<16x32xf32>
    %58 = arith.subf %50, %57 : vector<16x32xf32>
    %59 = arith.mulf %58, %58 : vector<16x32xf32>
    %cst_27 = arith.constant dense<0.000000e+00> : vector<16xf32>
    %60 = vector.multi_reduction <add>, %59, %cst_27 [1] : vector<16x32xf32> to vector<16xf32>
    %61 = vector.shape_cast %60 : vector<16xf32> to vector<16x1xf32>
    %cst_28 = arith.constant 3.200000e+01 : f32
    %62 = vector.broadcast %cst_28 : f32 to vector<16x1xf32>
    %63 = arith.divf %61, %62 : vector<16x1xf32>
    %64 = vector.broadcast %56 : vector<16x1xf32> to vector<16x32xf32>
    %65 = arith.subf %50, %64 : vector<16x32xf32>
    %cst_29 = arith.constant 9.99999974E-6 : f32
    %66 = vector.broadcast %cst_29 : f32 to vector<16x1xf32>
    %67 = arith.addf %63, %66 : vector<16x1xf32>
    %68 = math.rsqrt %67 : vector<16x1xf32>
    %69 = vector.broadcast %68 : vector<16x1xf32> to vector<16x32xf32>
    %70 = arith.mulf %65, %69 : vector<16x32xf32>
    %71 = vector.broadcast %51 : vector<1x32xf32> to vector<16x32xf32>
    %72 = arith.mulf %70, %71 : vector<16x32xf32>
    %73 = vector.broadcast %52 : vector<1x32xf32> to vector<16x32xf32>
    %74 = arith.addf %72, %73 : vector<16x32xf32>
    %c0_30 = arith.constant 0 : index
    %c0_31 = arith.constant 0 : index
    %c0_32 = arith.constant 0 : index
    %75 = vector.load %arg12[%c0_30, %c0_31, %c0_32] : memref<1x32x64xf32, #tpu.memory_space<vmem>>, vector<1x32x64xf32>
    %76 = vector.shape_cast %75 : vector<1x32x64xf32> to vector<32x64xf32>
    %cst_33 = arith.constant dense<0.000000e+00> : vector<16x64xf32>
    %77 = tpu.matmul %74, %76, %cst_33 {dimension_numbers = #tpu.dot_dimension_numbers<[1], [0], [0], [1], [0, 0, 1, 1], [], []>} : vector<16x32xf32>, vector<32x64xf32>, vector<16x64xf32> -> vector<16x64xf32>
    %c0_34 = arith.constant 0 : index
    %c0_35 = arith.constant 0 : index
    %c0_36 = arith.constant 0 : index
    %78 = vector.load %arg13[%c0_34, %c0_35, %c0_36] : memref<1x1x64xf32, #tpu.memory_space<vmem>>, vector<1x1x64xf32>
    %79 = vector.shape_cast %78 : vector<1x1x64xf32> to vector<1x64xf32>
    %80 = vector.broadcast %79 : vector<1x64xf32> to vector<16x64xf32>
    %81 = arith.addf %77, %80 : vector<16x64xf32>
    %cst_37 = arith.constant 5.000000e-01 : f32
    %82 = vector.broadcast %cst_37 : f32 to vector<16x64xf32>
    %83 = arith.mulf %82, %81 : vector<16x64xf32>
    %cst_38 = arith.constant 1.41421354 : f32
    %84 = vector.broadcast %cst_38 : f32 to vector<16x64xf32>
    %85 = arith.divf %81, %84 : vector<16x64xf32>
    %86 = math.erf %85 : vector<16x64xf32>
    %cst_39 = arith.constant 1.000000e+00 : f32
    %87 = vector.broadcast %cst_39 : f32 to vector<16x64xf32>
    %88 = arith.addf %87, %86 : vector<16x64xf32>
    %89 = arith.mulf %83, %88 : vector<16x64xf32>
    %c0_40 = arith.constant 0 : index
    %c0_41 = arith.constant 0 : index
    %c0_42 = arith.constant 0 : index
    %90 = vector.load %arg14[%c0_40, %c0_41, %c0_42] : memref<1x64x32xf32, #tpu.memory_space<vmem>>, vector<1x64x32xf32>
    %91 = vector.shape_cast %90 : vector<1x64x32xf32> to vector<64x32xf32>
    %cst_43 = arith.constant dense<0.000000e+00> : vector<16x32xf32>
    %92 = tpu.matmul %89, %91, %cst_43 {dimension_numbers = #tpu.dot_dimension_numbers<[1], [0], [0], [1], [0, 0, 1, 1], [], []>} : vector<16x64xf32>, vector<64x32xf32>, vector<16x32xf32> -> vector<16x32xf32>
    %c0_44 = arith.constant 0 : index
    %c0_45 = arith.constant 0 : index
    %c0_46 = arith.constant 0 : index
    %93 = vector.load %arg15[%c0_44, %c0_45, %c0_46] : memref<1x1x32xf32, #tpu.memory_space<vmem>>, vector<1x1x32xf32>
    %94 = vector.shape_cast %93 : vector<1x1x32xf32> to vector<1x32xf32>
    %95 = vector.broadcast %94 : vector<1x32xf32> to vector<16x32xf32>
    %96 = arith.addf %92, %95 : vector<16x32xf32>
    %97 = arith.addf %74, %96 : vector<16x32xf32>
    %98 = vector.extract_strided_slice %49 {offsets = [2, 0], sizes = [1, 32], strides = [1, 1]} : vector<4x32xf32> to vector<1x32xf32>
    %99 = vector.extract_strided_slice %49 {offsets = [3, 0], sizes = [1, 32], strides = [1, 1]} : vector<4x32xf32> to vector<1x32xf32>
    %cst_47 = arith.constant dense<0.000000e+00> : vector<16xf32>
    %100 = vector.multi_reduction <add>, %97, %cst_47 [1] : vector<16x32xf32> to vector<16xf32>
    %101 = vector.shape_cast %100 : vector<16xf32> to vector<16x1xf32>
    %cst_48 = arith.constant 3.200000e+01 : f32
    %102 = vector.broadcast %cst_48 : f32 to vector<16x1xf32>
    %103 = arith.divf %101, %102 : vector<16x1xf32>
    %104 = vector.broadcast %103 : vector<16x1xf32> to vector<16x32xf32>
    %105 = arith.subf %97, %104 : vector<16x32xf32>
    %106 = arith.mulf %105, %105 : vector<16x32xf32>
    %cst_49 = arith.constant dense<0.000000e+00> : vector<16xf32>
    %107 = vector.multi_reduction <add>, %106, %cst_49 [1] : vector<16x32xf32> to vector<16xf32>
    %108 = vector.shape_cast %107 : vector<16xf32> to vector<16x1xf32>
    %cst_50 = arith.constant 3.200000e+01 : f32
    %109 = vector.broadcast %cst_50 : f32 to vector<16x1xf32>
    %110 = arith.divf %108, %109 : vector<16x1xf32>
    %111 = vector.broadcast %103 : vector<16x1xf32> to vector<16x32xf32>
    %112 = arith.subf %97, %111 : vector<16x32xf32>
    %cst_51 = arith.constant 9.99999974E-6 : f32
    %113 = vector.broadcast %cst_51 : f32 to vector<16x1xf32>
    %114 = arith.addf %110, %113 : vector<16x1xf32>
    %115 = math.rsqrt %114 : vector<16x1xf32>
    %116 = vector.broadcast %115 : vector<16x1xf32> to vector<16x32xf32>
    %117 = arith.mulf %112, %116 : vector<16x32xf32>
    %118 = vector.broadcast %98 : vector<1x32xf32> to vector<16x32xf32>
    %119 = arith.mulf %117, %118 : vector<16x32xf32>
    %120 = vector.broadcast %99 : vector<1x32xf32> to vector<16x32xf32>
    %121 = arith.addf %119, %120 : vector<16x32xf32>
    %122 = vector.shape_cast %121 : vector<16x32xf32> to vector<2x8x32xf32>
    %c0_52 = arith.constant 0 : index
    %c0_53 = arith.constant 0 : index
    %c0_54 = arith.constant 0 : index
    %123 = vector.load %arg28[%c0_52, %c0_53, %c0_54] : memref<2x8x32xf32, #tpu.memory_space<vmem>>, vector<2x8x32xf32>
    tpu.vector_store %arg28[%c0_52, %c0_53, %c0_54], %122 {strides = array<i32>} : memref<2x8x32xf32, #tpu.memory_space<vmem>>, vector<2x8x32xf32>,
    %c1_i32 = arith.constant 1 : i32
    %124 = arith.cmpi eq, %arg0, %c1_i32 : i32
    %125 = arith.extui %124 : i1 to i32
    %c0_i32_55 = arith.constant 0 : i32
    %126 = arith.cmpi ne, %125, %c0_i32_55 : i32
    scf.if %126 {
      %c0_56 = arith.constant 0 : index
      %c0_57 = arith.constant 0 : index
      %127 = vector.load %arg22[%c0_56, %c0_57] : memref<2x32xf32, #tpu.memory_space<vmem>>, vector<2x32xf32>
      %c0_58 = arith.constant 0 : index
      %c0_59 = arith.constant 0 : index
      %c0_60 = arith.constant 0 : index
      %128 = vector.load %arg28[%c0_58, %c0_59, %c0_60] : memref<2x8x32xf32, #tpu.memory_space<vmem>>, vector<2x8x32xf32>
      %129 = vector.shape_cast %128 : vector<2x8x32xf32> to vector<16x32xf32>
      %130 = vector.extract_strided_slice %127 {offsets = [0, 0], sizes = [1, 32], strides = [1, 1]} : vector<2x32xf32> to vector<1x32xf32>
      %131 = vector.extract_strided_slice %127 {offsets = [1, 0], sizes = [1, 32], strides = [1, 1]} : vector<2x32xf32> to vector<1x32xf32>
      %cst_61 = arith.constant dense<0.000000e+00> : vector<16xf32>
      %132 = vector.multi_reduction <add>, %129, %cst_61 [1] : vector<16x32xf32> to vector<16xf32>
      %133 = vector.shape_cast %132 : vector<16xf32> to vector<16x1xf32>
      %cst_62 = arith.constant 3.200000e+01 : f32
      %134 = vector.broadcast %cst_62 : f32 to vector<16x1xf32>
      %135 = arith.divf %133, %134 : vector<16x1xf32>
      %136 = vector.broadcast %135 : vector<16x1xf32> to vector<16x32xf32>
      %137 = arith.subf %129, %136 : vector<16x32xf32>
      %138 = arith.mulf %137, %137 : vector<16x32xf32>
      %cst_63 = arith.constant dense<0.000000e+00> : vector<16xf32>
      %139 = vector.multi_reduction <add>, %138, %cst_63 [1] : vector<16x32xf32> to vector<16xf32>
      %140 = vector.shape_cast %139 : vector<16xf32> to vector<16x1xf32>
      %cst_64 = arith.constant 3.200000e+01 : f32
      %141 = vector.broadcast %cst_64 : f32 to vector<16x1xf32>
      %142 = arith.divf %140, %141 : vector<16x1xf32>
      %143 = vector.broadcast %135 : vector<16x1xf32> to vector<16x32xf32>
      %144 = arith.subf %129, %143 : vector<16x32xf32>
      %cst_65 = arith.constant 9.99999974E-6 : f32
      %145 = vector.broadcast %cst_65 : f32 to vector<16x1xf32>
      %146 = arith.addf %142, %145 : vector<16x1xf32>
      %147 = math.rsqrt %146 : vector<16x1xf32>
      %148 = vector.broadcast %147 : vector<16x1xf32> to vector<16x32xf32>
      %149 = arith.mulf %144, %148 : vector<16x32xf32>
      %150 = vector.broadcast %130 : vector<1x32xf32> to vector<16x32xf32>
      %151 = arith.mulf %149, %150 : vector<16x32xf32>
      %152 = vector.broadcast %131 : vector<1x32xf32> to vector<16x32xf32>
      %153 = arith.addf %151, %152 : vector<16x32xf32>
      %c0_66 = arith.constant 0 : index
      %c0_67 = arith.constant 0 : index
      %c0_68 = arith.constant 0 : index
      %154 = vector.load %arg29[%c0_66, %c0_67, %c0_68] : memref<2x8x32xf32, #tpu.memory_space<vmem>>, vector<2x8x32xf32>
      %155 = vector.shape_cast %154 : vector<2x8x32xf32> to vector<16x32xf32>
      %c0_69 = arith.constant 0 : index
      %c0_70 = arith.constant 0 : index
      %156 = vector.load %arg17[%c0_69, %c0_70] : memref<32x48xf32, #tpu.memory_space<vmem>>, vector<32x48xf32>
      %cst_71 = arith.constant dense<0.000000e+00> : vector<16x48xf32>
      %157 = tpu.matmul %155, %156, %cst_71 {dimension_numbers = #tpu.dot_dimension_numbers<[1], [0], [0], [1], [0, 0, 1, 1], [], []>} : vector<16x32xf32>, vector<32x48xf32>, vector<16x48xf32> -> vector<16x48xf32>
      %c0_72 = arith.constant 0 : index
      %c0_73 = arith.constant 0 : index
      %158 = vector.load %arg18[%c0_72, %c0_73] : memref<1x48xf32, #tpu.memory_space<vmem>>, vector<1x48xf32>
      %159 = vector.broadcast %158 : vector<1x48xf32> to vector<16x48xf32>
      %160 = arith.addf %157, %159 : vector<16x48xf32>
      %161 = vector.extract_strided_slice %160 {offsets = [0, 0], sizes = [16, 16], strides = [1, 1]} : vector<16x48xf32> to vector<16x16xf32>
      %cst_74 = arith.constant 5.000000e-01 : f32
      %162 = vector.broadcast %cst_74 : f32 to vector<16x16xf32>
      %163 = arith.mulf %162, %161 : vector<16x16xf32>
      %cst_75 = arith.constant 1.41421354 : f32
      %164 = vector.broadcast %cst_75 : f32 to vector<16x16xf32>
      %165 = arith.divf %161, %164 : vector<16x16xf32>
      %166 = math.erf %165 : vector<16x16xf32>
      %cst_76 = arith.constant 1.000000e+00 : f32
      %167 = vector.broadcast %cst_76 : f32 to vector<16x16xf32>
      %168 = arith.addf %167, %166 : vector<16x16xf32>
      %169 = arith.mulf %163, %168 : vector<16x16xf32>
      %c0_77 = arith.constant 0 : index
      %c0_78 = arith.constant 0 : index
      %170 = vector.load %arg21[%c0_77, %c0_78] : memref<2x32xf32, #tpu.memory_space<vmem>>, vector<2x32xf32>
      %c0_79 = arith.constant 0 : index
      %c0_80 = arith.constant 0 : index
      %171 = vector.load %arg19[%c0_79, %c0_80] : memref<16x32xf32, #tpu.memory_space<vmem>>, vector<16x32xf32>
      %cst_81 = arith.constant dense<0.000000e+00> : vector<16x32xf32>
      %172 = tpu.matmul %169, %171, %cst_81 {dimension_numbers = #tpu.dot_dimension_numbers<[1], [0], [0], [1], [0, 0, 1, 1], [], []>} : vector<16x16xf32>, vector<16x32xf32>, vector<16x32xf32> -> vector<16x32xf32>
      %c0_82 = arith.constant 0 : index
      %c0_83 = arith.constant 0 : index
      %173 = vector.load %arg20[%c0_82, %c0_83] : memref<1x32xf32, #tpu.memory_space<vmem>>, vector<1x32xf32>
      %174 = vector.broadcast %173 : vector<1x32xf32> to vector<16x32xf32>
      %175 = arith.addf %172, %174 : vector<16x32xf32>
      %176 = vector.extract_strided_slice %160 {offsets = [0, 16], sizes = [16, 32], strides = [1, 1]} : vector<16x48xf32> to vector<16x32xf32>
      %177 = arith.addf %175, %176 : vector<16x32xf32>
      %178 = vector.extract_strided_slice %170 {offsets = [0, 0], sizes = [1, 32], strides = [1, 1]} : vector<2x32xf32> to vector<1x32xf32>
      %179 = vector.extract_strided_slice %170 {offsets = [1, 0], sizes = [1, 32], strides = [1, 1]} : vector<2x32xf32> to vector<1x32xf32>
      %cst_84 = arith.constant dense<0.000000e+00> : vector<16xf32>
      %180 = vector.multi_reduction <add>, %177, %cst_84 [1] : vector<16x32xf32> to vector<16xf32>
      %181 = vector.shape_cast %180 : vector<16xf32> to vector<16x1xf32>
      %cst_85 = arith.constant 3.200000e+01 : f32
      %182 = vector.broadcast %cst_85 : f32 to vector<16x1xf32>
      %183 = arith.divf %181, %182 : vector<16x1xf32>
      %184 = vector.broadcast %183 : vector<16x1xf32> to vector<16x32xf32>
      %185 = arith.subf %177, %184 : vector<16x32xf32>
      %186 = arith.mulf %185, %185 : vector<16x32xf32>
      %cst_86 = arith.constant dense<0.000000e+00> : vector<16xf32>
      %187 = vector.multi_reduction <add>, %186, %cst_86 [1] : vector<16x32xf32> to vector<16xf32>
      %188 = vector.shape_cast %187 : vector<16xf32> to vector<16x1xf32>
      %cst_87 = arith.constant 3.200000e+01 : f32
      %189 = vector.broadcast %cst_87 : f32 to vector<16x1xf32>
      %190 = arith.divf %188, %189 : vector<16x1xf32>
      %191 = vector.broadcast %183 : vector<16x1xf32> to vector<16x32xf32>
      %192 = arith.subf %177, %191 : vector<16x32xf32>
      %cst_88 = arith.constant 9.99999974E-6 : f32
      %193 = vector.broadcast %cst_88 : f32 to vector<16x1xf32>
      %194 = arith.addf %190, %193 : vector<16x1xf32>
      %195 = math.rsqrt %194 : vector<16x1xf32>
      %196 = vector.broadcast %195 : vector<16x1xf32> to vector<16x32xf32>
      %197 = arith.mulf %192, %196 : vector<16x32xf32>
      %198 = vector.broadcast %178 : vector<1x32xf32> to vector<16x32xf32>
      %199 = arith.mulf %197, %198 : vector<16x32xf32>
      %200 = vector.broadcast %179 : vector<1x32xf32> to vector<16x32xf32>
      %201 = arith.addf %199, %200 : vector<16x32xf32>
      %202 = arith.addf %155, %201 : vector<16x32xf32>
      %c0_89 = arith.constant 0 : index
      %c0_90 = arith.constant 0 : index
      %203 = vector.load %arg23[%c0_89, %c0_90] : memref<32x8xf32, #tpu.memory_space<vmem>>, vector<32x8xf32>
      %cst_91 = arith.constant dense<0.000000e+00> : vector<16x8xf32>
      %204 = tpu.matmul %153, %203, %cst_91 {dimension_numbers = #tpu.dot_dimension_numbers<[1], [0], [0], [1], [0, 0, 1, 1], [], []>} : vector<16x32xf32>, vector<32x8xf32>, vector<16x8xf32> -> vector<16x8xf32>
      %c0_92 = arith.constant 0 : index
      %c0_93 = arith.constant 0 : index
      %205 = vector.load %arg24[%c0_92, %c0_93] : memref<1x8xf32, #tpu.memory_space<vmem>>, vector<1x8xf32>
      %206 = vector.broadcast %205 : vector<1x8xf32> to vector<16x8xf32>
      %207 = arith.addf %204, %206 : vector<16x8xf32>
      %c0_94 = arith.constant 0 : index
      %c0_95 = arith.constant 0 : index
      %208 = vector.load %arg25[%c0_94, %c0_95] : memref<32x8xf32, #tpu.memory_space<vmem>>, vector<32x8xf32>
      %cst_96 = arith.constant dense<0.000000e+00> : vector<16x8xf32>
      %209 = tpu.matmul %202, %208, %cst_96 {dimension_numbers = #tpu.dot_dimension_numbers<[1], [0], [0], [1], [0, 0, 1, 1], [], []>} : vector<16x32xf32>, vector<32x8xf32>, vector<16x8xf32> -> vector<16x8xf32>
      %210 = arith.addf %207, %209 : vector<16x8xf32>
      %c0_97 = arith.constant 0 : index
      %c0_98 = arith.constant 0 : index
      %211 = vector.load %arg26[%c0_97, %c0_98] : memref<1x8xf32, #tpu.memory_space<vmem>>, vector<1x8xf32>
      %212 = vector.broadcast %211 : vector<1x8xf32> to vector<16x8xf32>
      %213 = arith.addf %210, %212 : vector<16x8xf32>
      %214 = vector.shape_cast %213 : vector<16x8xf32> to vector<2x8x8xf32>
      %215 = vector.extract_strided_slice %214 {offsets = [0, 0, 0], sizes = [2, 4, 8], strides = [1, 1, 1]} : vector<2x8x8xf32> to vector<2x4x8xf32>
      %c0_99 = arith.constant 0 : index
      %c0_100 = arith.constant 0 : index
      %c0_101 = arith.constant 0 : index
      %216 = vector.load %arg31[%c0_99, %c0_100, %c0_101] : memref<2x4x1xf32, #tpu.memory_space<vmem>>, vector<2x4x1xf32>
      %217 = vector.broadcast %216 : vector<2x4x1xf32> to vector<2x4x8xf32>
      %218 = arith.mulf %215, %217 : vector<2x4x8xf32>
      %c0_102 = arith.constant 0 : index
      %c0_103 = arith.constant 0 : index
      %c0_104 = arith.constant 0 : index
      %219 = vector.load %arg30[%c0_102, %c0_103, %c0_104] : memref<2x4x1xf32, #tpu.memory_space<vmem>>, vector<2x4x1xf32>
      %220 = vector.broadcast %219 : vector<2x4x1xf32> to vector<2x4x8xf32>
      %221 = arith.addf %218, %220 : vector<2x4x8xf32>
      %c0_105 = arith.constant 0 : index
      %c0_106 = arith.constant 0 : index
      %c0_107 = arith.constant 0 : index
      %222 = vector.load %arg27[%c0_105, %c0_106, %c0_107] : memref<2x4x8xf32, #tpu.memory_space<vmem>>, vector<2x4x8xf32>
      tpu.vector_store %arg27[%c0_105, %c0_106, %c0_107], %221 {strides = array<i32>} : memref<2x4x8xf32, #tpu.memory_space<vmem>>, vector<2x4x8xf32>,
    } else {
    }
    return
  }
  func.func @transform_0(%arg0: i32) -> (i32, i32, i32) {
    %c0_i32 = arith.constant 0 : i32
    %c0_i32_0 = arith.constant 0 : i32
    %c0_i32_1 = arith.constant 0 : i32
    %c0_i32_2 = arith.constant 0 : i32
    return %c0_i32, %c0_i32_0, %c0_i32_1 : i32, i32, i32
  }
  func.func @transform_1(%arg0: i32) -> (i32, i32, i32) {
    %c0_i32 = arith.constant 0 : i32
    %c0_i32_0 = arith.constant 0 : i32
    %c0_i32_1 = arith.constant 0 : i32
    %c0_i32_2 = arith.constant 0 : i32
    return %c0_i32, %c0_i32_0, %c0_i32_1 : i32, i32, i32
  }
  func.func @transform_2(%arg0: i32) -> (i32, i32) {
    %c0_i32 = arith.constant 0 : i32
    %c0_i32_0 = arith.constant 0 : i32
    %c0_i32_1 = arith.constant 0 : i32
    return %c0_i32, %c0_i32_0 : i32, i32
  }
  func.func @transform_3(%arg0: i32) -> (i32, i32) {
    %c0_i32 = arith.constant 0 : i32
    %c0_i32_0 = arith.constant 0 : i32
    %c0_i32_1 = arith.constant 0 : i32
    return %c0_i32, %c0_i32_0 : i32, i32
  }
  func.func @transform_4(%arg0: i32) -> (i32, i32) {
    %c0_i32 = arith.constant 0 : i32
    %c0_i32_0 = arith.constant 0 : i32
    %c0_i32_1 = arith.constant 0 : i32
    return %c0_i32, %c0_i32_0 : i32, i32
  }
  func.func @transform_5(%arg0: i32) -> (i32, i32) {
    %c0_i32 = arith.constant 0 : i32
    %c0_i32_0 = arith.constant 0 : i32
    %c0_i32_1 = arith.constant 0 : i32
    return %c0_i32, %c0_i32_0 : i32, i32
  }
  func.func @transform_6(%arg0: i32) -> (i32, i32) {
    %c0_i32 = arith.constant 0 : i32
    %c0_i32_0 = arith.constant 0 : i32
    %c0_i32_1 = arith.constant 0 : i32
    return %c0_i32, %c0_i32_0 : i32, i32
  }
  func.func @transform_7(%arg0: i32) -> (i32, i32, i32) {
    %c0_i32 = arith.constant 0 : i32
    %c0_i32_0 = arith.constant 0 : i32
    %c0_i32_1 = arith.constant 0 : i32
    return %arg0, %c0_i32, %c0_i32_0 : i32, i32, i32
  }
  func.func @transform_8(%arg0: i32) -> (i32, i32, i32) {
    %c0_i32 = arith.constant 0 : i32
    %c0_i32_0 = arith.constant 0 : i32
    %c0_i32_1 = arith.constant 0 : i32
    return %arg0, %c0_i32, %c0_i32_0 : i32, i32, i32
  }
  func.func @transform_9(%arg0: i32) -> (i32, i32, i32) {
    %c0_i32 = arith.constant 0 : i32
    %c0_i32_0 = arith.constant 0 : i32
    %c0_i32_1 = arith.constant 0 : i32
    return %arg0, %c0_i32, %c0_i32_0 : i32, i32, i32
  }
  func.func @transform_10(%arg0: i32) -> (i32, i32, i32) {
    %c0_i32 = arith.constant 0 : i32
    %c0_i32_0 = arith.constant 0 : i32
    %c0_i32_1 = arith.constant 0 : i32
    return %arg0, %c0_i32, %c0_i32_0 : i32, i32, i32
  }
  func.func @transform_11(%arg0: i32) -> (i32, i32, i32) {
    %c0_i32 = arith.constant 0 : i32
    %c0_i32_0 = arith.constant 0 : i32
    %c0_i32_1 = arith.constant 0 : i32
    return %arg0, %c0_i32, %c0_i32_0 : i32, i32, i32
  }
  func.func @transform_12(%arg0: i32) -> (i32, i32, i32) {
    %c0_i32 = arith.constant 0 : i32
    %c0_i32_0 = arith.constant 0 : i32
    %c0_i32_1 = arith.constant 0 : i32
    return %arg0, %c0_i32, %c0_i32_0 : i32, i32, i32
  }
  func.func @transform_13(%arg0: i32) -> (i32, i32, i32) {
    %c0_i32 = arith.constant 0 : i32
    %c0_i32_0 = arith.constant 0 : i32
    %c0_i32_1 = arith.constant 0 : i32
    return %arg0, %c0_i32, %c0_i32_0 : i32, i32, i32
  }
  func.func @transform_14(%arg0: i32) -> (i32, i32, i32) {
    %c0_i32 = arith.constant 0 : i32
    %c0_i32_0 = arith.constant 0 : i32
    %c0_i32_1 = arith.constant 0 : i32
    return %arg0, %c0_i32, %c0_i32_0 : i32, i32, i32
  }
  func.func @transform_15(%arg0: i32) -> (i32, i32, i32) {
    %c0_i32 = arith.constant 0 : i32
    %c0_i32_0 = arith.constant 0 : i32
    %c0_i32_1 = arith.constant 0 : i32
    return %arg0, %c0_i32, %c0_i32_0 : i32, i32, i32
  }
  func.func @transform_16(%arg0: i32) -> (i32, i32) {
    %c0_i32 = arith.constant 0 : i32
    %c0_i32_0 = arith.constant 0 : i32
    %c0_i32_1 = arith.constant 0 : i32
    return %c0_i32, %c0_i32_0 : i32, i32
  }
  func.func @transform_17(%arg0: i32) -> (i32, i32) {
    %c0_i32 = arith.constant 0 : i32
    %c0_i32_0 = arith.constant 0 : i32
    %c0_i32_1 = arith.constant 0 : i32
    return %c0_i32, %c0_i32_0 : i32, i32
  }
  func.func @transform_18(%arg0: i32) -> (i32, i32) {
    %c0_i32 = arith.constant 0 : i32
    %c0_i32_0 = arith.constant 0 : i32
    %c0_i32_1 = arith.constant 0 : i32
    return %c0_i32, %c0_i32_0 : i32, i32
  }
  func.func @transform_19(%arg0: i32) -> (i32, i32) {
    %c0_i32 = arith.constant 0 : i32
    %c0_i32_0 = arith.constant 0 : i32
    %c0_i32_1 = arith.constant 0 : i32
    return %c0_i32, %c0_i32_0 : i32, i32
  }
  func.func @transform_20(%arg0: i32) -> (i32, i32) {
    %c0_i32 = arith.constant 0 : i32
    %c0_i32_0 = arith.constant 0 : i32
    %c0_i32_1 = arith.constant 0 : i32
    return %c0_i32, %c0_i32_0 : i32, i32
  }
  func.func @transform_21(%arg0: i32) -> (i32, i32) {
    %c0_i32 = arith.constant 0 : i32
    %c0_i32_0 = arith.constant 0 : i32
    %c0_i32_1 = arith.constant 0 : i32
    return %c0_i32, %c0_i32_0 : i32, i32
  }
  func.func @transform_22(%arg0: i32) -> (i32, i32) {
    %c0_i32 = arith.constant 0 : i32
    %c0_i32_0 = arith.constant 0 : i32
    %c0_i32_1 = arith.constant 0 : i32
    return %c0_i32, %c0_i32_0 : i32, i32
  }
  func.func @transform_23(%arg0: i32) -> (i32, i32) {
    %c0_i32 = arith.constant 0 : i32
    %c0_i32_0 = arith.constant 0 : i32
    %c0_i32_1 = arith.constant 0 : i32
    return %c0_i32, %c0_i32_0 : i32, i32
  }
  func.func @transform_24(%arg0: i32) -> (i32, i32) {
    %c0_i32 = arith.constant 0 : i32
    %c0_i32_0 = arith.constant 0 : i32
    %c0_i32_1 = arith.constant 0 : i32
    return %c0_i32, %c0_i32_0 : i32, i32
  }
  func.func @transform_25(%arg0: i32) -> (i32, i32) {
    %c0_i32 = arith.constant 0 : i32
    %c0_i32_0 = arith.constant 0 : i32
    %c0_i32_1 = arith.constant 0 : i32
    return %c0_i32, %c0_i32_0 : i32, i32
  }
  func.func @transform_26(%arg0: i32) -> (i32, i32, i32) {
    %c0_i32 = arith.constant 0 : i32
    %c0_i32_0 = arith.constant 0 : i32
    %c0_i32_1 = arith.constant 0 : i32
    %c0_i32_2 = arith.constant 0 : i32
    return %c0_i32, %c0_i32_0, %c0_i32_1 : i32, i32, i32
  }
}

</mosaic_0001>

<llo_original>
// kernel: model_forward.1
$region0: #{model_forward.1}
  #allocation0 [shape = 'u32[]', space=smem, size = 0x4, offset = 0x4, fixed_abs, tag = 'smem constant byte address 0x4 - core index']
  #allocation1 [shape = 'u32[144,128]{1,0:T(1,128)}', space=vmem, size = 0x12000, scoped, tag = 'internal scratch']
  #allocation2 [shape = 'f32[2,8,32]{2,1,0:T(8,128)}', space=vmem, size = 0x2000, scoped, tag = 'scratch operand']
  #allocation3 [shape = 'f32[2,8,32]{2,1,0:T(8,128)}', space=vmem, size = 0x2000, scoped, tag = 'scratch operand']
  #allocation4 [shape = 'f32[2,4,1]{2,1,0:T(4,128)}', space=vmem, size = 0x1000, scoped, tag = 'scratch operand']
  #allocation5 [shape = 'f32[2,4,1]{2,1,0:T(4,128)}', space=vmem, size = 0x1000, scoped, tag = 'scratch operand']
  %s0 = inlined_call_operand.hbm [shape: f32[2,4,16], index: 0, kind: input, shape index: {}]
  %s1 = inlined_call_operand.hbm [shape: f32[2,4,16], index: 1, kind: input, shape index: {}]
  %s2 = inlined_call_operand.hbm [shape: f32[16,16], index: 2, kind: input, shape index: {}]
  %s3 = inlined_call_operand.hbm [shape: f32[16,32], index: 3, kind: input, shape index: {}]
  %s4 = inlined_call_operand.hbm [shape: f32[1,32], index: 4, kind: input, shape index: {}]
  %s5 = inlined_call_operand.vmem [shape: f32[16,32], index: 5, kind: input, shape index: {}]
  %s6 = inlined_call_operand.hbm [shape: f32[1,32], index: 6, kind: input, shape index: {}]
  %s7 = inlined_call_operand.hbm [shape: f32[2,32,96], index: 7, kind: input, shape index: {}]
  %s8 = inlined_call_operand.hbm [shape: f32[2,1,96], index: 8, kind: input, shape index: {}]
  %s9 = inlined_call_operand.hbm [shape: f32[2,32,32], index: 9, kind: input, shape index: {}]
  %s10 = inlined_call_operand.hbm [shape: f32[2,1,32], index: 10, kind: input, shape index: {}]
  %s11 = inlined_call_operand.hbm [shape: f32[2,32,64], index: 11, kind: input, shape index: {}]
  %s12 = inlined_call_operand.hbm [shape: f32[2,1,64], index: 12, kind: input, shape index: {}]
  %s13 = inlined_call_operand.hbm [shape: f32[2,64,32], index: 13, kind: input, shape index: {}]
  %s14 = inlined_call_operand.hbm [shape: f32[2,1,32], index: 14, kind: input, shape index: {}]
  %s15 = inlined_call_operand.hbm [shape: f32[2,4,32], index: 15, kind: input, shape index: {}]
  %s16 = inlined_call_operand.vmem [shape: f32[32,48], index: 16, kind: input, shape index: {}]
  %s17 = inlined_call_operand.hbm [shape: f32[1,48], index: 17, kind: input, shape index: {}]
  %s18 = inlined_call_operand.vmem [shape: f32[16,32], index: 18, kind: input, shape index: {}]
  %s19 = inlined_call_operand.vmem [shape: f32[1,32], index: 19, kind: input, shape index: {}]
  %s20 = inlined_call_operand.vmem [shape: f32[2,32], index: 20, kind: input, shape index: {}, may-alias: {20,21}]
  %s21 = inlined_call_operand.vmem [shape: f32[2,32], index: 21, kind: input, shape index: {}, may-alias: {20,21}]
  %s22 = inlined_call_operand.vmem [shape: f32[32,8], index: 22, kind: input, shape index: {}, may-alias: {22,24}]
  %s23 = inlined_call_operand.vmem [shape: f32[1,8], index: 23, kind: input, shape index: {}]
  %s24 = inlined_call_operand.vmem [shape: f32[32,8], index: 24, kind: input, shape index: {}, may-alias: {22,24}]
  %s25 = inlined_call_operand.vmem [shape: f32[1,8], index: 25, kind: input, shape index: {}]
  %s26 = inlined_call_operand.hbm [shape: f32[2,4,8], index: 26, kind: output, shape index: {}]
  %s27 = sld [smem:[#allocation0]]
  $region209: #{model_forward.1} parent=0
    _
  %s29 = ssub.s32 1, %s27
  %s30 = scalar_select 0, %s29, %s27
  $region1: #{model_forward.1} parent=0
    #allocation6 [shape = 'u8[4096]{0}', space=vmem, size = 0x1000, scoped, tag = 'input window, operand 0, single buffered']
    #allocation7 [shape = 's32[2]{0}', space=sflag, size = 0x8, scoped, tag = 'scoped memory for model_forward.1']
    #allocation8 [shape = 's32[2]{0}', space=sflag, size = 0x8, scoped, tag = 'scoped memory for model_forward.1']
    #allocation9 [shape = 'u8[4096]{0}', space=vmem, size = 0x1000, scoped, tag = 'input window, operand 1, single buffered']
    #allocation10 [shape = 's32[1]{0}', space=sflag, size = 0x4, scoped, tag = 'scoped memory for model_forward.1']
    #allocation11 [shape = 'u8[8192]{0}', space=vmem, size = 0x2000, scoped, tag = 'input window, operand 2, single buffered']
    #allocation12 [shape = 'u8[8192]{0}', space=vmem, size = 0x2000, scoped, tag = 'input window, operand 3, single buffered']
    #allocation13 [shape = 's32[1]{0}', space=sflag, size = 0x4, scoped, tag = 'scoped memory for model_forward.1']
    #allocation14 [shape = 'u8[512]{0}', space=vmem, size = 0x400, scoped, tag = 'input window, operand 4, single buffered']
    #allocation15 [shape = 'u8[512]{0}', space=vmem, size = 0x400, scoped, tag = 'input window, operand 6, single buffered']
    #allocation16 [shape = 's32[1]{0}', space=sflag, size = 0x4, scoped, tag = 'scoped memory for model_forward.1']
    #allocation17 [shape = 'u8[32768]{0}', space=vmem, size = 0x8000, scoped, tag = 'input window, operand 7']
    #allocation18 [shape = 'u8[1024]{0}', space=vmem, size = 0x400, scoped, tag = 'input window, operand 8']
    #allocation19 [shape = 'u8[32768]{0}', space=vmem, size = 0x8000, scoped, tag = 'input window, operand 9']
    #allocation20 [shape = 'u8[1024]{0}', space=vmem, size = 0x400, scoped, tag = 'input window, operand 10']
    #allocation21 [shape = 'u8[32768]{0}', space=vmem, size = 0x8000, scoped, tag = 'input window, operand 11']
    #allocation22 [shape = 'u8[1024]{0}', space=vmem, size = 0x400, scoped, tag = 'input window, operand 12']
    #allocation23 [shape = 'u8[65536]{0}', space=vmem, size = 0x10000, scoped, tag = 'input window, operand 13']
    #allocation24 [shape = 'u8[1024]{0}', space=vmem, size = 0x400, scoped, tag = 'input window, operand 14']
    #allocation25 [shape = 'u8[4096]{0}', space=vmem, size = 0x1000, scoped, tag = 'input window, operand 15']
    #allocation26 [shape = 'u8[512]{0}', space=vmem, size = 0x400, scoped, tag = 'input window, operand 17, single buffered']
    #allocation27 [shape = 'u8[4096]{0}', space=vmem, size = 0x1000, scoped, tag = 'output window, operand 0, single buffered']
    %31 = vsyncpa [#allocation7], 0
    %32 = vsyncpa [#allocation10], 0
    %33 = vsyncpa [#allocation13], 0
    %34 = vsyncpa [#allocation16], 0
    %35 = vsyncpa [#allocation8], 0
    loop: start=0, step=1, limit=4
    $region2: #{model_forward.1} parent=1 // loop_pre_header
      _
    $region3: #{model_forward.1} parent=1 // loop_header
      %s37 = sphi 0, %s41
      %p38 = scmp.ge.s32.totalorder %s37, 4
      %s45 = sphi 0, %s45
      %s47 = sphi 0, %s45
      %s48 = sphi 0, %s47
      %s62 = sphi 0, %s48
      %s66 = sphi 0, %s66
      %s68 = sphi 0, %s66
      %s69 = sphi 0, %s68
      %s83 = sphi 0, %s69
      %s87 = sphi 0, %s87
      %s89 = sphi 0, %s87
      %s90 = sphi 0, %s89
      %s104 = sphi 0, %s90
      %s108 = sphi 0, %s108
      %s110 = sphi 0, %s108
      %s111 = sphi 0, %s110
      %s125 = sphi 0, %s111
      %s129 = sphi 0, %s129
      %s131 = sphi 0, %s129
      %s132 = sphi 0, %s131
      %s146 = sphi 0, %s132
      %s150 = sphi 0, %s150
      %s152 = sphi 0, %s150
      %s153 = sphi 0, %s152
      %s167 = sphi 0, %s153
      %s171 = sphi 0, %s171
      %s173 = sphi 0, %s171
      %s174 = sphi 0, %s173
      %s188 = sphi 0, %s174
      %s194 = sphi 0, %s196
      %s197 = sphi 0, %s194
      %s198 = sphi 0, %s197
      %s214 = sphi 0, %s198
      %s220 = sphi 0, %s222
      %s223 = sphi 0, %s220
      %s224 = sphi 0, %s223
      %s240 = sphi 0, %s224
      %s246 = sphi 0, %s248
      %s249 = sphi 0, %s246
      %s250 = sphi 0, %s249
      %s266 = sphi 0, %s250
      %s272 = sphi 0, %s274
      %s275 = sphi 0, %s272
      %s276 = sphi 0, %s275
      %s292 = sphi 0, %s276
      %s298 = sphi 0, %s300
      %s301 = sphi 0, %s298
      %s302 = sphi 0, %s301
      %s318 = sphi 0, %s302
      %s324 = sphi 0, %s326
      %s327 = sphi 0, %s324
      %s328 = sphi 0, %s327
      %s344 = sphi 0, %s328
      %s350 = sphi 0, %s352
      %s353 = sphi 0, %s350
      %s354 = sphi 0, %s353
      %s370 = sphi 0, %s354
      %s376 = sphi 0, %s378
      %s379 = sphi 0, %s376
      %s380 = sphi 0, %s379
      %s396 = sphi 0, %s380
      %s402 = sphi 0, %s404
      %s405 = sphi 0, %s402
      %s406 = sphi 0, %s405
      %s422 = sphi 0, %s406
      %s426 = sphi 0, %s426
      %s428 = sphi 0, %s426
      %s429 = sphi 0, %s428
      %s443 = sphi 0, %s429
      %s447 = sphi 0, %s447
      %s449 = sphi 0, %s447
      %s450 = sphi 0, %s449
      %s464 = sphi 0, %s450
      %s468 = sphi 0, %s468
      %s470 = sphi 0, %s468
      %s471 = sphi 0, %s470
      %s485 = sphi 0, %s471
      %s489 = sphi 0, %s489
      %s491 = sphi 0, %s489
      %s492 = sphi 0, %s491
      %s506 = sphi 0, %s492
      %s510 = sphi 0, %s510
      %s512 = sphi 0, %s510
      %s513 = sphi 0, %s512
      %s527 = sphi 0, %s513
      %s531 = sphi 0, %s531
      %s533 = sphi 0, %s531
      %s534 = sphi 0, %s533
      %s548 = sphi 0, %s534
      %s552 = sphi 0, %s552
      %s554 = sphi 0, %s552
      %s555 = sphi 0, %s554
      %s569 = sphi 0, %s555
      %s573 = sphi 0, %s573
      %s575 = sphi 0, %s573
      %s576 = sphi 0, %s575
      %s590 = sphi 0, %s576
      %s594 = sphi 0, %s594
      %s596 = sphi 0, %s594
      %s597 = sphi 0, %s596
      %s611 = sphi 0, %s597
      %s615 = sphi 0, %s615
      %s617 = sphi 0, %s615
      %s618 = sphi 0, %s617
      %s632 = sphi 0, %s618
      %s636 = sphi 0, %s636
      %s638 = sphi 0, %s636
      %s639 = sphi 0, %s638
      %s653 = sphi 0, %s639
    $region4: #{model_forward.1} parent=1 // loop_header_branch
      %40 = sbr.rel (%p38) target = $region8
    $region5: #{model_forward.1} parent=1 // loop_body
      %s42 = ssub.s32 %s37, 1
      %s43 = ssub.s32 %s37, 2
      %s44 = sadd.s32 %s37, 1
      %s46 = sadd.s32 %s45, 1
      %p49 = scmp.eq.s32.totalorder %s37, 1
      %p50 = scmp.ne.s32.totalorder %s45, %s47
      %p51 = scmp.eq.s32.totalorder %s37, 0
      %p52 = por %p50, %p51
      %p53 = scmp.ne.s32.totalorder %s45, %s47
      %p54 = scmp.eq.s32.totalorder %s42, 1
      %p55 = por %p53, %p54
      %p56 = scmp.ne.s32.totalorder %s47, %s48
      %p57 = scmp.eq.s32.totalorder %s42, 0
      %p58 = por %p56, %p57
      %p59 = scmp.ne.s32.totalorder %s47, %s48
      %p60 = scmp.eq.s32.totalorder %s43, 1
      %p61 = por %p59, %p60
      %p63 = scmp.ne.s32.totalorder %s48, %s62
      %p64 = scmp.eq.s32.totalorder %s43, 0
      %p65 = por %p63, %p64
      %s67 = sadd.s32 %s66, 1
      %p70 = scmp.eq.s32.totalorder %s37, 1
      %p71 = scmp.ne.s32.totalorder %s66, %s68
      %p72 = scmp.eq.s32.totalorder %s37, 0
      %p73 = por %p71, %p72
      %p74 = scmp.ne.s32.totalorder %s66, %s68
      %p75 = scmp.eq.s32.totalorder %s42, 1
      %p76 = por %p74, %p75
      %p77 = scmp.ne.s32.totalorder %s68, %s69
      %p78 = scmp.eq.s32.totalorder %s42, 0
      %p79 = por %p77, %p78
      %p80 = scmp.ne.s32.totalorder %s68, %s69
      %p81 = scmp.eq.s32.totalorder %s43, 1
      %p82 = por %p80, %p81
      %p84 = scmp.ne.s32.totalorder %s69, %s83
      %p85 = scmp.eq.s32.totalorder %s43, 0
      %p86 = por %p84, %p85
      %s88 = sadd.s32 %s87, 1
      %p91 = scmp.eq.s32.totalorder %s37, 1
      %p92 = scmp.ne.s32.totalorder %s87, %s89
      %p93 = scmp.eq.s32.totalorder %s37, 0
      %p94 = por %p92, %p93
      %p95 = scmp.ne.s32.totalorder %s87, %s89
      %p96 = scmp.eq.s32.totalorder %s42, 1
      %p97 = por %p95, %p96
      %p98 = scmp.ne.s32.totalorder %s89, %s90
      %p99 = scmp.eq.s32.totalorder %s42, 0
      %p100 = por %p98, %p99
      %p101 = scmp.ne.s32.totalorder %s89, %s90
      %p102 = scmp.eq.s32.totalorder %s43, 1
      %p103 = por %p101, %p102
      %p105 = scmp.ne.s32.totalorder %s90, %s104
      %p106 = scmp.eq.s32.totalorder %s43, 0
      %p107 = por %p105, %p106
      %s109 = sadd.s32 %s108, 1
      %p112 = scmp.eq.s32.totalorder %s37, 1
      %p113 = scmp.ne.s32.totalorder %s108, %s110
      %p114 = scmp.eq.s32.totalorder %s37, 0
      %p115 = por %p113, %p114
      %p116 = scmp.ne.s32.totalorder %s108, %s110
      %p117 = scmp.eq.s32.totalorder %s42, 1
      %p118 = por %p116, %p117
      %p119 = scmp.ne.s32.totalorder %s110, %s111
      %p120 = scmp.eq.s32.totalorder %s42, 0
      %p121 = por %p119, %p120
      %p122 = scmp.ne.s32.totalorder %s110, %s111
      %p123 = scmp.eq.s32.totalorder %s43, 1
      %p124 = por %p122, %p123
      %p126 = scmp.ne.s32.totalorder %s111, %s125
      %p127 = scmp.eq.s32.totalorder %s43, 0
      %p128 = por %p126, %p127
      %s130 = sadd.s32 %s129, 1
      %p133 = scmp.eq.s32.totalorder %s37, 1
      %p134 = scmp.ne.s32.totalorder %s129, %s131
      %p135 = scmp.eq.s32.totalorder %s37, 0
      %p136 = por %p134, %p135
      %p137 = scmp.ne.s32.totalorder %s129, %s131
      %p138 = scmp.eq.s32.totalorder %s42, 1
      %p139 = por %p137, %p138
      %p140 = scmp.ne.s32.totalorder %s131, %s132
      %p141 = scmp.eq.s32.totalorder %s42, 0
      %p142 = por %p140, %p141
      %p143 = scmp.ne.s32.totalorder %s131, %s132
      %p144 = scmp.eq.s32.totalorder %s43, 1
      %p145 = por %p143, %p144
      %p147 = scmp.ne.s32.totalorder %s132, %s146
      %p148 = scmp.eq.s32.totalorder %s43, 0
      %p149 = por %p147, %p148
      %s151 = sadd.s32 %s150, 1
      %p154 = scmp.eq.s32.totalorder %s37, 1
      %p155 = scmp.ne.s32.totalorder %s150, %s152
      %p156 = scmp.eq.s32.totalorder %s37, 0
      %p157 = por %p155, %p156
      %p158 = scmp.ne.s32.totalorder %s150, %s152
      %p159 = scmp.eq.s32.totalorder %s42, 1
      %p160 = por %p158, %p159
      %p161 = scmp.ne.s32.totalorder %s152, %s153
      %p162 = scmp.eq.s32.totalorder %s42, 0
      %p163 = por %p161, %p162
      %p164 = scmp.ne.s32.totalorder %s152, %s153
      %p165 = scmp.eq.s32.totalorder %s43, 1
      %p166 = por %p164, %p165
      %p168 = scmp.ne.s32.totalorder %s153, %s167
      %p169 = scmp.eq.s32.totalorder %s43, 0
      %p170 = por %p168, %p169
      %s172 = sadd.s32 %s171, 1
      %p175 = scmp.eq.s32.totalorder %s37, 1
      %p176 = scmp.ne.s32.totalorder %s171, %s173
      %p177 = scmp.eq.s32.totalorder %s37, 0
      %p178 = por %p176, %p177
      %p179 = scmp.ne.s32.totalorder %s171, %s173
      %p180 = scmp.eq.s32.totalorder %s42, 1
      %p181 = por %p179, %p180
      %p182 = scmp.ne.s32.totalorder %s173, %s174
      %p183 = scmp.eq.s32.totalorder %s42, 0
      %p184 = por %p182, %p183
      %p185 = scmp.ne.s32.totalorder %s173, %s174
      %p186 = scmp.eq.s32.totalorder %s43, 1
      %p187 = por %p185, %p186
      %p189 = scmp.ne.s32.totalorder %s174, %s188
      %p190 = scmp.eq.s32.totalorder %s43, 0
      %p191 = por %p189, %p190
      %s192 = ssub.s32 %s37, %s44
      %p193 = scmp.eq.s32.totalorder %s192, 0
      %s195 = sadd.s32 %s194, 1
      %s196 = scalar_select %p193, %s194, %s195
      %p199 = pneg %p193
      %p200 = scmp.eq.s32.totalorder %s37, 1
      %p201 = por %p199, %p200
      %p202 = scmp.ne.s32.totalorder %s194, %s197
      %p203 = scmp.eq.s32.totalorder %s37, 0
      %p204 = por %p202, %p203
      %p205 = scmp.ne.s32.totalorder %s194, %s197
      %p206 = scmp.eq.s32.totalorder %s42, 1
      %p207 = por %p205, %p206
      %p208 = scmp.ne.s32.totalorder %s197, %s198
      %p209 = scmp.eq.s32.totalorder %s42, 0
      %p210 = por %p208, %p209
      %p211 = scmp.ne.s32.totalorder %s197, %s198
      %p212 = scmp.eq.s32.totalorder %s43, 1
      %p213 = por %p211, %p212
      %p215 = scmp.ne.s32.totalorder %s198, %s214
      %p216 = scmp.eq.s32.totalorder %s43, 0
      %p217 = por %p215, %p216
      %s218 = ssub.s32 %s37, %s44
      %p219 = scmp.eq.s32.totalorder %s218, 0
      %s221 = sadd.s32 %s220, 1
      %s222 = scalar_select %p219, %s220, %s221
      %p225 = pneg %p219
      %p226 = scmp.eq.s32.totalorder %s37, 1
      %p227 = por %p225, %p226
      %p228 = scmp.ne.s32.totalorder %s220, %s223
      %p229 = scmp.eq.s32.totalorder %s37, 0
      %p230 = por %p228, %p229
      %p231 = scmp.ne.s32.totalorder %s220, %s223
      %p232 = scmp.eq.s32.totalorder %s42, 1
      %p233 = por %p231, %p232
      %p234 = scmp.ne.s32.totalorder %s223, %s224
      %p235 = scmp.eq.s32.totalorder %s42, 0
      %p236 = por %p234, %p235
      %p237 = scmp.ne.s32.totalorder %s223, %s224
      %p238 = scmp.eq.s32.totalorder %s43, 1
      %p239 = por %p237, %p238
      %p241 = scmp.ne.s32.totalorder %s224, %s240
      %p242 = scmp.eq.s32.totalorder %s43, 0
      %p243 = por %p241, %p242
      %s244 = ssub.s32 %s37, %s44
      %p245 = scmp.eq.s32.totalorder %s244, 0
      %s247 = sadd.s32 %s246, 1
      %s248 = scalar_select %p245, %s246, %s247
      %p251 = pneg %p245
      %p252 = scmp.eq.s32.totalorder %s37, 1
      %p253 = por %p251, %p252
      %p254 = scmp.ne.s32.totalorder %s246, %s249
      %p255 = scmp.eq.s32.totalorder %s37, 0
      %p256 = por %p254, %p255
      %p257 = scmp.ne.s32.totalorder %s246, %s249
      %p258 = scmp.eq.s32.totalorder %s42, 1
      %p259 = por %p257, %p258
      %p260 = scmp.ne.s32.totalorder %s249, %s250
      %p261 = scmp.eq.s32.totalorder %s42, 0
      %p262 = por %p260, %p261
      %p263 = scmp.ne.s32.totalorder %s249, %s250
      %p264 = scmp.eq.s32.totalorder %s43, 1
      %p265 = por %p263, %p264
      %p267 = scmp.ne.s32.totalorder %s250, %s266
      %p268 = scmp.eq.s32.totalorder %s43, 0
      %p269 = por %p267, %p268
      %s270 = ssub.s32 %s37, %s44
      %p271 = scmp.eq.s32.totalorder %s270, 0
      %s273 = sadd.s32 %s272, 1
      %s274 = scalar_select %p271, %s272, %s273
      %p277 = pneg %p271
      %p278 = scmp.eq.s32.totalorder %s37, 1
      %p279 = por %p277, %p278
      %p280 = scmp.ne.s32.totalorder %s272, %s275
      %p281 = scmp.eq.s32.totalorder %s37, 0
      %p282 = por %p280, %p281
      %p283 = scmp.ne.s32.totalorder %s272, %s275
      %p284 = scmp.eq.s32.totalorder %s42, 1
      %p285 = por %p283, %p284
      %p286 = scmp.ne.s32.totalorder %s275, %s276
      %p287 = scmp.eq.s32.totalorder %s42, 0
      %p288 = por %p286, %p287
      %p289 = scmp.ne.s32.totalorder %s275, %s276
      %p290 = scmp.eq.s32.totalorder %s43, 1
      %p291 = por %p289, %p290
      %p293 = scmp.ne.s32.totalorder %s276, %s292
      %p294 = scmp.eq.s32.totalorder %s43, 0
      %p295 = por %p293, %p294
      %s296 = ssub.s32 %s37, %s44
      %p297 = scmp.eq.s32.totalorder %s296, 0
      %s299 = sadd.s32 %s298, 1
      %s300 = scalar_select %p297, %s298, %s299
      %p303 = pneg %p297
      %p304 = scmp.eq.s32.totalorder %s37, 1
      %p305 = por %p303, %p304
      %p306 = scmp.ne.s32.totalorder %s298, %s301
      %p307 = scmp.eq.s32.totalorder %s37, 0
      %p308 = por %p306, %p307
      %p309 = scmp.ne.s32.totalorder %s298, %s301
      %p310 = scmp.eq.s32.totalorder %s42, 1
      %p311 = por %p309, %p310
      %p312 = scmp.ne.s32.totalorder %s301, %s302
      %p313 = scmp.eq.s32.totalorder %s42, 0
      %p314 = por %p312, %p313
      %p315 = scmp.ne.s32.totalorder %s301, %s302
      %p316 = scmp.eq.s32.totalorder %s43, 1
      %p317 = por %p315, %p316
      %p319 = scmp.ne.s32.totalorder %s302, %s318
      %p320 = scmp.eq.s32.totalorder %s43, 0
      %p321 = por %p319, %p320
      %s322 = ssub.s32 %s37, %s44
      %p323 = scmp.eq.s32.totalorder %s322, 0
      %s325 = sadd.s32 %s324, 1
      %s326 = scalar_select %p323, %s324, %s325
      %p329 = pneg %p323
      %p330 = scmp.eq.s32.totalorder %s37, 1
      %p331 = por %p329, %p330
      %p332 = scmp.ne.s32.totalorder %s324, %s327
      %p333 = scmp.eq.s32.totalorder %s37, 0
      %p334 = por %p332, %p333
      %p335 = scmp.ne.s32.totalorder %s324, %s327
      %p336 = scmp.eq.s32.totalorder %s42, 1
      %p337 = por %p335, %p336
      %p338 = scmp.ne.s32.totalorder %s327, %s328
      %p339 = scmp.eq.s32.totalorder %s42, 0
      %p340 = por %p338, %p339
      %p341 = scmp.ne.s32.totalorder %s327, %s328
      %p342 = scmp.eq.s32.totalorder %s43, 1
      %p343 = por %p341, %p342
      %p345 = scmp.ne.s32.totalorder %s328, %s344
      %p346 = scmp.eq.s32.totalorder %s43, 0
      %p347 = por %p345, %p346
      %s348 = ssub.s32 %s37, %s44
      %p349 = scmp.eq.s32.totalorder %s348, 0
      %s351 = sadd.s32 %s350, 1
      %s352 = scalar_select %p349, %s350, %s351
      %p355 = pneg %p349
      %p356 = scmp.eq.s32.totalorder %s37, 1
      %p357 = por %p355, %p356
      %p358 = scmp.ne.s32.totalorder %s350, %s353
      %p359 = scmp.eq.s32.totalorder %s37, 0
      %p360 = por %p358, %p359
      %p361 = scmp.ne.s32.totalorder %s350, %s353
      %p362 = scmp.eq.s32.totalorder %s42, 1
      %p363 = por %p361, %p362
      %p364 = scmp.ne.s32.totalorder %s353, %s354
      %p365 = scmp.eq.s32.totalorder %s42, 0
      %p366 = por %p364, %p365
      %p367 = scmp.ne.s32.totalorder %s353, %s354
      %p368 = scmp.eq.s32.totalorder %s43, 1
      %p369 = por %p367, %p368
      %p371 = scmp.ne.s32.totalorder %s354, %s370
      %p372 = scmp.eq.s32.totalorder %s43, 0
      %p373 = por %p371, %p372
      %s374 = ssub.s32 %s37, %s44
      %p375 = scmp.eq.s32.totalorder %s374, 0
      %s377 = sadd.s32 %s376, 1
      %s378 = scalar_select %p375, %s376, %s377
      %p381 = pneg %p375
      %p382 = scmp.eq.s32.totalorder %s37, 1
      %p383 = por %p381, %p382
      %p384 = scmp.ne.s32.totalorder %s376, %s379
      %p385 = scmp.eq.s32.totalorder %s37, 0
      %p386 = por %p384, %p385
      %p387 = scmp.ne.s32.totalorder %s376, %s379
      %p388 = scmp.eq.s32.totalorder %s42, 1
      %p389 = por %p387, %p388
      %p390 = scmp.ne.s32.totalorder %s379, %s380
      %p391 = scmp.eq.s32.totalorder %s42, 0
      %p392 = por %p390, %p391
      %p393 = scmp.ne.s32.totalorder %s379, %s380
      %p394 = scmp.eq.s32.totalorder %s43, 1
      %p395 = por %p393, %p394
      %p397 = scmp.ne.s32.totalorder %s380, %s396
      %p398 = scmp.eq.s32.totalorder %s43, 0
      %p399 = por %p397, %p398
      %s400 = ssub.s32 %s37, %s44
      %p401 = scmp.eq.s32.totalorder %s400, 0
      %s403 = sadd.s32 %s402, 1
      %s404 = scalar_select %p401, %s402, %s403
      %p407 = pneg %p401
      %p408 = scmp.eq.s32.totalorder %s37, 1
      %p409 = por %p407, %p408
      %p410 = scmp.ne.s32.totalorder %s402, %s405
      %p411 = scmp.eq.s32.totalorder %s37, 0
      %p412 = por %p410, %p411
      %p413 = scmp.ne.s32.totalorder %s402, %s405
      %p414 = scmp.eq.s32.totalorder %s42, 1
      %p415 = por %p413, %p414
      %p416 = scmp.ne.s32.totalorder %s405, %s406
      %p417 = scmp.eq.s32.totalorder %s42, 0
      %p418 = por %p416, %p417
      %p419 = scmp.ne.s32.totalorder %s405, %s406
      %p420 = scmp.eq.s32.totalorder %s43, 1
      %p421 = por %p419, %p420
      %p423 = scmp.ne.s32.totalorder %s406, %s422
      %p424 = scmp.eq.s32.totalorder %s43, 0
      %p425 = por %p423, %p424
      %s427 = sadd.s32 %s426, 1
      %p430 = scmp.eq.s32.totalorder %s37, 1
      %p431 = scmp.ne.s32.totalorder %s426, %s428
      %p432 = scmp.eq.s32.totalorder %s37, 0
      %p433 = por %p431, %p432
      %p434 = scmp.ne.s32.totalorder %s426, %s428
      %p435 = scmp.eq.s32.totalorder %s42, 1
      %p436 = por %p434, %p435
      %p437 = scmp.ne.s32.totalorder %s428, %s429
      %p438 = scmp.eq.s32.totalorder %s42, 0
      %p439 = por %p437, %p438
      %p440 = scmp.ne.s32.totalorder %s428, %s429
      %p441 = scmp.eq.s32.totalorder %s43, 1
      %p442 = por %p440, %p441
      %p444 = scmp.ne.s32.totalorder %s429, %s443
      %p445 = scmp.eq.s32.totalorder %s43, 0
      %p446 = por %p444, %p445
      %s448 = sadd.s32 %s447, 1
      %p451 = scmp.eq.s32.totalorder %s37, 1
      %p452 = scmp.ne.s32.totalorder %s447, %s449
      %p453 = scmp.eq.s32.totalorder %s37, 0
      %p454 = por %p452, %p453
      %p455 = scmp.ne.s32.totalorder %s447, %s449
      %p456 = scmp.eq.s32.totalorder %s42, 1
      %p457 = por %p455, %p456
      %p458 = scmp.ne.s32.totalorder %s449, %s450
      %p459 = scmp.eq.s32.totalorder %s42, 0
      %p460 = por %p458, %p459
      %p461 = scmp.ne.s32.totalorder %s449, %s450
      %p462 = scmp.eq.s32.totalorder %s43, 1
      %p463 = por %p461, %p462
      %p465 = scmp.ne.s32.totalorder %s450, %s464
      %p466 = scmp.eq.s32.totalorder %s43, 0
      %p467 = por %p465, %p466
      %s469 = sadd.s32 %s468, 1
      %p472 = scmp.eq.s32.totalorder %s37, 1
      %p473 = scmp.ne.s32.totalorder %s468, %s470
      %p474 = scmp.eq.s32.totalorder %s37, 0
      %p475 = por %p473, %p474
      %p476 = scmp.ne.s32.totalorder %s468, %s470
      %p477 = scmp.eq.s32.totalorder %s42, 1
      %p478 = por %p476, %p477
      %p479 = scmp.ne.s32.totalorder %s470, %s471
      %p480 = scmp.eq.s32.totalorder %s42, 0
      %p481 = por %p479, %p480
      %p482 = scmp.ne.s32.totalorder %s470, %s471
      %p483 = scmp.eq.s32.totalorder %s43, 1
      %p484 = por %p482, %p483
      %p486 = scmp.ne.s32.totalorder %s471, %s485
      %p487 = scmp.eq.s32.totalorder %s43, 0
      %p488 = por %p486, %p487
      %s490 = sadd.s32 %s489, 1
      %p493 = scmp.eq.s32.totalorder %s37, 1
      %p494 = scmp.ne.s32.totalorder %s489, %s491
      %p495 = scmp.eq.s32.totalorder %s37, 0
      %p496 = por %p494, %p495
      %p497 = scmp.ne.s32.totalorder %s489, %s491
      %p498 = scmp.eq.s32.totalorder %s42, 1
      %p499 = por %p497, %p498
      %p500 = scmp.ne.s32.totalorder %s491, %s492
      %p501 = scmp.eq.s32.totalorder %s42, 0
      %p502 = por %p500, %p501
      %p503 = scmp.ne.s32.totalorder %s491, %s492
      %p504 = scmp.eq.s32.totalorder %s43, 1
      %p505 = por %p503, %p504
      %p507 = scmp.ne.s32.totalorder %s492, %s506
      %p508 = scmp.eq.s32.totalorder %s43, 0
      %p509 = por %p507, %p508
      %s511 = sadd.s32 %s510, 1
      %p514 = scmp.eq.s32.totalorder %s37, 1
      %p515 = scmp.ne.s32.totalorder %s510, %s512
      %p516 = scmp.eq.s32.totalorder %s37, 0
      %p517 = por %p515, %p516
      %p518 = scmp.ne.s32.totalorder %s510, %s512
      %p519 = scmp.eq.s32.totalorder %s42, 1
      %p520 = por %p518, %p519
      %p521 = scmp.ne.s32.totalorder %s512, %s513
      %p522 = scmp.eq.s32.totalorder %s42, 0
      %p523 = por %p521, %p522
      %p524 = scmp.ne.s32.totalorder %s512, %s513
      %p525 = scmp.eq.s32.totalorder %s43, 1
      %p526 = por %p524, %p525
      %p528 = scmp.ne.s32.totalorder %s513, %s527
      %p529 = scmp.eq.s32.totalorder %s43, 0
      %p530 = por %p528, %p529
      %s532 = sadd.s32 %s531, 1
      %p535 = scmp.eq.s32.totalorder %s37, 1
      %p536 = scmp.ne.s32.totalorder %s531, %s533
      %p537 = scmp.eq.s32.totalorder %s37, 0
      %p538 = por %p536, %p537
      %p539 = scmp.ne.s32.totalorder %s531, %s533
      %p540 = scmp.eq.s32.totalorder %s42, 1
      %p541 = por %p539, %p540
      %p542 = scmp.ne.s32.totalorder %s533, %s534
      %p543 = scmp.eq.s32.totalorder %s42, 0
      %p544 = por %p542, %p543
      %p545 = scmp.ne.s32.totalorder %s533, %s534
      %p546 = scmp.eq.s32.totalorder %s43, 1
      %p547 = por %p545, %p546
      %p549 = scmp.ne.s32.totalorder %s534, %s548
      %p550 = scmp.eq.s32.totalorder %s43, 0
      %p551 = por %p549, %p550
      %s553 = sadd.s32 %s552, 1
      %p556 = scmp.eq.s32.totalorder %s37, 1
      %p557 = scmp.ne.s32.totalorder %s552, %s554
      %p558 = scmp.eq.s32.totalorder %s37, 0
      %p559 = por %p557, %p558
      %p560 = scmp.ne.s32.totalorder %s552, %s554
      %p561 = scmp.eq.s32.totalorder %s42, 1
      %p562 = por %p560, %p561
      %p563 = scmp.ne.s32.totalorder %s554, %s555
      %p564 = scmp.eq.s32.totalorder %s42, 0
      %p565 = por %p563, %p564
      %p566 = scmp.ne.s32.totalorder %s554, %s555
      %p567 = scmp.eq.s32.totalorder %s43, 1
      %p568 = por %p566, %p567
      %p570 = scmp.ne.s32.totalorder %s555, %s569
      %p571 = scmp.eq.s32.totalorder %s43, 0
      %p572 = por %p570, %p571
      %s574 = sadd.s32 %s573, 1
      %p577 = scmp.eq.s32.totalorder %s37, 1
      %p578 = scmp.ne.s32.totalorder %s573, %s575
      %p579 = scmp.eq.s32.totalorder %s37, 0
      %p580 = por %p578, %p579
      %p581 = scmp.ne.s32.totalorder %s573, %s575
      %p582 = scmp.eq.s32.totalorder %s42, 1
      %p583 = por %p581, %p582
      %p584 = scmp.ne.s32.totalorder %s575, %s576
      %p585 = scmp.eq.s32.totalorder %s42, 0
      %p586 = por %p584, %p585
      %p587 = scmp.ne.s32.totalorder %s575, %s576
      %p588 = scmp.eq.s32.totalorder %s43, 1
      %p589 = por %p587, %p588
      %p591 = scmp.ne.s32.totalorder %s576, %s590
      %p592 = scmp.eq.s32.totalorder %s43, 0
      %p593 = por %p591, %p592
      %s595 = sadd.s32 %s594, 1
      %p598 = scmp.eq.s32.totalorder %s37, 1
      %p599 = scmp.ne.s32.totalorder %s594, %s596
      %p600 = scmp.eq.s32.totalorder %s37, 0
      %p601 = por %p599, %p600
      %p602 = scmp.ne.s32.totalorder %s594, %s596
      %p603 = scmp.eq.s32.totalorder %s42, 1
      %p604 = por %p602, %p603
      %p605 = scmp.ne.s32.totalorder %s596, %s597
      %p606 = scmp.eq.s32.totalorder %s42, 0
      %p607 = por %p605, %p606
      %p608 = scmp.ne.s32.totalorder %s596, %s597
      %p609 = scmp.eq.s32.totalorder %s43, 1
      %p610 = por %p608, %p609
      %p612 = scmp.ne.s32.totalorder %s597, %s611
      %p613 = scmp.eq.s32.totalorder %s43, 0
      %p614 = por %p612, %p613
      %s616 = sadd.s32 %s615, 1
      %p619 = scmp.eq.s32.totalorder %s37, 1
      %p620 = scmp.ne.s32.totalorder %s615, %s617
      %p621 = scmp.eq.s32.totalorder %s37, 0
      %p622 = por %p620, %p621
      %p623 = scmp.ne.s32.totalorder %s615, %s617
      %p624 = scmp.eq.s32.totalorder %s42, 1
      %p625 = por %p623, %p624
      %p626 = scmp.ne.s32.totalorder %s617, %s618
      %p627 = scmp.eq.s32.totalorder %s42, 0
      %p628 = por %p626, %p627
      %p629 = scmp.ne.s32.totalorder %s617, %s618
      %p630 = scmp.eq.s32.totalorder %s43, 1
      %p631 = por %p629, %p630
      %p633 = scmp.ne.s32.totalorder %s618, %s632
      %p634 = scmp.eq.s32.totalorder %s43, 0
      %p635 = por %p633, %p634
      %s637 = sadd.s32 %s636, 1
      %p640 = scmp.eq.s32.totalorder %s37, 1
      %p641 = scmp.ne.s32.totalorder %s636, %s638
      %p642 = scmp.eq.s32.totalorder %s37, 0
      %p643 = por %p641, %p642
      %p644 = scmp.ne.s32.totalorder %s636, %s638
      %p645 = scmp.eq.s32.totalorder %s42, 1
      %p646 = por %p644, %p645
      %p647 = scmp.ne.s32.totalorder %s638, %s639
      %p648 = scmp.eq.s32.totalorder %s42, 0
      %p649 = por %p647, %p648
      %p650 = scmp.ne.s32.totalorder %s638, %s639
      %p651 = scmp.eq.s32.totalorder %s43, 1
      %p652 = por %p650, %p651
      %p654 = scmp.ne.s32.totalorder %s639, %s653
      %p655 = scmp.eq.s32.totalorder %s43, 0
      %p656 = por %p654, %p655
      %p657 = scmp.le.s32.totalorder 1, %s37
      %p658 = scmp.lt.s32.totalorder %s37, 3
      %p659 = pnand %p657, %p658
      %p660 = pneg %p659
      // Predicated region
      $region9: #{model_forward.1} parent=5 // pred_check
        _
      $region10: #{model_forward.1} parent=5 // pred_check_branch
        %662 = sbr.rel (%p659) target = $region12
      $region11: #{model_forward.1} parent=5 // pred_region
        %s663 = ssub.s32 %s37, 1
        // Predicated region
        $region13: #{model_forward.1} parent=11 // pred_check
          %p664 = pneg %p58
        $region14: #{model_forward.1} parent=11 // pred_check_branch
          %666 = sbr.rel (%p664) target = $region16
        $region15: #{model_forward.1} parent=11 // pred_region
          %s668 = ssub.s32 128, 128
          %669 = vsyncadd [#allocation7], %s668
          %s670 = sshll.u32 [#allocation6], 4
          %s671 = int_to_ptr.vmem [resolvable:$true] %s670
          %676 = dma.hbm_to_vmem [thread:$0]  %s0, 128, %s671, [#allocation7], 64, 64, 4
        $region16: #{model_forward.1} parent=11 // pred_fallthru
          _
        // Predicated region
        $region17: #{model_forward.1} parent=11 // pred_check
          %p677 = pneg %p79
        $region18: #{model_forward.1} parent=11 // pred_check_branch
          %679 = sbr.rel (%p677) target = $region20
        $region19: #{model_forward.1} parent=11 // pred_region
          %s681 = ssub.s32 128, 128
          %682 = vsyncadd [#allocation10], %s681
          %s683 = sshll.u32 [#allocation9], 4
          %s684 = int_to_ptr.vmem [resolvable:$true] %s683
          %689 = dma.hbm_to_vmem [thread:$0]  %s1, 128, %s684, [#allocation10], 64, 64, 4
        $region20: #{model_forward.1} parent=11 // pred_fallthru
          _
        // Predicated region
        $region21: #{model_forward.1} parent=11 // pred_check
          %p690 = pneg %p100
        $region22: #{model_forward.1} parent=11 // pred_check_branch
          %692 = sbr.rel (%p690) target = $region24
        $region23: #{model_forward.1} parent=11 // pred_region
          %s694 = ssub.s32 256, 256
          %695 = vsyncadd [#allocation10], %s694
          %s696 = sshll.u32 [#allocation11], 4
          %s697 = int_to_ptr.vmem [resolvable:$true] %s696
          %702 = dma.hbm_to_vmem [thread:$0]  %s2, 256, %s697, [#allocation10], 128, 128, 8
        $region24: #{model_forward.1} parent=11 // pred_fallthru
          _
        // Predicated region
        $region25: #{model_forward.1} parent=11 // pred_check
          %p703 = pneg %p121
        $region26: #{model_forward.1} parent=11 // pred_check_branch
          %705 = sbr.rel (%p703) target = $region28
        $region27: #{model_forward.1} parent=11 // pred_region
          %s707 = ssub.s32 256, 256
          %708 = vsyncadd [#allocation13], %s707
          %s709 = sshll.u32 [#allocation12], 4
          %s710 = int_to_ptr.vmem [resolvable:$true] %s709
          %715 = dma.hbm_to_vmem [thread:$0]  %s3, 256, %s710, [#allocation13], 128, 128, 8
        $region28: #{model_forward.1} parent=11 // pred_fallthru
          _
        // Predicated region
        $region29: #{model_forward.1} parent=11 // pred_check
          %p716 = pneg %p142
        $region30: #{model_forward.1} parent=11 // pred_check_branch
          %718 = sbr.rel (%p716) target = $region32
        $region31: #{model_forward.1} parent=11 // pred_region
          %s720 = ssub.s32 16, 16
          %721 = vsyncadd [#allocation13], %s720
          %s723 = sshll.u32 [#allocation14], 4
          %s724 = int_to_ptr.vmem [resolvable:$true] %s723
          %726 = dma.hbm_to_vmem [thread:$0]  %s4, 16, %s724, [#allocation13]
        $region32: #{model_forward.1} parent=11 // pred_fallthru
          _
        // Predicated region
        $region33: #{model_forward.1} parent=11 // pred_check
          %p727 = pneg %p163
        $region34: #{model_forward.1} parent=11 // pred_check_branch
          %729 = sbr.rel (%p727) target = $region36
        $region35: #{model_forward.1} parent=11 // pred_region
          _
        $region36: #{model_forward.1} parent=11 // pred_fallthru
          _
        // Predicated region
        $region37: #{model_forward.1} parent=11 // pred_check
          %p730 = pneg %p184
        $region38: #{model_forward.1} parent=11 // pred_check_branch
          %732 = sbr.rel (%p730) target = $region40
        $region39: #{model_forward.1} parent=11 // pred_region
          %s734 = ssub.s32 16, 16
          %735 = vsyncadd [#allocation16], %s734
          %s737 = sshll.u32 [#allocation15], 4
          %s738 = int_to_ptr.vmem [resolvable:$true] %s737
          %740 = dma.hbm_to_vmem [thread:$0]  %s6, 16, %s738, [#allocation16]
        $region40: #{model_forward.1} parent=11 // pred_fallthru
          _
        // Predicated region
        $region41: #{model_forward.1} parent=11 // pred_check
          %p741 = pneg %p439
        $region42: #{model_forward.1} parent=11 // pred_check_branch
          %743 = sbr.rel (%p741) target = $region44
        $region43: #{model_forward.1} parent=11 // pred_region
          _
        $region44: #{model_forward.1} parent=11 // pred_fallthru
          _
        // Predicated region
        $region45: #{model_forward.1} parent=11 // pred_check
          %p744 = pneg %p460
        $region46: #{model_forward.1} parent=11 // pred_check_branch
          %746 = sbr.rel (%p744) target = $region48
        $region47: #{model_forward.1} parent=11 // pred_region
          %s748 = ssub.s32 16, 16
          %749 = vsyncadd [#allocation10], %s748
          %s751 = sshll.u32 [#allocation26], 4
          %s752 = int_to_ptr.vmem [resolvable:$true] %s751
          %754 = dma.hbm_to_vmem [thread:$0]  %s17, 16, %s752, [#allocation10]
        $region48: #{model_forward.1} parent=11 // pred_fallthru
          _
        // Predicated region
        $region49: #{model_forward.1} parent=11 // pred_check
          %p755 = pneg %p481
        $region50: #{model_forward.1} parent=11 // pred_check_branch
          %757 = sbr.rel (%p755) target = $region52
        $region51: #{model_forward.1} parent=11 // pred_region
          _
        $region52: #{model_forward.1} parent=11 // pred_fallthru
          _
        // Predicated region
        $region53: #{model_forward.1} parent=11 // pred_check
          %p758 = pneg %p502
        $region54: #{model_forward.1} parent=11 // pred_check_branch
          %760 = sbr.rel (%p758) target = $region56
        $region55: #{model_forward.1} parent=11 // pred_region
          _
        $region56: #{model_forward.1} parent=11 // pred_fallthru
          _
        // Predicated region
        $region57: #{model_forward.1} parent=11 // pred_check
          %p761 = pneg %p523
        $region58: #{model_forward.1} parent=11 // pred_check_branch
          %763 = sbr.rel (%p761) target = $region60
        $region59: #{model_forward.1} parent=11 // pred_region
          _
        $region60: #{model_forward.1} parent=11 // pred_fallthru
          _
        // Predicated region
        $region61: #{model_forward.1} parent=11 // pred_check
          %p764 = pneg %p544
        $region62: #{model_forward.1} parent=11 // pred_check_branch
          %766 = sbr.rel (%p764) target = $region64
        $region63: #{model_forward.1} parent=11 // pred_region
          _
        $region64: #{model_forward.1} parent=11 // pred_fallthru
          _
        // Predicated region
        $region65: #{model_forward.1} parent=11 // pred_check
          %p767 = pneg %p565
        $region66: #{model_forward.1} parent=11 // pred_check_branch
          %769 = sbr.rel (%p767) target = $region68
        $region67: #{model_forward.1} parent=11 // pred_region
          _
        $region68: #{model_forward.1} parent=11 // pred_fallthru
          _
        // Predicated region
        $region69: #{model_forward.1} parent=11 // pred_check
          %p770 = pneg %p586
        $region70: #{model_forward.1} parent=11 // pred_check_branch
          %772 = sbr.rel (%p770) target = $region72
        $region71: #{model_forward.1} parent=11 // pred_region
          _
        $region72: #{model_forward.1} parent=11 // pred_fallthru
          _
        // Predicated region
        $region73: #{model_forward.1} parent=11 // pred_check
          %p773 = pneg %p607
        $region74: #{model_forward.1} parent=11 // pred_check_branch
          %775 = sbr.rel (%p773) target = $region76
        $region75: #{model_forward.1} parent=11 // pred_region
          _
        $region76: #{model_forward.1} parent=11 // pred_fallthru
          _
        // Predicated region
        $region77: #{model_forward.1} parent=11 // pred_check
          %p776 = pneg %p628
        $region78: #{model_forward.1} parent=11 // pred_check_branch
          %778 = sbr.rel (%p776) target = $region80
        $region79: #{model_forward.1} parent=11 // pred_region
          _
        $region80: #{model_forward.1} parent=11 // pred_fallthru
          _
      $region12: #{model_forward.1} parent=5 // pred_fallthru
        _
      %p779 = scmp.lt.s32.totalorder %s37, 2
      // Predicated region
      $region81: #{model_forward.1} parent=5 // pred_check
        %p780 = pneg %p779
      $region82: #{model_forward.1} parent=5 // pred_check_branch
        %782 = sbr.rel (%p780) target = $region84
      $region83: #{model_forward.1} parent=5 // pred_region
        // Predicated region
        $region85: #{model_forward.1} parent=83 // pred_check
          %p783 = pneg %p204
        $region86: #{model_forward.1} parent=83 // pred_check_branch
          %785 = sbr.rel (%p783) target = $region88
        $region87: #{model_forward.1} parent=83 // pred_region
          %s786 = sand.u32 %s37, 1
          %s787 = scalar_lea.sflag [#allocation7], %s786
          %s788 = sand.u32 %s194, 1
          %s789 = smul.addr %s788, 32
          %s790 = scalar_lea.vmem [#allocation17], %s789
          %s792 = ssub.s32 512, 512
          %793 = vsyncadd %s787, %s792
          %s794 = smul.addr %s37, 4
          %s795 = smul.addr %s794, 128
          %s796 = scalar_lea.hbm %s7, %s795
          %s797 = sshll.u32 %s790, 4
          %s798 = int_to_ptr.vmem [resolvable:$true] %s797
          %803 = dma.hbm_to_vmem [thread:$0]  %s796, 512, %s798, %s787, 128, 128, 8
        $region88: #{model_forward.1} parent=83 // pred_fallthru
          _
        // Predicated region
        $region89: #{model_forward.1} parent=83 // pred_check
          %p804 = pneg %p230
        $region90: #{model_forward.1} parent=83 // pred_check_branch
          %806 = sbr.rel (%p804) target = $region92
        $region91: #{model_forward.1} parent=83 // pred_region
          %s807 = sand.u32 %s37, 1
          %s808 = scalar_lea.sflag [#allocation7], %s807
          %s809 = sand.u32 %s220, 1
          %s810 = scalar_lea.vmem [#allocation18], %s809
          %s812 = ssub.s32 16, 16
          %813 = vsyncadd %s808, %s812
          %s814 = smul.addr %s37, 16
          %s815 = scalar_lea.hbm %s8, %s814
          %s817 = sshll.u32 %s810, 4
          %s818 = int_to_ptr.vmem [resolvable:$true] %s817
          %820 = dma.hbm_to_vmem [thread:$0]  %s815, 16, %s818, %s808
        $region92: #{model_forward.1} parent=83 // pred_fallthru
          _
        // Predicated region
        $region93: #{model_forward.1} parent=83 // pred_check
          %p821 = pneg %p256
        $region94: #{model_forward.1} parent=83 // pred_check_branch
          %823 = sbr.rel (%p821) target = $region96
        $region95: #{model_forward.1} parent=83 // pred_region
          %s824 = sand.u32 %s37, 1
          %s825 = scalar_lea.sflag [#allocation7], %s824
          %s826 = sand.u32 %s246, 1
          %s827 = smul.addr %s826, 32
          %s828 = scalar_lea.vmem [#allocation19], %s827
          %s830 = ssub.s32 512, 512
          %831 = vsyncadd %s825, %s830
          %s832 = smul.addr %s37, 4
          %s833 = smul.addr %s832, 128
          %s834 = scalar_lea.hbm %s9, %s833
          %s835 = sshll.u32 %s828, 4
          %s836 = int_to_ptr.vmem [resolvable:$true] %s835
          %841 = dma.hbm_to_vmem [thread:$0]  %s834, 512, %s836, %s825, 128, 128, 8
        $region96: #{model_forward.1} parent=83 // pred_fallthru
          _
        // Predicated region
        $region97: #{model_forward.1} parent=83 // pred_check
          %p842 = pneg %p282
        $region98: #{model_forward.1} parent=83 // pred_check_branch
          %844 = sbr.rel (%p842) target = $region100
        $region99: #{model_forward.1} parent=83 // pred_region
          %s845 = sand.u32 %s37, 1
          %s846 = scalar_lea.sflag [#allocation7], %s845
          %s847 = sand.u32 %s272, 1
          %s848 = scalar_lea.vmem [#allocation20], %s847
          %s850 = ssub.s32 16, 16
          %851 = vsyncadd %s846, %s850
          %s852 = smul.addr %s37, 16
          %s853 = scalar_lea.hbm %s10, %s852
          %s855 = sshll.u32 %s848, 4
          %s856 = int_to_ptr.vmem [resolvable:$true] %s855
          %858 = dma.hbm_to_vmem [thread:$0]  %s853, 16, %s856, %s846
        $region100: #{model_forward.1} parent=83 // pred_fallthru
          _
        // Predicated region
        $region101: #{model_forward.1} parent=83 // pred_check
          %p859 = pneg %p308
        $region102: #{model_forward.1} parent=83 // pred_check_branch
          %861 = sbr.rel (%p859) target = $region104
        $region103: #{model_forward.1} parent=83 // pred_region
          %s862 = sand.u32 %s37, 1
          %s863 = scalar_lea.sflag [#allocation7], %s862
          %s864 = sand.u32 %s298, 1
          %s865 = smul.addr %s864, 32
          %s866 = scalar_lea.vmem [#allocation21], %s865
          %s868 = ssub.s32 512, 512
          %869 = vsyncadd %s863, %s868
          %s870 = smul.addr %s37, 4
          %s871 = smul.addr %s870, 128
          %s872 = scalar_lea.hbm %s11, %s871
          %s873 = sshll.u32 %s866, 4
          %s874 = int_to_ptr.vmem [resolvable:$true] %s873
          %879 = dma.hbm_to_vmem [thread:$0]  %s872, 512, %s874, %s863, 128, 128, 8
        $region104: #{model_forward.1} parent=83 // pred_fallthru
          _
        // Predicated region
        $region105: #{model_forward.1} parent=83 // pred_check
          %p880 = pneg %p334
        $region106: #{model_forward.1} parent=83 // pred_check_branch
          %882 = sbr.rel (%p880) target = $region108
        $region107: #{model_forward.1} parent=83 // pred_region
          %s883 = sand.u32 %s37, 1
          %s884 = scalar_lea.sflag [#allocation7], %s883
          %s885 = sand.u32 %s324, 1
          %s886 = scalar_lea.vmem [#allocation22], %s885
          %s888 = ssub.s32 16, 16
          %889 = vsyncadd %s884, %s888
          %s890 = smul.addr %s37, 16
          %s891 = scalar_lea.hbm %s12, %s890
          %s893 = sshll.u32 %s886, 4
          %s894 = int_to_ptr.vmem [resolvable:$true] %s893
          %896 = dma.hbm_to_vmem [thread:$0]  %s891, 16, %s894, %s884
        $region108: #{model_forward.1} parent=83 // pred_fallthru
          _
        // Predicated region
        $region109: #{model_forward.1} parent=83 // pred_check
          %p897 = pneg %p360
        $region110: #{model_forward.1} parent=83 // pred_check_branch
          %899 = sbr.rel (%p897) target = $region112
        $region111: #{model_forward.1} parent=83 // pred_region
          %s900 = sand.u32 %s37, 1
          %s901 = scalar_lea.sflag [#allocation7], %s900
          %s902 = sand.u32 %s350, 1
          %s903 = smul.addr %s902, 64
          %s904 = scalar_lea.vmem [#allocation23], %s903
          %s906 = ssub.s32 1024, 1024
          %907 = vsyncadd %s901, %s906
          %s908 = smul.addr %s37, 8
          %s909 = smul.addr %s908, 128
          %s910 = scalar_lea.hbm %s13, %s909
          %s911 = sshll.u32 %s904, 4
          %s912 = int_to_ptr.vmem [resolvable:$true] %s911
          %917 = dma.hbm_to_vmem [thread:$0]  %s910, 1024, %s912, %s901, 128, 128, 8
        $region112: #{model_forward.1} parent=83 // pred_fallthru
          _
        // Predicated region
        $region113: #{model_forward.1} parent=83 // pred_check
          %p918 = pneg %p386
        $region114: #{model_forward.1} parent=83 // pred_check_branch
          %920 = sbr.rel (%p918) target = $region116
        $region115: #{model_forward.1} parent=83 // pred_region
          %s921 = sand.u32 %s37, 1
          %s922 = scalar_lea.sflag [#allocation7], %s921
          %s923 = sand.u32 %s376, 1
          %s924 = scalar_lea.vmem [#allocation24], %s923
          %s926 = ssub.s32 16, 16
          %927 = vsyncadd %s922, %s926
          %s928 = smul.addr %s37, 16
          %s929 = scalar_lea.hbm %s14, %s928
          %s931 = sshll.u32 %s924, 4
          %s932 = int_to_ptr.vmem [resolvable:$true] %s931
          %934 = dma.hbm_to_vmem [thread:$0]  %s929, 16, %s932, %s922
        $region116: #{model_forward.1} parent=83 // pred_fallthru
          _
        // Predicated region
        $region117: #{model_forward.1} parent=83 // pred_check
          %p935 = pneg %p412
        $region118: #{model_forward.1} parent=83 // pred_check_branch
          %937 = sbr.rel (%p935) target = $region120
        $region119: #{model_forward.1} parent=83 // pred_region
          %s938 = sand.u32 %s37, 1
          %s939 = scalar_lea.sflag [#allocation7], %s938
          %s940 = sand.u32 %s402, 1
          %s941 = smul.addr %s940, 4
          %s942 = scalar_lea.vmem [#allocation25], %s941
          %s944 = ssub.s32 64, 64
          %945 = vsyncadd %s939, %s944
          %s946 = smul.addr %s37, 64
          %s947 = scalar_lea.hbm %s15, %s946
          %s949 = sshll.u32 %s942, 4
          %s950 = int_to_ptr.vmem [resolvable:$true] %s949
          %952 = dma.hbm_to_vmem [thread:$0]  %s947, 64, %s950, %s939
        $region120: #{model_forward.1} parent=83 // pred_fallthru
          _
      $region84: #{model_forward.1} parent=5 // pred_fallthru
        _
      %p953 = scmp.le.s32.totalorder 1, %s37
      %p954 = scmp.lt.s32.totalorder %s37, 3
      %p955 = pnand %p953, %p954
      %p956 = pneg %p955
      // Predicated region
      $region121: #{model_forward.1} parent=5 // pred_check
        _
      $region122: #{model_forward.1} parent=5 // pred_check_branch
        %958 = sbr.rel (%p955) target = $region124
      $region123: #{model_forward.1} parent=5 // pred_region
        %s959 = ssub.s32 %s37, 1
        // Predicated region
        $region125: #{model_forward.1} parent=123 // pred_check
          %p960 = pneg %p58
        $region126: #{model_forward.1} parent=123 // pred_check_branch
          %962 = sbr.rel (%p960) target = $region128
        $region127: #{model_forward.1} parent=123 // pred_region
          %963 = dma.done [#allocation7], 128
        $region128: #{model_forward.1} parent=123 // pred_fallthru
          _
        // Predicated region
        $region129: #{model_forward.1} parent=123 // pred_check
          %p964 = pneg %p79
        $region130: #{model_forward.1} parent=123 // pred_check_branch
          %966 = sbr.rel (%p964) target = $region132
        $region131: #{model_forward.1} parent=123 // pred_region
          %967 = dma.done [#allocation10], 128
        $region132: #{model_forward.1} parent=123 // pred_fallthru
          _
        // Predicated region
        $region133: #{model_forward.1} parent=123 // pred_check
          %p968 = pneg %p100
        $region134: #{model_forward.1} parent=123 // pred_check_branch
          %970 = sbr.rel (%p968) target = $region136
        $region135: #{model_forward.1} parent=123 // pred_region
          %971 = dma.done [#allocation10], 256
        $region136: #{model_forward.1} parent=123 // pred_fallthru
          _
        // Predicated region
        $region137: #{model_forward.1} parent=123 // pred_check
          %p972 = pneg %p121
        $region138: #{model_forward.1} parent=123 // pred_check_branch
          %974 = sbr.rel (%p972) target = $region140
        $region139: #{model_forward.1} parent=123 // pred_region
          %975 = dma.done [#allocation13], 256
        $region140: #{model_forward.1} parent=123 // pred_fallthru
          _
        // Predicated region
        $region141: #{model_forward.1} parent=123 // pred_check
          %p976 = pneg %p142
        $region142: #{model_forward.1} parent=123 // pred_check_branch
          %978 = sbr.rel (%p976) target = $region144
        $region143: #{model_forward.1} parent=123 // pred_region
          %979 = dma.done [#allocation13], 16
        $region144: #{model_forward.1} parent=123 // pred_fallthru
          _
        // Predicated region
        $region145: #{model_forward.1} parent=123 // pred_check
          %p980 = pneg %p184
        $region146: #{model_forward.1} parent=123 // pred_check_branch
          %982 = sbr.rel (%p980) target = $region148
        $region147: #{model_forward.1} parent=123 // pred_region
          %983 = dma.done [#allocation16], 16
        $region148: #{model_forward.1} parent=123 // pred_fallthru
          _
        %s984 = sand.u32 %s42, 1
        %s985 = scalar_lea.sflag [#allocation7], %s984
        %s986 = sand.u32 %s197, 1
        %s987 = smul.addr %s986, 32
        %s988 = scalar_lea.vmem [#allocation17], %s987
        // Predicated region
        $region149: #{model_forward.1} parent=123 // pred_check
          %p989 = pneg %p210
        $region150: #{model_forward.1} parent=123 // pred_check_branch
          %991 = sbr.rel (%p989) target = $region152
        $region151: #{model_forward.1} parent=123 // pred_region
          %992 = dma.done %s985, 512
        $region152: #{model_forward.1} parent=123 // pred_fallthru
          _
        %s993 = sand.u32 %s42, 1
        %s994 = scalar_lea.sflag [#allocation7], %s993
        %s995 = sand.u32 %s223, 1
        %s996 = scalar_lea.vmem [#allocation18], %s995
        // Predicated region
        $region153: #{model_forward.1} parent=123 // pred_check
          %p997 = pneg %p236
        $region154: #{model_forward.1} parent=123 // pred_check_branch
          %999 = sbr.rel (%p997) target = $region156
        $region155: #{model_forward.1} parent=123 // pred_region
          %1000 = dma.done %s994, 16
        $region156: #{model_forward.1} parent=123 // pred_fallthru
          _
        %s1001 = sand.u32 %s42, 1
        %s1002 = scalar_lea.sflag [#allocation7], %s1001
        %s1003 = sand.u32 %s249, 1
        %s1004 = smul.addr %s1003, 32
        %s1005 = scalar_lea.vmem [#allocation19], %s1004
        // Predicated region
        $region157: #{model_forward.1} parent=123 // pred_check
          %p1006 = pneg %p262
        $region158: #{model_forward.1} parent=123 // pred_check_branch
          %1008 = sbr.rel (%p1006) target = $region160
        $region159: #{model_forward.1} parent=123 // pred_region
          %1009 = dma.done %s1002, 512
        $region160: #{model_forward.1} parent=123 // pred_fallthru
          _
        %s1010 = sand.u32 %s42, 1
        %s1011 = scalar_lea.sflag [#allocation7], %s1010
        %s1012 = sand.u32 %s275, 1
        %s1013 = scalar_lea.vmem [#allocation20], %s1012
        // Predicated region
        $region161: #{model_forward.1} parent=123 // pred_check
          %p1014 = pneg %p288
        $region162: #{model_forward.1} parent=123 // pred_check_branch
          %1016 = sbr.rel (%p1014) target = $region164
        $region163: #{model_forward.1} parent=123 // pred_region
          %1017 = dma.done %s1011, 16
        $region164: #{model_forward.1} parent=123 // pred_fallthru
          _
        %s1018 = sand.u32 %s42, 1
        %s1019 = scalar_lea.sflag [#allocation7], %s1018
        %s1020 = sand.u32 %s301, 1
        %s1021 = smul.addr %s1020, 32
        %s1022 = scalar_lea.vmem [#allocation21], %s1021
        // Predicated region
        $region165: #{model_forward.1} parent=123 // pred_check
          %p1023 = pneg %p314
        $region166: #{model_forward.1} parent=123 // pred_check_branch
          %1025 = sbr.rel (%p1023) target = $region168
        $region167: #{model_forward.1} parent=123 // pred_region
          %1026 = dma.done %s1019, 512
        $region168: #{model_forward.1} parent=123 // pred_fallthru
          _
        %s1027 = sand.u32 %s42, 1
        %s1028 = scalar_lea.sflag [#allocation7], %s1027
        %s1029 = sand.u32 %s327, 1
        %s1030 = scalar_lea.vmem [#allocation22], %s1029
        // Predicated region
        $region169: #{model_forward.1} parent=123 // pred_check
          %p1031 = pneg %p340
        $region170: #{model_forward.1} parent=123 // pred_check_branch
          %1033 = sbr.rel (%p1031) target = $region172
        $region171: #{model_forward.1} parent=123 // pred_region
          %1034 = dma.done %s1028, 16
        $region172: #{model_forward.1} parent=123 // pred_fallthru
          _
        %s1035 = sand.u32 %s42, 1
        %s1036 = scalar_lea.sflag [#allocation7], %s1035
        %s1037 = sand.u32 %s353, 1
        %s1038 = smul.addr %s1037, 64
        %s1039 = scalar_lea.vmem [#allocation23], %s1038
        // Predicated region
        $region173: #{model_forward.1} parent=123 // pred_check
          %p1040 = pneg %p366
        $region174: #{model_forward.1} parent=123 // pred_check_branch
          %1042 = sbr.rel (%p1040) target = $region176
        $region175: #{model_forward.1} parent=123 // pred_region
          %1043 = dma.done %s1036, 1024
        $region176: #{model_forward.1} parent=123 // pred_fallthru
          _
        %s1044 = sand.u32 %s42, 1
        %s1045 = scalar_lea.sflag [#allocation7], %s1044
        %s1046 = sand.u32 %s379, 1
        %s1047 = scalar_lea.vmem [#allocation24], %s1046
        // Predicated region
        $region177: #{model_forward.1} parent=123 // pred_check
          %p1048 = pneg %p392
        $region178: #{model_forward.1} parent=123 // pred_check_branch
          %1050 = sbr.rel (%p1048) target = $region180
        $region179: #{model_forward.1} parent=123 // pred_region
          %1051 = dma.done %s1045, 16
        $region180: #{model_forward.1} parent=123 // pred_fallthru
          _
        %s1052 = sand.u32 %s42, 1
        %s1053 = scalar_lea.sflag [#allocation7], %s1052
        %s1054 = sand.u32 %s405, 1
        %s1055 = smul.addr %s1054, 4
        %s1056 = scalar_lea.vmem [#allocation25], %s1055
        // Predicated region
        $region181: #{model_forward.1} parent=123 // pred_check
          %p1057 = pneg %p418
        $region182: #{model_forward.1} parent=123 // pred_check_branch
          %1059 = sbr.rel (%p1057) target = $region184
        $region183: #{model_forward.1} parent=123 // pred_region
          %1060 = dma.done %s1053, 64
        $region184: #{model_forward.1} parent=123 // pred_fallthru
          _
        // Predicated region
        $region185: #{model_forward.1} parent=123 // pred_check
          %p1061 = pneg %p460
        $region186: #{model_forward.1} parent=123 // pred_check_branch
          %1063 = sbr.rel (%p1061) target = $region188
        $region187: #{model_forward.1} parent=123 // pred_region
          %1064 = dma.done [#allocation10], 16
        $region188: #{model_forward.1} parent=123 // pred_fallthru
          _
        %p1065 = pneg %p58
        %p1066 = pneg %p55
        %p1067 = pneg %p79
        %p1068 = pneg %p76
        %p1069 = pneg %p100
        %p1070 = pneg %p97
        %p1071 = pneg %p121
        %p1072 = pneg %p118
        %p1073 = pneg %p142
        %p1074 = pneg %p139
        %p1075 = pneg %p163
        %p1076 = pneg %p160
        %p1077 = pneg %p184
        %p1078 = pneg %p181
        %s1079 = sand.u32 %s42, 1
        %s1080 = scalar_lea.sflag [#allocation7], %s1079
        %s1081 = sand.u32 %s197, 1
        %s1082 = smul.addr %s1081, 32
        %s1083 = scalar_lea.vmem [#allocation17], %s1082
        %p1084 = pneg %p210
        %p1085 = pneg %p207
        %s1086 = sand.u32 %s42, 1
        %s1087 = scalar_lea.sflag [#allocation7], %s1086
        %s1088 = sand.u32 %s223, 1
        %s1089 = scalar_lea.vmem [#allocation18], %s1088
        %p1090 = pneg %p236
        %p1091 = pneg %p233
        %s1092 = sand.u32 %s42, 1
        %s1093 = scalar_lea.sflag [#allocation7], %s1092
        %s1094 = sand.u32 %s249, 1
        %s1095 = smul.addr %s1094, 32
        %s1096 = scalar_lea.vmem [#allocation19], %s1095
        %p1097 = pneg %p262
        %p1098 = pneg %p259
        %s1099 = sand.u32 %s42, 1
        %s1100 = scalar_lea.sflag [#allocation7], %s1099
        %s1101 = sand.u32 %s275, 1
        %s1102 = scalar_lea.vmem [#allocation20], %s1101
        %p1103 = pneg %p288
        %p1104 = pneg %p285
        %s1105 = sand.u32 %s42, 1
        %s1106 = scalar_lea.sflag [#allocation7], %s1105
        %s1107 = sand.u32 %s301, 1
        %s1108 = smul.addr %s1107, 32
        %s1109 = scalar_lea.vmem [#allocation21], %s1108
        %p1110 = pneg %p314
        %p1111 = pneg %p311
        %s1112 = sand.u32 %s42, 1
        %s1113 = scalar_lea.sflag [#allocation7], %s1112
        %s1114 = sand.u32 %s327, 1
        %s1115 = scalar_lea.vmem [#allocation22], %s1114
        %p1116 = pneg %p340
        %p1117 = pneg %p337
        %s1118 = sand.u32 %s42, 1
        %s1119 = scalar_lea.sflag [#allocation7], %s1118
        %s1120 = sand.u32 %s353, 1
        %s1121 = smul.addr %s1120, 64
        %s1122 = scalar_lea.vmem [#allocation23], %s1121
        %p1123 = pneg %p366
        %p1124 = pneg %p363
        %s1125 = sand.u32 %s42, 1
        %s1126 = scalar_lea.sflag [#allocation7], %s1125
        %s1127 = sand.u32 %s379, 1
        %s1128 = scalar_lea.vmem [#allocation24], %s1127
        %p1129 = pneg %p392
        %p1130 = pneg %p389
        %s1131 = sand.u32 %s42, 1
        %s1132 = scalar_lea.sflag [#allocation7], %s1131
        %s1133 = sand.u32 %s405, 1
        %s1134 = smul.addr %s1133, 4
        %s1135 = scalar_lea.vmem [#allocation25], %s1134
        %p1136 = pneg %p418
        %p1137 = pneg %p415
        %p1138 = pneg %p439
        %p1139 = pneg %p436
        %p1140 = pneg %p460
        %p1141 = pneg %p457
        %p1142 = pneg %p481
        %p1143 = pneg %p478
        %p1144 = pneg %p502
        %p1145 = pneg %p499
        %p1146 = pneg %p523
        %p1147 = pneg %p520
        %p1148 = pneg %p544
        %p1149 = pneg %p541
        %p1150 = pneg %p565
        %p1151 = pneg %p562
        %p1152 = pneg %p586
        %p1153 = pneg %p583
        %p1154 = pneg %p607
        %p1155 = pneg %p604
        %p1156 = pneg %p628
        %p1157 = pneg %p625
        %p1158 = pneg %p649
        %p1159 = pneg %p646
        %p1160 = scmp.eq.s32.totalorder %s42, 0
        // Predicated region
        $region189: #{model_forward.1} parent=123 // pred_check
          %p1161 = pneg %p1160
        $region190: #{model_forward.1} parent=123 // pred_check_branch
          %1163 = sbr.rel (%p1161) target = $region192
        $region191: #{model_forward.1} parent=123 // pred_region
          %v1164 = vld [vmem:[#allocation6] sm:$0xf]
          %v1165 = vld [vmem:[#allocation6 + $0x4] sm:$0xf]
          %v1168 = vcombine.low %v1164, %v1165
          %vm1170 = vcmask 130048
          %v1171 = vsel %vm1170, %v1168, 0.0
          %1172 = vadd.xlane.f32.xlu0 %v1171
          %v1173 = vpop.xlane.xlu0 %1172
          %v1174 = vrcp.pop 16.0
          %v1175 = vmul.f32 %v1173, %v1174
          %v1178 = vunpack.c.l.s4 839922192
          %v1179 = vunpack.c.0.s8 %v1178
          %v1180 = vlaneseq
          %v1181 = vshrl.u32 %v1180, 7
          %v1182 = vsub.s32 %v1179, %v1181
          %v1183 = vrot.slane %v1175, %v1182
          %v1185 = vunpack.c.l.s4 1985246804
          %v1186 = vunpack.c.0.s8 %v1185
          %v1187 = vlaneseq
          %v1188 = vshrl.u32 %v1187, 7
          %v1189 = vsub.s32 %v1186, %v1188
          %v1190 = vrot.slane %v1175, %v1189
          %v1193 = vsub.f32 %v1164, %v1183
          %v1194 = vsub.f32 %v1165, %v1190
          %v1195 = vmul.f32 %v1193, %v1193
          %v1196 = vmul.f32 %v1194, %v1194
          %v1199 = vcombine.low %v1195, %v1196
          %v1201 = vsel %vm1170, %v1199, 0.0
          %1202 = vadd.xlane.f32.xlu0 %v1201
          %v1203 = vpop.xlane.xlu0 %1202
          %v1204 = vmul.f32 %v1203, %v1174
          %v1205 = vadd.f32 %v1204, 1e-05
          %v1206 = vrsqrt.pop %v1205
          %v1207 = vmul.f32 %v1205, %v1206
          %vm1208 = vcmp.eq.f32.partialorder %v1205, inf
          %v1209 = vsel %vm1208, %v1205, %v1207
          %vm1210 = vcmp.eq.f32.partialorder %v1205, 0.0
          %v1211 = vand.u32 %v1205, 2147483648
          %v1212 = vsel %vm1210, %v1211, %v1209
          %v1215 = vunpack.c.l.s4 839922192
          %v1216 = vunpack.c.0.s8 %v1215
          %v1217 = vlaneseq
          %v1218 = vshrl.u32 %v1217, 7
          %v1219 = vsub.s32 %v1216, %v1218
          %v1220 = vrot.slane %v1212, %v1219
          %v1222 = vunpack.c.l.s4 1985246804
          %v1223 = vunpack.c.0.s8 %v1222
          %v1224 = vlaneseq
          %v1225 = vshrl.u32 %v1224, 7
          %v1226 = vsub.s32 %v1223, %v1225
          %v1227 = vrot.slane %v1212, %v1226
          %v1230 = vrcp.pop %v1220
          %v1231 = vmul.f32 %v1193, %v1230
          %v1232 = vrcp.pop %v1227
          %v1233 = vmul.f32 %v1194, %v1232
          %v1234 = vld [vmem:[#allocation11] sm:$0xff]
          %v1235 = vld [vmem:[#allocation11 + $0x8] sm:$0xff]
          %v1238 = vcombine.low %v1231, %v1233
          %v1239 = vsel %vm1170, %v1238, 0
          %1241 = vmatprep.subr.mxu0 0.0
          %1242 = vmatpush1.msra.mxu0 0.0
          %1243 = vmatprep.subr.mxu0 0.0
          %1244 = vmatpush1.msra.mxu0 0.0
          %1245 = vmatprep.subr.mxu0 0.0
          %1246 = vmatpush1.msra.mxu0 0.0
          %1247 = vmatprep.subr.mxu0 0.0
          %1248 = vmatpush1.msra.mxu0 0.0
          %1249 = vmatprep.subr.mxu0 0.0
          %1250 = vmatpush1.msra.mxu0 0.0
          %1251 = vmatprep.subr.mxu0 0.0
          %1252 = vmatpush1.msra.mxu0 0.0
          %1253 = vmatprep.subr.mxu0 0.0
          %1254 = vmatpush1.msra.mxu0 0.0
          %1255 = vmatprep.subr.mxu0 0.0
          %1256 = vmatpush1.msra.mxu0 0.0
          %1257 = vmatprep.subr.mxu0 0.0
          %1258 = vmatpush1.msra.mxu0 0.0
          %1259 = vmatprep.subr.mxu0 0.0
          %1260 = vmatpush1.msra.mxu0 0.0
          %1261 = vmatprep.subr.mxu0 0.0
          %1262 = vmatpush1.msra.mxu0 0.0
          %1263 = vmatprep.subr.mxu0 0.0
          %1264 = vmatpush1.msra.mxu0 0.0
          %1265 = vmatprep.subr.mxu0 0.0
          %1266 = vmatpush1.msra.mxu0 0.0
          %1267 = vmatprep.subr.mxu0 0.0
          %1268 = vmatpush1.msra.mxu0 0.0
          %1269 = vmatprep.subr.mxu0 0.0
          %1270 = vmatpush1.msra.mxu0 %v1235
          %1271 = vmatprep.subr.mxu0 0.0
          %1272 = vmatpush1.msra.mxu0 %v1234
          %1273 = vmatprep.subr.mxu0 0.0
          %1274 = vmatpush2.msra.mxu0 0.0
          %1275 = vmatprep.subr.mxu0 0.0
          %1276 = vmatpush2.msra.mxu0 0.0
          %1277 = vmatprep.subr.mxu0 0.0
          %1278 = vmatpush2.msra.mxu0 0.0
          %1279 = vmatprep.subr.mxu0 0.0
          %1280 = vmatpush2.msra.mxu0 0.0
          %1281 = vmatprep.subr.mxu0 0.0
          %1282 = vmatpush2.msra.mxu0 0.0
          %1283 = vmatprep.subr.mxu0 0.0
          %1284 = vmatpush2.msra.mxu0 0.0
          %1285 = vmatprep.subr.mxu0 0.0
          %1286 = vmatpush2.msra.mxu0 0.0
          %1287 = vmatprep.subr.mxu0 0.0
          %1288 = vmatpush2.msra.mxu0 0.0
          %1289 = vmatprep.subr.mxu0 0.0
          %1290 = vmatpush2.msra.mxu0 0.0
          %1291 = vmatprep.subr.mxu0 0.0
          %1292 = vmatpush2.msra.mxu0 0.0
          %1293 = vmatprep.subr.mxu0 0.0
          %1294 = vmatpush2.msra.mxu0 0.0
          %1295 = vmatprep.subr.mxu0 0.0
          %1296 = vmatpush2.msra.mxu0 0.0
          %1297 = vmatprep.subr.mxu0 0.0
          %1298 = vmatpush2.msra.mxu0 0.0
          %1299 = vmatprep.subr.mxu0 0.0
          %1300 = vmatpush2.msra.mxu0 0.0
          %1301 = vmatprep.subr.mxu0 0.0
          %1302 = vmatpush2.msra.mxu0 0.0
          %1303 = vmatprep.subr.mxu0 0.0
          %1304 = vmatpush2.msra.mxu0 0.0
          %1305 = vmatprep.mubr.f32.mxu0 0.0
          %1306 = vmatmul.mubr.f32.gmra.mxu0 %v1239
          %v1307 = vpop.f32.mrf.mxu0
          %v1308 = vadd.f32 0.0, %v1307
          %v1309 = vpop.f32.mrf.mxu0
          %1310 = vdwg.mxu0
          %v1312 = vcombine.high %v1308, %v1308
          %v1314 = vsub.f32 %v1231, %v1308
          %v1315 = vsub.f32 %v1233, %v1312
          %v1316 = vld [vmem:[#allocation9] sm:$0xf]
          %v1317 = vld [vmem:[#allocation9 + $0x4] sm:$0xf]
          %v1318 = vld [vmem:[#allocation12] sm:$0xff]
          %v1319 = vld [vmem:[#allocation12 + $0x8] sm:$0xff]
          %v1320 = vld [vmem:[#allocation14] sm:$0x1]
          %v1321 = vld [vmem:[%s5] sm:$0xff]
          %v1322 = vld [vmem:[%s5 + $0x8] sm:$0xff]
          %v1323 = vld [vmem:[#allocation15] sm:$0x1]
          %v1325 = vlaneseq
          %v1326 = vshrl.u32 %v1325, 7
          %v1327 = vsub.s32 0, %v1326
          %v1328 = vrot.slane %v1320, %v1327
          %v1332 = vcombine.low %v1314, %v1315
          %v1333 = vsel %vm1170, %v1332, 0
          %1335 = vmatprep.subr.mxu0 0.0
          %1336 = vmatpush1.msra.mxu0 0.0
          %1337 = vmatprep.subr.mxu0 0.0
          %1338 = vmatpush1.msra.mxu0 0.0
          %1339 = vmatprep.subr.mxu0 0.0
          %1340 = vmatpush1.msra.mxu0 0.0
          %1341 = vmatprep.subr.mxu0 0.0
          %1342 = vmatpush1.msra.mxu0 0.0
          %1343 = vmatprep.subr.mxu0 0.0
          %1344 = vmatpush1.msra.mxu0 0.0
          %1345 = vmatprep.subr.mxu0 0.0
          %1346 = vmatpush1.msra.mxu0 0.0
          %1347 = vmatprep.subr.mxu0 0.0
          %1348 = vmatpush1.msra.mxu0 0.0
          %1349 = vmatprep.subr.mxu0 0.0
          %1350 = vmatpush1.msra.mxu0 0.0
          %1351 = vmatprep.subr.mxu0 0.0
          %1352 = vmatpush1.msra.mxu0 0.0
          %1353 = vmatprep.subr.mxu0 0.0
          %1354 = vmatpush1.msra.mxu0 0.0
          %1355 = vmatprep.subr.mxu0 0.0
          %1356 = vmatpush1.msra.mxu0 0.0
          %1357 = vmatprep.subr.mxu0 0.0
          %1358 = vmatpush1.msra.mxu0 0.0
          %1359 = vmatprep.subr.mxu0 0.0
          %1360 = vmatpush1.msra.mxu0 0.0
          %1361 = vmatprep.subr.mxu0 0.0
          %1362 = vmatpush1.msra.mxu0 0.0
          %1363 = vmatprep.subr.mxu0 0.0
          %1364 = vmatpush1.msra.mxu0 %v1319
          %1365 = vmatprep.subr.mxu0 0.0
          %1366 = vmatpush1.msra.mxu0 %v1318
          %1367 = vmatprep.subr.mxu0 0.0
          %1368 = vmatpush2.msra.mxu0 0.0
          %1369 = vmatprep.subr.mxu0 0.0
          %1370 = vmatpush2.msra.mxu0 0.0
          %1371 = vmatprep.subr.mxu0 0.0
          %1372 = vmatpush2.msra.mxu0 0.0
          %1373 = vmatprep.subr.mxu0 0.0
          %1374 = vmatpush2.msra.mxu0 0.0
          %1375 = vmatprep.subr.mxu0 0.0
          %1376 = vmatpush2.msra.mxu0 0.0
          %1377 = vmatprep.subr.mxu0 0.0
          %1378 = vmatpush2.msra.mxu0 0.0
          %1379 = vmatprep.subr.mxu0 0.0
          %1380 = vmatpush2.msra.mxu0 0.0
          %1381 = vmatprep.subr.mxu0 0.0
          %1382 = vmatpush2.msra.mxu0 0.0
          %1383 = vmatprep.subr.mxu0 0.0
          %1384 = vmatpush2.msra.mxu0 0.0
          %1385 = vmatprep.subr.mxu0 0.0
          %1386 = vmatpush2.msra.mxu0 0.0
          %1387 = vmatprep.subr.mxu0 0.0
          %1388 = vmatpush2.msra.mxu0 0.0
          %1389 = vmatprep.subr.mxu0 0.0
          %1390 = vmatpush2.msra.mxu0 0.0
          %1391 = vmatprep.subr.mxu0 0.0
          %1392 = vmatpush2.msra.mxu0 0.0
          %1393 = vmatprep.subr.mxu0 0.0
          %1394 = vmatpush2.msra.mxu0 0.0
          %1395 = vmatprep.subr.mxu0 0.0
          %1396 = vmatpush2.msra.mxu0 0.0
          %1397 = vmatprep.subr.mxu0 0.0
          %1398 = vmatpush2.msra.mxu0 0.0
          %1399 = vmatprep.mubr.f32.mxu0 0.0
          %1400 = vmatmul.mubr.f32.gmra.mxu0 %v1333
          %v1401 = vpop.f32.mrf.mxu0
          %v1402 = vadd.f32 %v1328, %v1401
          %v1403 = vpop.f32.mrf.mxu0
          %1404 = vdwg.mxu0
          %v1406 = vcombine.high %v1402, %v1402
          %vm1408 = vcmask 257024
          %1409 = vst.msk [vmem:[#allocation2] sm:$0xf] %vm1408, %v1402
          %1410 = vst.msk [vmem:[#allocation2 + $0x8] sm:$0xf] %vm1408, %v1406
          %v1413 = vcombine.low %v1316, %v1317
          %v1414 = vsel %vm1170, %v1413, 0
          %1416 = vmatprep.subr.mxu0 0.0
          %1417 = vmatpush1.msra.mxu0 0.0
          %1418 = vmatprep.subr.mxu0 0.0
          %1419 = vmatpush1.msra.mxu0 0.0
          %1420 = vmatprep.subr.mxu0 0.0
          %1421 = vmatpush1.msra.mxu0 0.0
          %1422 = vmatprep.subr.mxu0 0.0
          %1423 = vmatpush1.msra.mxu0 0.0
          %1424 = vmatprep.subr.mxu0 0.0
          %1425 = vmatpush1.msra.mxu0 0.0
          %1426 = vmatprep.subr.mxu0 0.0
          %1427 = vmatpush1.msra.mxu0 0.0
          %1428 = vmatprep.subr.mxu0 0.0
          %1429 = vmatpush1.msra.mxu0 0.0
          %1430 = vmatprep.subr.mxu0 0.0
          %1431 = vmatpush1.msra.mxu0 0.0
          %1432 = vmatprep.subr.mxu0 0.0
          %1433 = vmatpush1.msra.mxu0 0.0
          %1434 = vmatprep.subr.mxu0 0.0
          %1435 = vmatpush1.msra.mxu0 0.0
          %1436 = vmatprep.subr.mxu0 0.0
          %1437 = vmatpush1.msra.mxu0 0.0
          %1438 = vmatprep.subr.mxu0 0.0
          %1439 = vmatpush1.msra.mxu0 0.0
          %1440 = vmatprep.subr.mxu0 0.0
          %1441 = vmatpush1.msra.mxu0 0.0
          %1442 = vmatprep.subr.mxu0 0.0
          %1443 = vmatpush1.msra.mxu0 0.0
          %1444 = vmatprep.subr.mxu0 0.0
          %1445 = vmatpush1.msra.mxu0 %v1319
          %1446 = vmatprep.subr.mxu0 0.0
          %1447 = vmatpush1.msra.mxu0 %v1318
          %1448 = vmatprep.subr.mxu0 0.0
          %1449 = vmatpush2.msra.mxu0 0.0
          %1450 = vmatprep.subr.mxu0 0.0
          %1451 = vmatpush2.msra.mxu0 0.0
          %1452 = vmatprep.subr.mxu0 0.0
          %1453 = vmatpush2.msra.mxu0 0.0
          %1454 = vmatprep.subr.mxu0 0.0
          %1455 = vmatpush2.msra.mxu0 0.0
          %1456 = vmatprep.subr.mxu0 0.0
          %1457 = vmatpush2.msra.mxu0 0.0
          %1458 = vmatprep.subr.mxu0 0.0
          %1459 = vmatpush2.msra.mxu0 0.0
          %1460 = vmatprep.subr.mxu0 0.0
          %1461 = vmatpush2.msra.mxu0 0.0
          %1462 = vmatprep.subr.mxu0 0.0
          %1463 = vmatpush2.msra.mxu0 0.0
          %1464 = vmatprep.subr.mxu0 0.0
          %1465 = vmatpush2.msra.mxu0 0.0
          %1466 = vmatprep.subr.mxu0 0.0
          %1467 = vmatpush2.msra.mxu0 0.0
          %1468 = vmatprep.subr.mxu0 0.0
          %1469 = vmatpush2.msra.mxu0 0.0
          %1470 = vmatprep.subr.mxu0 0.0
          %1471 = vmatpush2.msra.mxu0 0.0
          %1472 = vmatprep.subr.mxu0 0.0
          %1473 = vmatpush2.msra.mxu0 0.0
          %1474 = vmatprep.subr.mxu0 0.0
          %1475 = vmatpush2.msra.mxu0 0.0
          %1476 = vmatprep.subr.mxu0 0.0
          %1477 = vmatpush2.msra.mxu0 0.0
          %1478 = vmatprep.subr.mxu0 0.0
          %1479 = vmatpush2.msra.mxu0 0.0
          %1480 = vmatprep.mubr.f32.mxu0 0.0
          %1481 = vmatmul.mubr.f32.gmra.mxu0 %v1414
          %v1482 = vpop.f32.mrf.mxu0
          %v1483 = vadd.f32 %v1328, %v1482
          %v1484 = vpop.f32.mrf.mxu0
          %1485 = vdwg.mxu0
          %v1487 = vcombine.high %v1483, %v1483
          %1489 = vst.msk [vmem:[#allocation2 + $0x4] sm:$0xf] %vm1408, %v1483
          %1490 = vst.msk [vmem:[#allocation2 + $0xc] sm:$0xf] %vm1408, %v1487
          %v1492 = vlaneseq
          %v1493 = vshrl.u32 %v1492, 7
          %v1494 = vsub.s32 0, %v1493
          %v1495 = vrot.slane %v1323, %v1494
          %v1497 = vsel %vm1170, %v1308, 0
          %1499 = vmatprep.subr.mxu0 0.0
          %1500 = vmatpush1.msra.mxu0 0.0
          %1501 = vmatprep.subr.mxu0 0.0
          %1502 = vmatpush1.msra.mxu0 0.0
          %1503 = vmatprep.subr.mxu0 0.0
          %1504 = vmatpush1.msra.mxu0 0.0
          %1505 = vmatprep.subr.mxu0 0.0
          %1506 = vmatpush1.msra.mxu0 0.0
          %1507 = vmatprep.subr.mxu0 0.0
          %1508 = vmatpush1.msra.mxu0 0.0
          %1509 = vmatprep.subr.mxu0 0.0
          %1510 = vmatpush1.msra.mxu0 0.0
          %1511 = vmatprep.subr.mxu0 0.0
          %1512 = vmatpush1.msra.mxu0 0.0
          %1513 = vmatprep.subr.mxu0 0.0
          %1514 = vmatpush1.msra.mxu0 0.0
          %1515 = vmatprep.subr.mxu0 0.0
          %1516 = vmatpush1.msra.mxu0 0.0
          %1517 = vmatprep.subr.mxu0 0.0
          %1518 = vmatpush1.msra.mxu0 0.0
          %1519 = vmatprep.subr.mxu0 0.0
          %1520 = vmatpush1.msra.mxu0 0.0
          %1521 = vmatprep.subr.mxu0 0.0
          %1522 = vmatpush1.msra.mxu0 0.0
          %1523 = vmatprep.subr.mxu0 0.0
          %1524 = vmatpush1.msra.mxu0 0.0
          %1525 = vmatprep.subr.mxu0 0.0
          %1526 = vmatpush1.msra.mxu0 0.0
          %1527 = vmatprep.subr.mxu0 0.0
          %1528 = vmatpush1.msra.mxu0 %v1322
          %1529 = vmatprep.subr.mxu0 0.0
          %1530 = vmatpush1.msra.mxu0 %v1321
          %1531 = vmatprep.subr.mxu0 0.0
          %1532 = vmatpush2.msra.mxu0 0.0
          %1533 = vmatprep.subr.mxu0 0.0
          %1534 = vmatpush2.msra.mxu0 0.0
          %1535 = vmatprep.subr.mxu0 0.0
          %1536 = vmatpush2.msra.mxu0 0.0
          %1537 = vmatprep.subr.mxu0 0.0
          %1538 = vmatpush2.msra.mxu0 0.0
          %1539 = vmatprep.subr.mxu0 0.0
          %1540 = vmatpush2.msra.mxu0 0.0
          %1541 = vmatprep.subr.mxu0 0.0
          %1542 = vmatpush2.msra.mxu0 0.0
          %1543 = vmatprep.subr.mxu0 0.0
          %1544 = vmatpush2.msra.mxu0 0.0
          %1545 = vmatprep.subr.mxu0 0.0
          %1546 = vmatpush2.msra.mxu0 0.0
          %1547 = vmatprep.subr.mxu0 0.0
          %1548 = vmatpush2.msra.mxu0 0.0
          %1549 = vmatprep.subr.mxu0 0.0
          %1550 = vmatpush2.msra.mxu0 0.0
          %1551 = vmatprep.subr.mxu0 0.0
          %1552 = vmatpush2.msra.mxu0 0.0
          %1553 = vmatprep.subr.mxu0 0.0
          %1554 = vmatpush2.msra.mxu0 0.0
          %1555 = vmatprep.subr.mxu0 0.0
          %1556 = vmatpush2.msra.mxu0 0.0
          %1557 = vmatprep.subr.mxu0 0.0
          %1558 = vmatpush2.msra.mxu0 0.0
          %1559 = vmatprep.subr.mxu0 0.0
          %1560 = vmatpush2.msra.mxu0 0.0
          %1561 = vmatprep.subr.mxu0 0.0
          %1562 = vmatpush2.msra.mxu0 0.0
          %1563 = vmatprep.mubr.f32.mxu0 0.0
          %1564 = vmatmul.mubr.f32.gmra.mxu0 %v1497
          %v1565 = vpop.f32.mrf.mxu0
          %v1566 = vadd.f32 %v1495, %v1565
          %v1567 = vpop.f32.mrf.mxu0
          %1568 = vdwg.mxu0
          %v1570 = vcombine.high %v1566, %v1566
          %1572 = vst.msk [vmem:[#allocation3] sm:$0xf] %vm1408, %v1566
          %1573 = vst.msk [vmem:[#allocation3 + $0x8] sm:$0xf] %vm1408, %v1570
          %1574 = vmatprep.subr.mxu0 0.0
          %1575 = vmatpush1.msra.mxu0 0.0
          %1576 = vmatprep.subr.mxu0 0.0
          %1577 = vmatpush1.msra.mxu0 0.0
          %1578 = vmatprep.subr.mxu0 0.0
          %1579 = vmatpush1.msra.mxu0 0.0
          %1580 = vmatprep.subr.mxu0 0.0
          %1581 = vmatpush1.msra.mxu0 0.0
          %1582 = vmatprep.subr.mxu0 0.0
          %1583 = vmatpush1.msra.mxu0 0.0
          %1584 = vmatprep.subr.mxu0 0.0
          %1585 = vmatpush1.msra.mxu0 0.0
          %1586 = vmatprep.subr.mxu0 0.0
          %1587 = vmatpush1.msra.mxu0 0.0
          %1588 = vmatprep.subr.mxu0 0.0
          %1589 = vmatpush1.msra.mxu0 0.0
          %1590 = vmatprep.subr.mxu0 0.0
          %1591 = vmatpush1.msra.mxu0 0.0
          %1592 = vmatprep.subr.mxu0 0.0
          %1593 = vmatpush1.msra.mxu0 0.0
          %1594 = vmatprep.subr.mxu0 0.0
          %1595 = vmatpush1.msra.mxu0 0.0
          %1596 = vmatprep.subr.mxu0 0.0
          %1597 = vmatpush1.msra.mxu0 0.0
          %1598 = vmatprep.subr.mxu0 0.0
          %1599 = vmatpush1.msra.mxu0 0.0
          %1600 = vmatprep.subr.mxu0 0.0
          %1601 = vmatpush1.msra.mxu0 0.0
          %1602 = vmatprep.subr.mxu0 0.0
          %1603 = vmatpush1.msra.mxu0 %v1322
          %1604 = vmatprep.subr.mxu0 0.0
          %1605 = vmatpush1.msra.mxu0 %v1321
          %1606 = vmatprep.subr.mxu0 0.0
          %1607 = vmatpush2.msra.mxu0 0.0
          %1608 = vmatprep.subr.mxu0 0.0
          %1609 = vmatpush2.msra.mxu0 0.0
          %1610 = vmatprep.subr.mxu0 0.0
          %1611 = vmatpush2.msra.mxu0 0.0
          %1612 = vmatprep.subr.mxu0 0.0
          %1613 = vmatpush2.msra.mxu0 0.0
          %1614 = vmatprep.subr.mxu0 0.0
          %1615 = vmatpush2.msra.mxu0 0.0
          %1616 = vmatprep.subr.mxu0 0.0
          %1617 = vmatpush2.msra.mxu0 0.0
          %1618 = vmatprep.subr.mxu0 0.0
          %1619 = vmatpush2.msra.mxu0 0.0
          %1620 = vmatprep.subr.mxu0 0.0
          %1621 = vmatpush2.msra.mxu0 0.0
          %1622 = vmatprep.subr.mxu0 0.0
          %1623 = vmatpush2.msra.mxu0 0.0
          %1624 = vmatprep.subr.mxu0 0.0
          %1625 = vmatpush2.msra.mxu0 0.0
          %1626 = vmatprep.subr.mxu0 0.0
          %1627 = vmatpush2.msra.mxu0 0.0
          %1628 = vmatprep.subr.mxu0 0.0
          %1629 = vmatpush2.msra.mxu0 0.0
          %1630 = vmatprep.subr.mxu0 0.0
          %1631 = vmatpush2.msra.mxu0 0.0
          %1632 = vmatprep.subr.mxu0 0.0
          %1633 = vmatpush2.msra.mxu0 0.0
          %1634 = vmatprep.subr.mxu0 0.0
          %1635 = vmatpush2.msra.mxu0 0.0
          %1636 = vmatprep.subr.mxu0 0.0
          %1637 = vmatpush2.msra.mxu0 0.0
          %1638 = vmatprep.mubr.f32.mxu0 0.0
          %1639 = vmatmul.mubr.f32.gmra.mxu0 %v1414
          %v1640 = vpop.f32.mrf.mxu0
          %v1641 = vadd.f32 %v1495, %v1640
          %v1642 = vpop.f32.mrf.mxu0
          %1643 = vdwg.mxu0
          %v1645 = vcombine.high %v1641, %v1641
          %1647 = vst.msk [vmem:[#allocation3 + $0x4] sm:$0xf] %vm1408, %v1641
          %1648 = vst.msk [vmem:[#allocation3 + $0xc] sm:$0xf] %vm1408, %v1645
          %vm1649 = vcmask 3072
          %1650 = vst.msk [vmem:[#allocation4] sm:$0xf] %vm1649, %v1183
          %1651 = vst.msk [vmem:[#allocation4 + $0x4] sm:$0xf] %vm1649, %v1190
          %1652 = vst.msk [vmem:[#allocation5] sm:$0xf] %vm1649, %v1220
          %1653 = vst.msk [vmem:[#allocation5 + $0x4] sm:$0xf] %vm1649, %v1227
        $region192: #{model_forward.1} parent=123 // pred_fallthru
          _
        %v1654 = vld [vmem:[#allocation2] sm:$0xff]
        %v1655 = vld [vmem:[#allocation2 + $0x8] sm:$0xff]
        %v1656 = vld [vmem:[%s988] sm:$0xff]
        %v1657 = vld [vmem:[%s988 + $0x8] sm:$0xff]
        %v1658 = vld [vmem:[%s988 + $0x10] sm:$0xff]
        %v1659 = vld [vmem:[%s988 + $0x18] sm:$0xff]
        %v1660 = vld [vmem:[%s996] sm:$0x1]
        %v1662 = vlaneseq
        %v1663 = vshrl.u32 %v1662, 7
        %v1664 = vsub.s32 0, %v1663
        %v1665 = vrot.slane %v1660, %v1664
        %vm1667 = vcmask 261120
        %v1669 = vsel %vm1667, %v1654, 0
        %v1672 = vsel %vm1667, %v1655, 0
        %1674 = vmatprep.subr.mxu0 0.0
        %1675 = vmatpush1.msra.mxu0 0.0
        %1676 = vmatprep.subr.mxu0 0.0
        %1677 = vmatpush1.msra.mxu0 0.0
        %1678 = vmatprep.subr.mxu0 0.0
        %1679 = vmatpush1.msra.mxu0 0.0
        %1680 = vmatprep.subr.mxu0 0.0
        %1681 = vmatpush1.msra.mxu0 0.0
        %1682 = vmatprep.subr.mxu0 0.0
        %1683 = vmatpush1.msra.mxu0 0.0
        %1684 = vmatprep.subr.mxu0 0.0
        %1685 = vmatpush1.msra.mxu0 0.0
        %1686 = vmatprep.subr.mxu0 0.0
        %1687 = vmatpush1.msra.mxu0 0.0
        %1688 = vmatprep.subr.mxu0 0.0
        %1689 = vmatpush1.msra.mxu0 0.0
        %1690 = vmatprep.subr.mxu0 0.0
        %1691 = vmatpush1.msra.mxu0 0.0
        %1692 = vmatprep.subr.mxu0 0.0
        %1693 = vmatpush1.msra.mxu0 0.0
        %1694 = vmatprep.subr.mxu0 0.0
        %1695 = vmatpush1.msra.mxu0 0.0
        %1696 = vmatprep.subr.mxu0 0.0
        %1697 = vmatpush1.msra.mxu0 0.0
        %1698 = vmatprep.subr.mxu0 0.0
        %1699 = vmatpush1.msra.mxu0 %v1659
        %1700 = vmatprep.subr.mxu0 0.0
        %1701 = vmatpush1.msra.mxu0 %v1658
        %1702 = vmatprep.subr.mxu0 0.0
        %1703 = vmatpush1.msra.mxu0 %v1657
        %1704 = vmatprep.subr.mxu0 0.0
        %1705 = vmatpush1.msra.mxu0 %v1656
        %1706 = vmatprep.subr.mxu0 0.0
        %1707 = vmatpush2.msra.mxu0 0.0
        %1708 = vmatprep.subr.mxu0 0.0
        %1709 = vmatpush2.msra.mxu0 0.0
        %1710 = vmatprep.subr.mxu0 0.0
        %1711 = vmatpush2.msra.mxu0 0.0
        %1712 = vmatprep.subr.mxu0 0.0
        %1713 = vmatpush2.msra.mxu0 0.0
        %1714 = vmatprep.subr.mxu0 0.0
        %1715 = vmatpush2.msra.mxu0 0.0
        %1716 = vmatprep.subr.mxu0 0.0
        %1717 = vmatpush2.msra.mxu0 0.0
        %1718 = vmatprep.subr.mxu0 0.0
        %1719 = vmatpush2.msra.mxu0 0.0
        %1720 = vmatprep.subr.mxu0 0.0
        %1721 = vmatpush2.msra.mxu0 0.0
        %1722 = vmatprep.subr.mxu0 0.0
        %1723 = vmatpush2.msra.mxu0 0.0
        %1724 = vmatprep.subr.mxu0 0.0
        %1725 = vmatpush2.msra.mxu0 0.0
        %1726 = vmatprep.subr.mxu0 0.0
        %1727 = vmatpush2.msra.mxu0 0.0
        %1728 = vmatprep.subr.mxu0 0.0
        %1729 = vmatpush2.msra.mxu0 0.0
        %1730 = vmatprep.subr.mxu0 0.0
        %1731 = vmatpush2.msra.mxu0 0.0
        %1732 = vmatprep.subr.mxu0 0.0
        %1733 = vmatpush2.msra.mxu0 0.0
        %1734 = vmatprep.subr.mxu0 0.0
        %1735 = vmatpush2.msra.mxu0 0.0
        %1736 = vmatprep.subr.mxu0 0.0
        %1737 = vmatpush2.msra.mxu0 0.0
        %1738 = vmatprep.mubr.f32.mxu0 0.0
        %1739 = vmatmul.mubr.f32.gmra.mxu0 %v1669
        %v1740 = vpop.f32.mrf.mxu0
        %v1741 = vadd.f32 %v1665, %v1740
        %v1742 = vpop.f32.mrf.mxu0
        %1743 = vmatprep.mubr.f32.mxu0 0.0
        %1744 = vmatmul.mubr.f32.gmra.mxu0 %v1672
        %v1745 = vpop.f32.mrf.mxu0
        %v1746 = vadd.f32 %v1665, %v1745
        %v1747 = vpop.f32.mrf.mxu0
        %1748 = vdwg.mxu0
        %v1749 = vsel %vm1667, %v1741, -inf
        %v1750 = vrot.slane %v1749, 4
        %v1751 = vmax.f32 %v1749, %v1750
        %v1752 = vrot.slane %v1751, 2
        %v1753 = vmax.f32 %v1751, %v1752
        %v1754 = vrot.slane %v1753, 1
        %v1755 = vmax.f32 %v1753, %v1754
        %v1756 = vsel %vm1667, %v1746, -inf
        %v1757 = vrot.slane %v1756, 4
        %v1758 = vmax.f32 %v1756, %v1757
        %v1759 = vrot.slane %v1758, 2
        %v1760 = vmax.f32 %v1758, %v1759
        %v1761 = vrot.slane %v1760, 1
        %v1762 = vmax.f32 %v1760, %v1761
        %v1763 = vsub.f32 %v1741, %v1755
        %v1764 = vsub.f32 %v1746, %v1762
        %v1765 = vmul.f32 %v1763, 1.442695
        %v1766 = vpow.pop %v1765
        %v1767 = vmul.f32 %v1764, 1.442695
        %v1768 = vpow.pop %v1767
        %v1769 = vsel %vm1667, %v1766, 0.0
        %v1770 = vrot.slane %v1769, 4
        %v1771 = vadd.f32 %v1769, %v1770
        %v1772 = vrot.slane %v1771, 2
        %v1773 = vadd.f32 %v1771, %v1772
        %v1774 = vrot.slane %v1773, 1
        %v1775 = vadd.f32 %v1773, %v1774
        %v1776 = vsel %vm1667, %v1768, 0.0
        %v1777 = vrot.slane %v1776, 4
        %v1778 = vadd.f32 %v1776, %v1777
        %v1779 = vrot.slane %v1778, 2
        %v1780 = vadd.f32 %v1778, %v1779
        %v1781 = vrot.slane %v1780, 1
        %v1782 = vadd.f32 %v1780, %v1781
        %v1783 = vrcp.pop %v1775
        %v1784 = vmul.f32 %v1766, %v1783
        %v1785 = vrcp.pop %v1782
        %v1786 = vmul.f32 %v1768, %v1785
        %1789 = vrot.lane.b32.xlu0 %v1741, 96
        %v1790 = vpop.permute.xlu0 %1789
        %1791 = vrot.lane.b32.xlu0 %v1746, 96
        %v1792 = vpop.permute.xlu0 %1791
        %v1795 = vmul.f32 %v1784, %v1790
        %v1796 = vmul.f32 %v1786, %v1792
        %v1797 = vmul.f32 %v1795, 0.5
        %v1798 = vmul.f32 %v1796, 0.5
        %v1799 = vrcp.pop 1.4142135
        %v1800 = vmul.f32 %v1795, %v1799
        %v1801 = vmul.f32 %v1796, %v1799
        %v1802 = verf.f32.pop %v1800
        %v1803 = verf.f32.pop %v1801
        %v1804 = vadd.f32 %v1802, 1.0
        %v1805 = vadd.f32 %v1803, 1.0
        %v1806 = vmul.f32 %v1797, %v1804
        %v1807 = vmul.f32 %v1798, %v1805
        %v1808 = vsel %vm1667, %v1806, 0.0
        %v1809 = vrot.slane %v1808, 4
        %v1810 = vadd.f32 %v1808, %v1809
        %v1811 = vrot.slane %v1810, 2
        %v1812 = vadd.f32 %v1810, %v1811
        %v1813 = vrot.slane %v1812, 1
        %v1814 = vadd.f32 %v1812, %v1813
        %v1815 = vsel %vm1667, %v1807, 0.0
        %v1816 = vrot.slane %v1815, 4
        %v1817 = vadd.f32 %v1815, %v1816
        %v1818 = vrot.slane %v1817, 2
        %v1819 = vadd.f32 %v1817, %v1818
        %v1820 = vrot.slane %v1819, 1
        %v1821 = vadd.f32 %v1819, %v1820
        %1824 = vrot.lane.b32.xlu0 %v1814, 64
        %v1825 = vpop.permute.xlu0 %1824
        %1826 = vrot.lane.b32.xlu0 %v1821, 64
        %v1827 = vpop.permute.xlu0 %1826
        %v1830 = vmul.f32 %v1741, %v1825
        %v1831 = vmul.f32 %v1746, %v1827
        %v1832 = vld [vmem:[%s1005] sm:$0xff]
        %v1833 = vld [vmem:[%s1005 + $0x8] sm:$0xff]
        %v1834 = vld [vmem:[%s1005 + $0x10] sm:$0xff]
        %v1835 = vld [vmem:[%s1005 + $0x18] sm:$0xff]
        %v1836 = vld [vmem:[%s1013] sm:$0x1]
        %v1838 = vlaneseq
        %v1839 = vshrl.u32 %v1838, 7
        %v1840 = vsub.s32 0, %v1839
        %v1841 = vrot.slane %v1836, %v1840
        %1845 = vrot.lane.b32.xlu0 %v1830, 64
        %v1846 = vpop.permute.xlu0 %1845
        %1847 = vrot.lane.b32.xlu0 %v1831, 64
        %v1848 = vpop.permute.xlu0 %1847
        %v1849 = vsel %vm1667, %v1846, 0
        %v1851 = vsel %vm1667, %v1848, 0
        %1853 = vmatprep.subr.mxu0 0.0
        %1854 = vmatpush1.msra.mxu0 0.0
        %1855 = vmatprep.subr.mxu0 0.0
        %1856 = vmatpush1.msra.mxu0 0.0
        %1857 = vmatprep.subr.mxu0 0.0
        %1858 = vmatpush1.msra.mxu0 0.0
        %1859 = vmatprep.subr.mxu0 0.0
        %1860 = vmatpush1.msra.mxu0 0.0
        %1861 = vmatprep.subr.mxu0 0.0
        %1862 = vmatpush1.msra.mxu0 0.0
        %1863 = vmatprep.subr.mxu0 0.0
        %1864 = vmatpush1.msra.mxu0 0.0
        %1865 = vmatprep.subr.mxu0 0.0
        %1866 = vmatpush1.msra.mxu0 0.0
        %1867 = vmatprep.subr.mxu0 0.0
        %1868 = vmatpush1.msra.mxu0 0.0
        %1869 = vmatprep.subr.mxu0 0.0
        %1870 = vmatpush1.msra.mxu0 0.0
        %1871 = vmatprep.subr.mxu0 0.0
        %1872 = vmatpush1.msra.mxu0 0.0
        %1873 = vmatprep.subr.mxu0 0.0
        %1874 = vmatpush1.msra.mxu0 0.0
        %1875 = vmatprep.subr.mxu0 0.0
        %1876 = vmatpush1.msra.mxu0 0.0
        %1877 = vmatprep.subr.mxu0 0.0
        %1878 = vmatpush1.msra.mxu0 %v1835
        %1879 = vmatprep.subr.mxu0 0.0
        %1880 = vmatpush1.msra.mxu0 %v1834
        %1881 = vmatprep.subr.mxu0 0.0
        %1882 = vmatpush1.msra.mxu0 %v1833
        %1883 = vmatprep.subr.mxu0 0.0
        %1884 = vmatpush1.msra.mxu0 %v1832
        %1885 = vmatprep.subr.mxu0 0.0
        %1886 = vmatpush2.msra.mxu0 0.0
        %1887 = vmatprep.subr.mxu0 0.0
        %1888 = vmatpush2.msra.mxu0 0.0
        %1889 = vmatprep.subr.mxu0 0.0
        %1890 = vmatpush2.msra.mxu0 0.0
        %1891 = vmatprep.subr.mxu0 0.0
        %1892 = vmatpush2.msra.mxu0 0.0
        %1893 = vmatprep.subr.mxu0 0.0
        %1894 = vmatpush2.msra.mxu0 0.0
        %1895 = vmatprep.subr.mxu0 0.0
        %1896 = vmatpush2.msra.mxu0 0.0
        %1897 = vmatprep.subr.mxu0 0.0
        %1898 = vmatpush2.msra.mxu0 0.0
        %1899 = vmatprep.subr.mxu0 0.0
        %1900 = vmatpush2.msra.mxu0 0.0
        %1901 = vmatprep.subr.mxu0 0.0
        %1902 = vmatpush2.msra.mxu0 0.0
        %1903 = vmatprep.subr.mxu0 0.0
        %1904 = vmatpush2.msra.mxu0 0.0
        %1905 = vmatprep.subr.mxu0 0.0
        %1906 = vmatpush2.msra.mxu0 0.0
        %1907 = vmatprep.subr.mxu0 0.0
        %1908 = vmatpush2.msra.mxu0 0.0
        %1909 = vmatprep.subr.mxu0 0.0
        %1910 = vmatpush2.msra.mxu0 0.0
        %1911 = vmatprep.subr.mxu0 0.0
        %1912 = vmatpush2.msra.mxu0 0.0
        %1913 = vmatprep.subr.mxu0 0.0
        %1914 = vmatpush2.msra.mxu0 0.0
        %1915 = vmatprep.subr.mxu0 0.0
        %1916 = vmatpush2.msra.mxu0 0.0
        %1917 = vmatprep.mubr.f32.mxu0 0.0
        %1918 = vmatmul.mubr.f32.gmra.mxu0 %v1849
        %v1919 = vpop.f32.mrf.mxu0
        %v1920 = vadd.f32 %v1841, %v1919
        %v1921 = vpop.f32.mrf.mxu0
        %1922 = vmatprep.mubr.f32.mxu0 0.0
        %1923 = vmatmul.mubr.f32.gmra.mxu0 %v1851
        %v1924 = vpop.f32.mrf.mxu0
        %v1925 = vadd.f32 %v1841, %v1924
        %v1926 = vpop.f32.mrf.mxu0
        %1927 = vdwg.mxu0
        %v1928 = vld [vmem:[%s1056] sm:$0xf]
        %v1929 = vadd.f32 %v1654, %v1920
        %v1930 = vadd.f32 %v1655, %v1925
        %v1931 = vsel %vm1667, %v1929, 0.0
        %1932 = vadd.xlane.f32.xlu0 %v1931
        %v1933 = vpop.xlane.xlu0 %1932
        %v1934 = vsel %vm1667, %v1930, 0.0
        %1935 = vadd.xlane.f32.xlu0 %v1934
        %v1936 = vpop.xlane.xlu0 %1935
        %v1937 = vrcp.pop 32.0
        %v1938 = vmul.f32 %v1933, %v1937
        %v1939 = vmul.f32 %v1936, %v1937
        %v1940 = vsub.f32 %v1929, %v1938
        %v1941 = vsub.f32 %v1930, %v1939
        %v1942 = vmul.f32 %v1940, %v1940
        %v1943 = vmul.f32 %v1941, %v1941
        %v1944 = vsel %vm1667, %v1942, 0.0
        %1945 = vadd.xlane.f32.xlu0 %v1944
        %v1946 = vpop.xlane.xlu0 %1945
        %v1947 = vsel %vm1667, %v1943, 0.0
        %1948 = vadd.xlane.f32.xlu0 %v1947
        %v1949 = vpop.xlane.xlu0 %1948
        %v1950 = vmul.f32 %v1946, %v1937
        %v1951 = vmul.f32 %v1949, %v1937
        %v1952 = vadd.f32 %v1950, 1e-05
        %v1953 = vadd.f32 %v1951, 1e-05
        %v1954 = vrsqrt.pop %v1952
        %v1955 = vrsqrt.pop %v1953
        %v1956 = vmul.f32 %v1940, %v1954
        %v1957 = vmul.f32 %v1941, %v1955
        %v1958 = vlaneseq
        %v1959 = vshrl.u32 %v1958, 7
        %v1960 = vsub.s32 0, %v1959
        %v1961 = vrot.slane %v1928, %v1960
        %v1962 = vmul.f32 %v1956, %v1961
        %v1963 = vmul.f32 %v1957, %v1961
        %v1964 = vlaneseq
        %v1965 = vshrl.u32 %v1964, 7
        %v1966 = vsub.s32 1, %v1965
        %v1967 = vrot.slane %v1928, %v1966
        %v1968 = vadd.f32 %v1962, %v1967
        %v1969 = vadd.f32 %v1963, %v1967
        %v1970 = vld [vmem:[%s1022] sm:$0xff]
        %v1971 = vld [vmem:[%s1022 + $0x8] sm:$0xff]
        %v1972 = vld [vmem:[%s1022 + $0x10] sm:$0xff]
        %v1973 = vld [vmem:[%s1022 + $0x18] sm:$0xff]
        %v1974 = vld [vmem:[%s1030] sm:$0x1]
        %v1976 = vlaneseq
        %v1977 = vshrl.u32 %v1976, 7
        %v1978 = vsub.s32 0, %v1977
        %v1979 = vrot.slane %v1974, %v1978
        %v1982 = vsel %vm1667, %v1968, 0
        %v1985 = vsel %vm1667, %v1969, 0
        %1987 = vmatprep.subr.mxu0 0.0
        %1988 = vmatpush1.msra.mxu0 0.0
        %1989 = vmatprep.subr.mxu0 0.0
        %1990 = vmatpush1.msra.mxu0 0.0
        %1991 = vmatprep.subr.mxu0 0.0
        %1992 = vmatpush1.msra.mxu0 0.0
        %1993 = vmatprep.subr.mxu0 0.0
        %1994 = vmatpush1.msra.mxu0 0.0
        %1995 = vmatprep.subr.mxu0 0.0
        %1996 = vmatpush1.msra.mxu0 0.0
        %1997 = vmatprep.subr.mxu0 0.0
        %1998 = vmatpush1.msra.mxu0 0.0
        %1999 = vmatprep.subr.mxu0 0.0
        %2000 = vmatpush1.msra.mxu0 0.0
        %2001 = vmatprep.subr.mxu0 0.0
        %2002 = vmatpush1.msra.mxu0 0.0
        %2003 = vmatprep.subr.mxu0 0.0
        %2004 = vmatpush1.msra.mxu0 0.0
        %2005 = vmatprep.subr.mxu0 0.0
        %2006 = vmatpush1.msra.mxu0 0.0
        %2007 = vmatprep.subr.mxu0 0.0
        %2008 = vmatpush1.msra.mxu0 0.0
        %2009 = vmatprep.subr.mxu0 0.0
        %2010 = vmatpush1.msra.mxu0 0.0
        %2011 = vmatprep.subr.mxu0 0.0
        %2012 = vmatpush1.msra.mxu0 %v1973
        %2013 = vmatprep.subr.mxu0 0.0
        %2014 = vmatpush1.msra.mxu0 %v1972
        %2015 = vmatprep.subr.mxu0 0.0
        %2016 = vmatpush1.msra.mxu0 %v1971
        %2017 = vmatprep.subr.mxu0 0.0
        %2018 = vmatpush1.msra.mxu0 %v1970
        %2019 = vmatprep.subr.mxu0 0.0
        %2020 = vmatpush2.msra.mxu0 0.0
        %2021 = vmatprep.subr.mxu0 0.0
        %2022 = vmatpush2.msra.mxu0 0.0
        %2023 = vmatprep.subr.mxu0 0.0
        %2024 = vmatpush2.msra.mxu0 0.0
        %2025 = vmatprep.subr.mxu0 0.0
        %2026 = vmatpush2.msra.mxu0 0.0
        %2027 = vmatprep.subr.mxu0 0.0
        %2028 = vmatpush2.msra.mxu0 0.0
        %2029 = vmatprep.subr.mxu0 0.0
        %2030 = vmatpush2.msra.mxu0 0.0
        %2031 = vmatprep.subr.mxu0 0.0
        %2032 = vmatpush2.msra.mxu0 0.0
        %2033 = vmatprep.subr.mxu0 0.0
        %2034 = vmatpush2.msra.mxu0 0.0
        %2035 = vmatprep.subr.mxu0 0.0
        %2036 = vmatpush2.msra.mxu0 0.0
        %2037 = vmatprep.subr.mxu0 0.0
        %2038 = vmatpush2.msra.mxu0 0.0
        %2039 = vmatprep.subr.mxu0 0.0
        %2040 = vmatpush2.msra.mxu0 0.0
        %2041 = vmatprep.subr.mxu0 0.0
        %2042 = vmatpush2.msra.mxu0 0.0
        %2043 = vmatprep.subr.mxu0 0.0
        %2044 = vmatpush2.msra.mxu0 0.0
        %2045 = vmatprep.subr.mxu0 0.0
        %2046 = vmatpush2.msra.mxu0 0.0
        %2047 = vmatprep.subr.mxu0 0.0
        %2048 = vmatpush2.msra.mxu0 0.0
        %2049 = vmatprep.subr.mxu0 0.0
        %2050 = vmatpush2.msra.mxu0 0.0
        %2051 = vmatprep.mubr.f32.mxu0 0.0
        %2052 = vmatmul.mubr.f32.gmra.mxu0 %v1982
        %v2053 = vpop.f32.mrf.mxu0
        %v2054 = vadd.f32 %v1979, %v2053
        %v2055 = vpop.f32.mrf.mxu0
        %2056 = vmatprep.mubr.f32.mxu0 0.0
        %2057 = vmatmul.mubr.f32.gmra.mxu0 %v1985
        %v2058 = vpop.f32.mrf.mxu0
        %v2059 = vadd.f32 %v1979, %v2058
        %v2060 = vpop.f32.mrf.mxu0
        %2061 = vdwg.mxu0
        %v2062 = vmul.f32 %v2054, 0.5
        %v2063 = vmul.f32 %v2059, 0.5
        %v2064 = vmul.f32 %v2054, %v1799
        %v2065 = vmul.f32 %v2059, %v1799
        %v2066 = verf.f32.pop %v2064
        %v2067 = verf.f32.pop %v2065
        %v2068 = vadd.f32 %v2066, 1.0
        %v2069 = vadd.f32 %v2067, 1.0
        %v2070 = vmul.f32 %v2062, %v2068
        %v2071 = vmul.f32 %v2063, %v2069
        %v2072 = vld [vmem:[%s1039] sm:$0xff]
        %v2073 = vld [vmem:[%s1039 + $0x8] sm:$0xff]
        %v2074 = vld [vmem:[%s1039 + $0x10] sm:$0xff]
        %v2075 = vld [vmem:[%s1039 + $0x18] sm:$0xff]
        %v2076 = vld [vmem:[%s1039 + $0x20] sm:$0xff]
        %v2077 = vld [vmem:[%s1039 + $0x28] sm:$0xff]
        %v2078 = vld [vmem:[%s1039 + $0x30] sm:$0xff]
        %v2079 = vld [vmem:[%s1039 + $0x38] sm:$0xff]
        %v2080 = vld [vmem:[%s1047] sm:$0x1]
        %v2082 = vlaneseq
        %v2083 = vshrl.u32 %v2082, 7
        %v2084 = vsub.s32 0, %v2083
        %v2085 = vrot.slane %v2080, %v2084
        %vm2087 = vcmask 523264
        %v2089 = vsel %vm2087, %v2070, 0
        %v2092 = vsel %vm2087, %v2071, 0
        %2094 = vmatprep.subr.mxu0 0.0
        %2095 = vmatpush1.msra.mxu0 0.0
        %2096 = vmatprep.subr.mxu0 0.0
        %2097 = vmatpush1.msra.mxu0 0.0
        %2098 = vmatprep.subr.mxu0 0.0
        %2099 = vmatpush1.msra.mxu0 0.0
        %2100 = vmatprep.subr.mxu0 0.0
        %2101 = vmatpush1.msra.mxu0 0.0
        %2102 = vmatprep.subr.mxu0 0.0
        %2103 = vmatpush1.msra.mxu0 0.0
        %2104 = vmatprep.subr.mxu0 0.0
        %2105 = vmatpush1.msra.mxu0 0.0
        %2106 = vmatprep.subr.mxu0 0.0
        %2107 = vmatpush1.msra.mxu0 0.0
        %2108 = vmatprep.subr.mxu0 0.0
        %2109 = vmatpush1.msra.mxu0 0.0
        %2110 = vmatprep.subr.mxu0 0.0
        %2111 = vmatpush1.msra.mxu0 %v2079
        %2112 = vmatprep.subr.mxu0 0.0
        %2113 = vmatpush1.msra.mxu0 %v2078
        %2114 = vmatprep.subr.mxu0 0.0
        %2115 = vmatpush1.msra.mxu0 %v2077
        %2116 = vmatprep.subr.mxu0 0.0
        %2117 = vmatpush1.msra.mxu0 %v2076
        %2118 = vmatprep.subr.mxu0 0.0
        %2119 = vmatpush1.msra.mxu0 %v2075
        %2120 = vmatprep.subr.mxu0 0.0
        %2121 = vmatpush1.msra.mxu0 %v2074
        %2122 = vmatprep.subr.mxu0 0.0
        %2123 = vmatpush1.msra.mxu0 %v2073
        %2124 = vmatprep.subr.mxu0 0.0
        %2125 = vmatpush1.msra.mxu0 %v2072
        %2126 = vmatprep.subr.mxu0 0.0
        %2127 = vmatpush2.msra.mxu0 0.0
        %2128 = vmatprep.subr.mxu0 0.0
        %2129 = vmatpush2.msra.mxu0 0.0
        %2130 = vmatprep.subr.mxu0 0.0
        %2131 = vmatpush2.msra.mxu0 0.0
        %2132 = vmatprep.subr.mxu0 0.0
        %2133 = vmatpush2.msra.mxu0 0.0
        %2134 = vmatprep.subr.mxu0 0.0
        %2135 = vmatpush2.msra.mxu0 0.0
        %2136 = vmatprep.subr.mxu0 0.0
        %2137 = vmatpush2.msra.mxu0 0.0
        %2138 = vmatprep.subr.mxu0 0.0
        %2139 = vmatpush2.msra.mxu0 0.0
        %2140 = vmatprep.subr.mxu0 0.0
        %2141 = vmatpush2.msra.mxu0 0.0
        %2142 = vmatprep.subr.mxu0 0.0
        %2143 = vmatpush2.msra.mxu0 0.0
        %2144 = vmatprep.subr.mxu0 0.0
        %2145 = vmatpush2.msra.mxu0 0.0
        %2146 = vmatprep.subr.mxu0 0.0
        %2147 = vmatpush2.msra.mxu0 0.0
        %2148 = vmatprep.subr.mxu0 0.0
        %2149 = vmatpush2.msra.mxu0 0.0
        %2150 = vmatprep.subr.mxu0 0.0
        %2151 = vmatpush2.msra.mxu0 0.0
        %2152 = vmatprep.subr.mxu0 0.0
        %2153 = vmatpush2.msra.mxu0 0.0
        %2154 = vmatprep.subr.mxu0 0.0
        %2155 = vmatpush2.msra.mxu0 0.0
        %2156 = vmatprep.subr.mxu0 0.0
        %2157 = vmatpush2.msra.mxu0 0.0
        %2158 = vmatprep.mubr.f32.mxu0 0.0
        %2159 = vmatmul.mubr.f32.gmra.mxu0 %v2089
        %v2160 = vpop.f32.mrf.mxu0
        %v2161 = vadd.f32 %v2085, %v2160
        %v2162 = vpop.f32.mrf.mxu0
        %2163 = vmatprep.mubr.f32.mxu0 0.0
        %2164 = vmatmul.mubr.f32.gmra.mxu0 %v2092
        %v2165 = vpop.f32.mrf.mxu0
        %v2166 = vadd.f32 %v2085, %v2165
        %v2167 = vpop.f32.mrf.mxu0
        %2168 = vdwg.mxu0
        %v2169 = vadd.f32 %v1968, %v2161
        %v2170 = vadd.f32 %v1969, %v2166
        %v2171 = vsel %vm1667, %v2169, 0.0
        %2172 = vadd.xlane.f32.xlu0 %v2171
        %v2173 = vpop.xlane.xlu0 %2172
        %v2174 = vsel %vm1667, %v2170, 0.0
        %2175 = vadd.xlane.f32.xlu0 %v2174
        %v2176 = vpop.xlane.xlu0 %2175
        %v2177 = vmul.f32 %v2173, %v1937
        %v2178 = vmul.f32 %v2176, %v1937
        %v2179 = vsub.f32 %v2169, %v2177
        %v2180 = vsub.f32 %v2170, %v2178
        %v2181 = vmul.f32 %v2179, %v2179
        %v2182 = vmul.f32 %v2180, %v2180
        %v2183 = vsel %vm1667, %v2181, 0.0
        %2184 = vadd.xlane.f32.xlu0 %v2183
        %v2185 = vpop.xlane.xlu0 %2184
        %v2186 = vsel %vm1667, %v2182, 0.0
        %2187 = vadd.xlane.f32.xlu0 %v2186
        %v2188 = vpop.xlane.xlu0 %2187
        %v2189 = vmul.f32 %v2185, %v1937
        %v2190 = vmul.f32 %v2188, %v1937
        %v2191 = vadd.f32 %v2189, 1e-05
        %v2192 = vadd.f32 %v2190, 1e-05
        %v2193 = vrsqrt.pop %v2191
        %v2194 = vrsqrt.pop %v2192
        %v2195 = vmul.f32 %v2179, %v2193
        %v2196 = vmul.f32 %v2180, %v2194
        %v2197 = vlaneseq
        %v2198 = vshrl.u32 %v2197, 7
        %v2199 = vsub.s32 2, %v2198
        %v2200 = vrot.slane %v1928, %v2199
        %v2201 = vmul.f32 %v2195, %v2200
        %v2202 = vmul.f32 %v2196, %v2200
        %v2203 = vlaneseq
        %v2204 = vshrl.u32 %v2203, 7
        %v2205 = vsub.s32 3, %v2204
        %v2206 = vrot.slane %v1928, %v2205
        %v2207 = vadd.f32 %v2201, %v2206
        %v2208 = vadd.f32 %v2202, %v2206
        %2209 = vst.msk [vmem:[#allocation2] sm:$0xff] %vm1667, %v2207
        %2210 = vst.msk [vmem:[#allocation2 + $0x8] sm:$0xff] %vm1667, %v2208
        %p2211 = scmp.eq.s32.totalorder %s42, 1
        // Predicated region
        $region193: #{model_forward.1} parent=123 // pred_check
          %p2212 = pneg %p2211
        $region194: #{model_forward.1} parent=123 // pred_check_branch
          %2214 = sbr.rel (%p2212) target = $region196
        $region195: #{model_forward.1} parent=123 // pred_region
          %v2215 = vld [vmem:[%s21] sm:$0x3]
          %v2216 = vld [vmem:[#allocation2] sm:$0xff]
          %v2217 = vld [vmem:[#allocation2 + $0x8] sm:$0xff]
          %v2218 = vsel %vm1667, %v2216, 0.0
          %2219 = vadd.xlane.f32.xlu0 %v2218
          %v2220 = vpop.xlane.xlu0 %2219
          %v2221 = vsel %vm1667, %v2217, 0.0
          %2222 = vadd.xlane.f32.xlu0 %v2221
          %v2223 = vpop.xlane.xlu0 %2222
          %v2224 = vmul.f32 %v2220, %v1937
          %v2225 = vmul.f32 %v2223, %v1937
          %v2226 = vsub.f32 %v2216, %v2224
          %v2227 = vsub.f32 %v2217, %v2225
          %v2228 = vmul.f32 %v2226, %v2226
          %v2229 = vmul.f32 %v2227, %v2227
          %v2230 = vsel %vm1667, %v2228, 0.0
          %2231 = vadd.xlane.f32.xlu0 %v2230
          %v2232 = vpop.xlane.xlu0 %2231
          %v2233 = vsel %vm1667, %v2229, 0.0
          %2234 = vadd.xlane.f32.xlu0 %v2233
          %v2235 = vpop.xlane.xlu0 %2234
          %v2236 = vmul.f32 %v2232, %v1937
          %v2237 = vmul.f32 %v2235, %v1937
          %v2238 = vadd.f32 %v2236, 1e-05
          %v2239 = vadd.f32 %v2237, 1e-05
          %v2240 = vrsqrt.pop %v2238
          %v2241 = vrsqrt.pop %v2239
          %v2242 = vmul.f32 %v2226, %v2240
          %v2243 = vmul.f32 %v2227, %v2241
          %v2244 = vlaneseq
          %v2245 = vshrl.u32 %v2244, 7
          %v2246 = vsub.s32 0, %v2245
          %v2247 = vrot.slane %v2215, %v2246
          %v2248 = vmul.f32 %v2242, %v2247
          %v2249 = vmul.f32 %v2243, %v2247
          %v2250 = vlaneseq
          %v2251 = vshrl.u32 %v2250, 7
          %v2252 = vsub.s32 1, %v2251
          %v2253 = vrot.slane %v2215, %v2252
          %v2254 = vadd.f32 %v2248, %v2253
          %v2255 = vadd.f32 %v2249, %v2253
          %v2256 = vld [vmem:[#allocation3] sm:$0xff]
          %v2257 = vld [vmem:[#allocation3 + $0x8] sm:$0xff]
          %v2258 = vld [vmem:[%s16] sm:$0xff]
          %v2259 = vld [vmem:[%s16 + $0x8] sm:$0xff]
          %v2260 = vld [vmem:[%s16 + $0x10] sm:$0xff]
          %v2261 = vld [vmem:[%s16 + $0x18] sm:$0xff]
          %v2262 = vld [vmem:[#allocation26] sm:$0x1]
          %v2264 = vlaneseq
          %v2265 = vshrl.u32 %v2264, 7
          %v2266 = vsub.s32 0, %v2265
          %v2267 = vrot.slane %v2262, %v2266
          %v2270 = vsel %vm1667, %v2256, 0
          %v2273 = vsel %vm1667, %v2257, 0
          %2275 = vmatprep.subr.mxu0 0.0
          %2276 = vmatpush1.msra.mxu0 0.0
          %2277 = vmatprep.subr.mxu0 0.0
          %2278 = vmatpush1.msra.mxu0 0.0
          %2279 = vmatprep.subr.mxu0 0.0
          %2280 = vmatpush1.msra.mxu0 0.0
          %2281 = vmatprep.subr.mxu0 0.0
          %2282 = vmatpush1.msra.mxu0 0.0
          %2283 = vmatprep.subr.mxu0 0.0
          %2284 = vmatpush1.msra.mxu0 0.0
          %2285 = vmatprep.subr.mxu0 0.0
          %2286 = vmatpush1.msra.mxu0 0.0
          %2287 = vmatprep.subr.mxu0 0.0
          %2288 = vmatpush1.msra.mxu0 0.0
          %2289 = vmatprep.subr.mxu0 0.0
          %2290 = vmatpush1.msra.mxu0 0.0
          %2291 = vmatprep.subr.mxu0 0.0
          %2292 = vmatpush1.msra.mxu0 0.0
          %2293 = vmatprep.subr.mxu0 0.0
          %2294 = vmatpush1.msra.mxu0 0.0
          %2295 = vmatprep.subr.mxu0 0.0
          %2296 = vmatpush1.msra.mxu0 0.0
          %2297 = vmatprep.subr.mxu0 0.0
          %2298 = vmatpush1.msra.mxu0 0.0
          %2299 = vmatprep.subr.mxu0 0.0
          %2300 = vmatpush1.msra.mxu0 %v2261
          %2301 = vmatprep.subr.mxu0 0.0
          %2302 = vmatpush1.msra.mxu0 %v2260
          %2303 = vmatprep.subr.mxu0 0.0
          %2304 = vmatpush1.msra.mxu0 %v2259
          %2305 = vmatprep.subr.mxu0 0.0
          %2306 = vmatpush1.msra.mxu0 %v2258
          %2307 = vmatprep.subr.mxu0 0.0
          %2308 = vmatpush2.msra.mxu0 0.0
          %2309 = vmatprep.subr.mxu0 0.0
          %2310 = vmatpush2.msra.mxu0 0.0
          %2311 = vmatprep.subr.mxu0 0.0
          %2312 = vmatpush2.msra.mxu0 0.0
          %2313 = vmatprep.subr.mxu0 0.0
          %2314 = vmatpush2.msra.mxu0 0.0
          %2315 = vmatprep.subr.mxu0 0.0
          %2316 = vmatpush2.msra.mxu0 0.0
          %2317 = vmatprep.subr.mxu0 0.0
          %2318 = vmatpush2.msra.mxu0 0.0
          %2319 = vmatprep.subr.mxu0 0.0
          %2320 = vmatpush2.msra.mxu0 0.0
          %2321 = vmatprep.subr.mxu0 0.0
          %2322 = vmatpush2.msra.mxu0 0.0
          %2323 = vmatprep.subr.mxu0 0.0
          %2324 = vmatpush2.msra.mxu0 0.0
          %2325 = vmatprep.subr.mxu0 0.0
          %2326 = vmatpush2.msra.mxu0 0.0
          %2327 = vmatprep.subr.mxu0 0.0
          %2328 = vmatpush2.msra.mxu0 0.0
          %2329 = vmatprep.subr.mxu0 0.0
          %2330 = vmatpush2.msra.mxu0 0.0
          %2331 = vmatprep.subr.mxu0 0.0
          %2332 = vmatpush2.msra.mxu0 0.0
          %2333 = vmatprep.subr.mxu0 0.0
          %2334 = vmatpush2.msra.mxu0 0.0
          %2335 = vmatprep.subr.mxu0 0.0
          %2336 = vmatpush2.msra.mxu0 0.0
          %2337 = vmatprep.subr.mxu0 0.0
          %2338 = vmatpush2.msra.mxu0 0.0
          %2339 = vmatprep.mubr.f32.mxu0 0.0
          %2340 = vmatmul.mubr.f32.gmra.mxu0 %v2270
          %v2341 = vpop.f32.mrf.mxu0
          %v2342 = vadd.f32 %v2267, %v2341
          %v2343 = vpop.f32.mrf.mxu0
          %2344 = vmatprep.mubr.f32.mxu0 0.0
          %2345 = vmatmul.mubr.f32.gmra.mxu0 %v2273
          %v2346 = vpop.f32.mrf.mxu0
          %v2347 = vadd.f32 %v2267, %v2346
          %v2348 = vpop.f32.mrf.mxu0
          %2349 = vdwg.mxu0
          %v2350 = vmul.f32 %v2342, 0.5
          %v2351 = vmul.f32 %v2347, 0.5
          %v2352 = vmul.f32 %v2342, %v1799
          %v2353 = vmul.f32 %v2347, %v1799
          %v2354 = verf.f32.pop %v2352
          %v2355 = verf.f32.pop %v2353
          %v2356 = vadd.f32 %v2354, 1.0
          %v2357 = vadd.f32 %v2355, 1.0
          %v2358 = vmul.f32 %v2350, %v2356
          %v2359 = vmul.f32 %v2351, %v2357
          %v2360 = vld [vmem:[%s20] sm:$0x3]
          %v2361 = vld [vmem:[%s18] sm:$0xff]
          %v2362 = vld [vmem:[%s18 + $0x8] sm:$0xff]
          %v2363 = vld [vmem:[%s19] sm:$0x1]
          %v2365 = vlaneseq
          %v2366 = vshrl.u32 %v2365, 7
          %v2367 = vsub.s32 0, %v2366
          %v2368 = vrot.slane %v2363, %v2367
          %vm2370 = vcmask 130048
          %v2372 = vsel %vm2370, %v2358, 0
          %v2375 = vsel %vm2370, %v2359, 0
          %2377 = vmatprep.subr.mxu0 0.0
          %2378 = vmatpush1.msra.mxu0 0.0
          %2379 = vmatprep.subr.mxu0 0.0
          %2380 = vmatpush1.msra.mxu0 0.0
          %2381 = vmatprep.subr.mxu0 0.0
          %2382 = vmatpush1.msra.mxu0 0.0
          %2383 = vmatprep.subr.mxu0 0.0
          %2384 = vmatpush1.msra.mxu0 0.0
          %2385 = vmatprep.subr.mxu0 0.0
          %2386 = vmatpush1.msra.mxu0 0.0
          %2387 = vmatprep.subr.mxu0 0.0
          %2388 = vmatpush1.msra.mxu0 0.0
          %2389 = vmatprep.subr.mxu0 0.0
          %2390 = vmatpush1.msra.mxu0 0.0
          %2391 = vmatprep.subr.mxu0 0.0
          %2392 = vmatpush1.msra.mxu0 0.0
          %2393 = vmatprep.subr.mxu0 0.0
          %2394 = vmatpush1.msra.mxu0 0.0
          %2395 = vmatprep.subr.mxu0 0.0
          %2396 = vmatpush1.msra.mxu0 0.0
          %2397 = vmatprep.subr.mxu0 0.0
          %2398 = vmatpush1.msra.mxu0 0.0
          %2399 = vmatprep.subr.mxu0 0.0
          %2400 = vmatpush1.msra.mxu0 0.0
          %2401 = vmatprep.subr.mxu0 0.0
          %2402 = vmatpush1.msra.mxu0 0.0
          %2403 = vmatprep.subr.mxu0 0.0
          %2404 = vmatpush1.msra.mxu0 0.0
          %2405 = vmatprep.subr.mxu0 0.0
          %2406 = vmatpush1.msra.mxu0 %v2362
          %2407 = vmatprep.subr.mxu0 0.0
          %2408 = vmatpush1.msra.mxu0 %v2361
          %2409 = vmatprep.subr.mxu0 0.0
          %2410 = vmatpush2.msra.mxu0 0.0
          %2411 = vmatprep.subr.mxu0 0.0
          %2412 = vmatpush2.msra.mxu0 0.0
          %2413 = vmatprep.subr.mxu0 0.0
          %2414 = vmatpush2.msra.mxu0 0.0
          %2415 = vmatprep.subr.mxu0 0.0
          %2416 = vmatpush2.msra.mxu0 0.0
          %2417 = vmatprep.subr.mxu0 0.0
          %2418 = vmatpush2.msra.mxu0 0.0
          %2419 = vmatprep.subr.mxu0 0.0
          %2420 = vmatpush2.msra.mxu0 0.0
          %2421 = vmatprep.subr.mxu0 0.0
          %2422 = vmatpush2.msra.mxu0 0.0
          %2423 = vmatprep.subr.mxu0 0.0
          %2424 = vmatpush2.msra.mxu0 0.0
          %2425 = vmatprep.subr.mxu0 0.0
          %2426 = vmatpush2.msra.mxu0 0.0
          %2427 = vmatprep.subr.mxu0 0.0
          %2428 = vmatpush2.msra.mxu0 0.0
          %2429 = vmatprep.subr.mxu0 0.0
          %2430 = vmatpush2.msra.mxu0 0.0
          %2431 = vmatprep.subr.mxu0 0.0
          %2432 = vmatpush2.msra.mxu0 0.0
          %2433 = vmatprep.subr.mxu0 0.0
          %2434 = vmatpush2.msra.mxu0 0.0
          %2435 = vmatprep.subr.mxu0 0.0
          %2436 = vmatpush2.msra.mxu0 0.0
          %2437 = vmatprep.subr.mxu0 0.0
          %2438 = vmatpush2.msra.mxu0 0.0
          %2439 = vmatprep.subr.mxu0 0.0
          %2440 = vmatpush2.msra.mxu0 0.0
          %2441 = vmatprep.mubr.f32.mxu0 0.0
          %2442 = vmatmul.mubr.f32.gmra.mxu0 %v2372
          %v2443 = vpop.f32.mrf.mxu0
          %v2444 = vadd.f32 %v2368, %v2443
          %v2445 = vpop.f32.mrf.mxu0
          %2446 = vmatprep.mubr.f32.mxu0 0.0
          %2447 = vmatmul.mubr.f32.gmra.mxu0 %v2375
          %v2448 = vpop.f32.mrf.mxu0
          %v2449 = vadd.f32 %v2368, %v2448
          %v2450 = vpop.f32.mrf.mxu0
          %2451 = vdwg.mxu0
          %2454 = vrot.lane.b32.xlu0 %v2342, 112
          %v2455 = vpop.permute.xlu0 %2454
          %2456 = vrot.lane.b32.xlu0 %v2347, 112
          %v2457 = vpop.permute.xlu0 %2456
          %v2460 = vadd.f32 %v2444, %v2455
          %v2461 = vadd.f32 %v2449, %v2457
          %v2462 = vsel %vm1667, %v2460, 0.0
          %2463 = vadd.xlane.f32.xlu0 %v2462
          %v2464 = vpop.xlane.xlu0 %2463
          %v2465 = vsel %vm1667, %v2461, 0.0
          %2466 = vadd.xlane.f32.xlu0 %v2465
          %v2467 = vpop.xlane.xlu0 %2466
          %v2468 = vmul.f32 %v2464, %v1937
          %v2469 = vmul.f32 %v2467, %v1937
          %v2470 = vsub.f32 %v2460, %v2468
          %v2471 = vsub.f32 %v2461, %v2469
          %v2472 = vmul.f32 %v2470, %v2470
          %v2473 = vmul.f32 %v2471, %v2471
          %v2474 = vsel %vm1667, %v2472, 0.0
          %2475 = vadd.xlane.f32.xlu0 %v2474
          %v2476 = vpop.xlane.xlu0 %2475
          %v2477 = vsel %vm1667, %v2473, 0.0
          %2478 = vadd.xlane.f32.xlu0 %v2477
          %v2479 = vpop.xlane.xlu0 %2478
          %v2480 = vmul.f32 %v2476, %v1937
          %v2481 = vmul.f32 %v2479, %v1937
          %v2482 = vadd.f32 %v2480, 1e-05
          %v2483 = vadd.f32 %v2481, 1e-05
          %v2484 = vrsqrt.pop %v2482
          %v2485 = vrsqrt.pop %v2483
          %v2486 = vmul.f32 %v2470, %v2484
          %v2487 = vmul.f32 %v2471, %v2485
          %v2488 = vlaneseq
          %v2489 = vshrl.u32 %v2488, 7
          %v2490 = vsub.s32 0, %v2489
          %v2491 = vrot.slane %v2360, %v2490
          %v2492 = vmul.f32 %v2486, %v2491
          %v2493 = vmul.f32 %v2487, %v2491
          %v2494 = vlaneseq
          %v2495 = vshrl.u32 %v2494, 7
          %v2496 = vsub.s32 1, %v2495
          %v2497 = vrot.slane %v2360, %v2496
          %v2498 = vadd.f32 %v2492, %v2497
          %v2499 = vadd.f32 %v2493, %v2497
          %v2500 = vadd.f32 %v2256, %v2498
          %v2501 = vadd.f32 %v2257, %v2499
          %v2502 = vld [vmem:[%s22] sm:$0xff]
          %v2503 = vld [vmem:[%s22 + $0x8] sm:$0xff]
          %v2504 = vld [vmem:[%s22 + $0x10] sm:$0xff]
          %v2505 = vld [vmem:[%s22 + $0x18] sm:$0xff]
          %v2506 = vld [vmem:[%s23] sm:$0x1]
          %v2508 = vlaneseq
          %v2509 = vshrl.u32 %v2508, 7
          %v2510 = vsub.s32 0, %v2509
          %v2511 = vrot.slane %v2506, %v2510
          %v2514 = vsel %vm1667, %v2254, 0
          %v2517 = vsel %vm1667, %v2255, 0
          %2519 = vmatprep.subr.mxu0 0.0
          %2520 = vmatpush1.msra.mxu0 0.0
          %2521 = vmatprep.subr.mxu0 0.0
          %2522 = vmatpush1.msra.mxu0 0.0
          %2523 = vmatprep.subr.mxu0 0.0
          %2524 = vmatpush1.msra.mxu0 0.0
          %2525 = vmatprep.subr.mxu0 0.0
          %2526 = vmatpush1.msra.mxu0 0.0
          %2527 = vmatprep.subr.mxu0 0.0
          %2528 = vmatpush1.msra.mxu0 0.0
          %2529 = vmatprep.subr.mxu0 0.0
          %2530 = vmatpush1.msra.mxu0 0.0
          %2531 = vmatprep.subr.mxu0 0.0
          %2532 = vmatpush1.msra.mxu0 0.0
          %2533 = vmatprep.subr.mxu0 0.0
          %2534 = vmatpush1.msra.mxu0 0.0
          %2535 = vmatprep.subr.mxu0 0.0
          %2536 = vmatpush1.msra.mxu0 0.0
          %2537 = vmatprep.subr.mxu0 0.0
          %2538 = vmatpush1.msra.mxu0 0.0
          %2539 = vmatprep.subr.mxu0 0.0
          %2540 = vmatpush1.msra.mxu0 0.0
          %2541 = vmatprep.subr.mxu0 0.0
          %2542 = vmatpush1.msra.mxu0 0.0
          %2543 = vmatprep.subr.mxu0 0.0
          %2544 = vmatpush1.msra.mxu0 %v2505
          %2545 = vmatprep.subr.mxu0 0.0
          %2546 = vmatpush1.msra.mxu0 %v2504
          %2547 = vmatprep.subr.mxu0 0.0
          %2548 = vmatpush1.msra.mxu0 %v2503
          %2549 = vmatprep.subr.mxu0 0.0
          %2550 = vmatpush1.msra.mxu0 %v2502
          %2551 = vmatprep.subr.mxu0 0.0
          %2552 = vmatpush2.msra.mxu0 0.0
          %2553 = vmatprep.subr.mxu0 0.0
          %2554 = vmatpush2.msra.mxu0 0.0
          %2555 = vmatprep.subr.mxu0 0.0
          %2556 = vmatpush2.msra.mxu0 0.0
          %2557 = vmatprep.subr.mxu0 0.0
          %2558 = vmatpush2.msra.mxu0 0.0
          %2559 = vmatprep.subr.mxu0 0.0
          %2560 = vmatpush2.msra.mxu0 0.0
          %2561 = vmatprep.subr.mxu0 0.0
          %2562 = vmatpush2.msra.mxu0 0.0
          %2563 = vmatprep.subr.mxu0 0.0
          %2564 = vmatpush2.msra.mxu0 0.0
          %2565 = vmatprep.subr.mxu0 0.0
          %2566 = vmatpush2.msra.mxu0 0.0
          %2567 = vmatprep.subr.mxu0 0.0
          %2568 = vmatpush2.msra.mxu0 0.0
          %2569 = vmatprep.subr.mxu0 0.0
          %2570 = vmatpush2.msra.mxu0 0.0
          %2571 = vmatprep.subr.mxu0 0.0
          %2572 = vmatpush2.msra.mxu0 0.0
          %2573 = vmatprep.subr.mxu0 0.0
          %2574 = vmatpush2.msra.mxu0 0.0
          %2575 = vmatprep.subr.mxu0 0.0
          %2576 = vmatpush2.msra.mxu0 0.0
          %2577 = vmatprep.subr.mxu0 0.0
          %2578 = vmatpush2.msra.mxu0 0.0
          %2579 = vmatprep.subr.mxu0 0.0
          %2580 = vmatpush2.msra.mxu0 0.0
          %2581 = vmatprep.subr.mxu0 0.0
          %2582 = vmatpush2.msra.mxu0 0.0
          %2583 = vmatprep.mubr.f32.mxu0 0.0
          %2584 = vmatmul.mubr.f32.gmra.mxu0 %v2514
          %v2585 = vpop.f32.mrf.mxu0
          %v2586 = vadd.f32 %v2511, %v2585
          %v2587 = vpop.f32.mrf.mxu0
          %2588 = vmatprep.mubr.f32.mxu0 0.0
          %2589 = vmatmul.mubr.f32.gmra.mxu0 %v2517
          %v2590 = vpop.f32.mrf.mxu0
          %v2591 = vadd.f32 %v2511, %v2590
          %v2592 = vpop.f32.mrf.mxu0
          %2593 = vdwg.mxu0
          %v2594 = vld [vmem:[%s24] sm:$0xff]
          %v2595 = vld [vmem:[%s24 + $0x8] sm:$0xff]
          %v2596 = vld [vmem:[%s24 + $0x10] sm:$0xff]
          %v2597 = vld [vmem:[%s24 + $0x18] sm:$0xff]
          %v2599 = vsel %vm1667, %v2500, 0
          %v2602 = vsel %vm1667, %v2501, 0
          %2604 = vmatprep.subr.mxu0 0.0
          %2605 = vmatpush1.msra.mxu0 0.0
          %2606 = vmatprep.subr.mxu0 0.0
          %2607 = vmatpush1.msra.mxu0 0.0
          %2608 = vmatprep.subr.mxu0 0.0
          %2609 = vmatpush1.msra.mxu0 0.0
          %2610 = vmatprep.subr.mxu0 0.0
          %2611 = vmatpush1.msra.mxu0 0.0
          %2612 = vmatprep.subr.mxu0 0.0
          %2613 = vmatpush1.msra.mxu0 0.0
          %2614 = vmatprep.subr.mxu0 0.0
          %2615 = vmatpush1.msra.mxu0 0.0
          %2616 = vmatprep.subr.mxu0 0.0
          %2617 = vmatpush1.msra.mxu0 0.0
          %2618 = vmatprep.subr.mxu0 0.0
          %2619 = vmatpush1.msra.mxu0 0.0
          %2620 = vmatprep.subr.mxu0 0.0
          %2621 = vmatpush1.msra.mxu0 0.0
          %2622 = vmatprep.subr.mxu0 0.0
          %2623 = vmatpush1.msra.mxu0 0.0
          %2624 = vmatprep.subr.mxu0 0.0
          %2625 = vmatpush1.msra.mxu0 0.0
          %2626 = vmatprep.subr.mxu0 0.0
          %2627 = vmatpush1.msra.mxu0 0.0
          %2628 = vmatprep.subr.mxu0 0.0
          %2629 = vmatpush1.msra.mxu0 %v2597
          %2630 = vmatprep.subr.mxu0 0.0
          %2631 = vmatpush1.msra.mxu0 %v2596
          %2632 = vmatprep.subr.mxu0 0.0
          %2633 = vmatpush1.msra.mxu0 %v2595
          %2634 = vmatprep.subr.mxu0 0.0
          %2635 = vmatpush1.msra.mxu0 %v2594
          %2636 = vmatprep.subr.mxu0 0.0
          %2637 = vmatpush2.msra.mxu0 0.0
          %2638 = vmatprep.subr.mxu0 0.0
          %2639 = vmatpush2.msra.mxu0 0.0
          %2640 = vmatprep.subr.mxu0 0.0
          %2641 = vmatpush2.msra.mxu0 0.0
          %2642 = vmatprep.subr.mxu0 0.0
          %2643 = vmatpush2.msra.mxu0 0.0
          %2644 = vmatprep.subr.mxu0 0.0
          %2645 = vmatpush2.msra.mxu0 0.0
          %2646 = vmatprep.subr.mxu0 0.0
          %2647 = vmatpush2.msra.mxu0 0.0
          %2648 = vmatprep.subr.mxu0 0.0
          %2649 = vmatpush2.msra.mxu0 0.0
          %2650 = vmatprep.subr.mxu0 0.0
          %2651 = vmatpush2.msra.mxu0 0.0
          %2652 = vmatprep.subr.mxu0 0.0
          %2653 = vmatpush2.msra.mxu0 0.0
          %2654 = vmatprep.subr.mxu0 0.0
          %2655 = vmatpush2.msra.mxu0 0.0
          %2656 = vmatprep.subr.mxu0 0.0
          %2657 = vmatpush2.msra.mxu0 0.0
          %2658 = vmatprep.subr.mxu0 0.0
          %2659 = vmatpush2.msra.mxu0 0.0
          %2660 = vmatprep.subr.mxu0 0.0
          %2661 = vmatpush2.msra.mxu0 0.0
          %2662 = vmatprep.subr.mxu0 0.0
          %2663 = vmatpush2.msra.mxu0 0.0
          %2664 = vmatprep.subr.mxu0 0.0
          %2665 = vmatpush2.msra.mxu0 0.0
          %2666 = vmatprep.subr.mxu0 0.0
          %2667 = vmatpush2.msra.mxu0 0.0
          %2668 = vmatprep.mubr.f32.mxu0 0.0
          %2669 = vmatmul.mubr.f32.gmra.mxu0 %v2599
          %v2670 = vpop.f32.mrf.mxu0
          %v2671 = vadd.f32 0.0, %v2670
          %v2672 = vpop.f32.mrf.mxu0
          %2673 = vmatprep.mubr.f32.mxu0 0.0
          %2674 = vmatmul.mubr.f32.gmra.mxu0 %v2602
          %v2675 = vpop.f32.mrf.mxu0
          %v2676 = vadd.f32 0.0, %v2675
          %v2677 = vpop.f32.mrf.mxu0
          %2678 = vdwg.mxu0
          %v2679 = vadd.f32 %v2586, %v2671
          %v2680 = vadd.f32 %v2591, %v2676
          %v2681 = vld [vmem:[%s25] sm:$0x1]
          %v2683 = vlaneseq
          %v2684 = vshrl.u32 %v2683, 7
          %v2685 = vsub.s32 0, %v2684
          %v2686 = vrot.slane %v2681, %v2685
          %v2688 = vadd.f32 %v2679, %v2686
          %v2689 = vadd.f32 %v2680, %v2686
          %v2690 = vld [vmem:[#allocation5] sm:$0xf]
          %v2691 = vld [vmem:[#allocation5 + $0x4] sm:$0xf]
          %2693 = vset.pattern.permute.xlu0 0
          %2694 = vperm.xlu0 %2693, %v2690
          %v2695 = vpop.permute.xlu0 %2694
          %2698 = vset.pattern.permute.xlu0 0
          %2699 = vperm.xlu0 %2698, %v2691
          %v2700 = vpop.permute.xlu0 %2699
          %v2702 = vmul.f32 %v2688, %v2695
          %v2703 = vmul.f32 %v2689, %v2700
          %v2704 = vld [vmem:[#allocation4] sm:$0xf]
          %v2705 = vld [vmem:[#allocation4 + $0x4] sm:$0xf]
          %2707 = vset.pattern.permute.xlu0 0
          %2708 = vperm.xlu0 %2707, %v2704
          %v2709 = vpop.permute.xlu0 %2708
          %2712 = vset.pattern.permute.xlu0 0
          %2713 = vperm.xlu0 %2712, %v2705
          %v2714 = vpop.permute.xlu0 %2713
          %v2716 = vadd.f32 %v2702, %v2709
          %v2717 = vadd.f32 %v2703, %v2714
          %vm2718 = vcmask 60416
          %2719 = vst.msk [vmem:[#allocation27] sm:$0xf] %vm2718, %v2716
          %2720 = vst.msk [vmem:[#allocation27 + $0x4] sm:$0xf] %vm2718, %v2717
        $region196: #{model_forward.1} parent=123 // pred_fallthru
          _
        // Predicated region
        $region197: #{model_forward.1} parent=123 // pred_check
          %p2721 = pneg %p646
        $region198: #{model_forward.1} parent=123 // pred_check_branch
          %2723 = sbr.rel (%p2721) target = $region200
        $region199: #{model_forward.1} parent=123 // pred_region
          %s2725 = ssub.s32 128, 128
          %2726 = vsyncadd [#allocation8], %s2725
          %s2727 = sshll.u32 [#allocation27], 4
          %s2728 = int_to_ptr.vmem [resolvable:$true] %s2727
          %2733 = dma.vmem_to_hbm [thread:$0]  %s2728, 128, %s26, [#allocation8], 64, 64, 4
        $region200: #{model_forward.1} parent=123 // pred_fallthru
          _
        // Predicated region
        $region201: #{model_forward.1} parent=123 // pred_check
          %p2734 = pneg %p646
        $region202: #{model_forward.1} parent=123 // pred_check_branch
          %2736 = sbr.rel (%p2734) target = $region204
        $region203: #{model_forward.1} parent=123 // pred_region
          %2737 = dma.done [#allocation8], 128
        $region204: #{model_forward.1} parent=123 // pred_fallthru
          _
      $region124: #{model_forward.1} parent=5 // pred_fallthru
        _
      %p2738 = scmp.le.s32.totalorder 2, %s37
      // Predicated region
      $region205: #{model_forward.1} parent=5 // pred_check
        %p2739 = pneg %p2738
      $region206: #{model_forward.1} parent=5 // pred_check_branch
        %2741 = sbr.rel (%p2739) target = $region208
      $region207: #{model_forward.1} parent=5 // pred_region
        %s2742 = ssub.s32 %s37, 2
      $region208: #{model_forward.1} parent=5 // pred_fallthru
        _
    $region6: #{model_forward.1} parent=1 // loop_footer
      %s41 = sadd.s32 1, %s37
    $region7: #{model_forward.1} parent=1 // loop_footer_branch
      %36 = sbr.rel target = $region3
    $region8: #{model_forward.1} parent=1 // loop_exit
      _
    %2743 = vsyncpa [#allocation7], 1
    %s2744 = scalar_lea.sflag [#allocation7], 1
    %2745 = vsyncpa %s2744, 1
    %2746 = vsyncpa [#allocation10], 1
    %2747 = vsyncpa [#allocation13], 1
    %2748 = vsyncpa [#allocation16], 1
    %2749 = vsyncpa [#allocation8], 1
    %s2750 = scalar_lea.sflag [#allocation8], 1
    %2751 = vsyncpa %s2750, 1

</llo_original>
